<compile_context>
chip_gen: v7x
topology: tpu7x:2x2x1
jax: 0.10.0
libtpu: 0.0.40
codegen_flags: <defaults>
</compile_context>

<pallas_src>
import functools

import numpy as np
import jax
import jax.numpy as jnp
from jax import lax
from jax.experimental import pallas as pl
from jax.experimental.pallas import tpu as pltpu

# ----------------------------- configuration ---------------------------------
DIM = 32                    # dim
NUM_HEADS = 8
PH, PW = 2, 2               # stoken_size
EPS_LN = 1e-6

_NT = (((1,), (1,)), ((), ()))   # dot_general: contract last dim of both operands
_TN = (((0,), (0,)), ((), ()))   # dot_general: contract first dim of both operands


# --------------------- constant matrices (host precompute) --------------------
@functools.lru_cache(maxsize=None)
def _stoken_constants(H, W, ph, pw, dim):
    """Pooling matrix (scale folded in), additive 3x3-neighbourhood mask, and
    per-pixel count of zero-padded (invalid) neighbours.

    pool_s:  (HW, L)  pool_s[p, l] = dim**-0.5 / (ph*pw) iff pixel p is in block l.
    negmask: (L, HW)  0 where super token l is one of the 9 (3x3) neighbours of
                      the block owning pixel p, else -1e30 (additive softmax mask).
    ninv:    (1, HW)  number of out-of-grid neighbours of blk(p) (0 / 3 / 5);
                      these padded slots have score exactly 0 in the reference
                      (zero-padded unfold) and must be counted in the softmax.
    """
    Hs, Ws = H // ph, W // pw
    L, HW, M = Hs * Ws, H * W, ph * pw
    p = np.arange(HW)
    blk = ((p // W) // ph) * Ws + (p % W) // pw                      # block of pixel p
    member = (np.arange(L)[:, None] == blk[None, :])                 # (L, HW)
    scale = float(dim) ** -0.5
    pool_s = member.T.astype(np.float32) * (scale / float(M))        # (HW, L)

    li = np.arange(L)
    ly, lx = li // Ws, li % Ws
    by, bx = blk // Ws, blk % Ws
    nbr = ((np.abs(ly[:, None] - by[None, :]) <= 1) &
           (np.abs(lx[:, None] - bx[None, :]) <= 1))                 # (L, HW)
    negmask = np.where(nbr, 0.0, -1e30).astype(np.float32)
    ninv = (9.0 - nbr.sum(axis=0, keepdims=True)).astype(np.float32)  # (1, HW)
    return pool_s, negmask, ninv


@functools.lru_cache(maxsize=None)
def _head_mask(L, C, heads):
    """(heads*L, C) 0/1 mask: rows [h*L:(h+1)*L] select head h's columns."""
    hd = C // heads
    hm = np.zeros((heads * L, C), np.float32)
    for h in range(heads):
        hm[h * L:(h + 1) * L, h * hd:(h + 1) * hd] = 1.0
    return hm


# ------------------------------ fused kernel ----------------------------------
def _stoken_kernel(x_ref, g_ref, b_ref, pool_ref, negmask_ref, ninv_ref,
                   hmask_ref, wqkv_ref, wp_ref, bp_ref, o_ref):
    """One batch element per grid step; every intermediate stays in VMEM."""
    C, HW = x_ref.shape                      # (32, 256)
    L = pool_ref.shape[1]                    # number of super tokens (64)
    f32 = jnp.float32

    # ---- pre_bn: channels-first LayerNorm (normalize over C per pixel) ------
    x = x_ref[...]                                       # (C, HW)
    mu = jnp.mean(x, axis=0, keepdims=True)
    xc = x - mu
    var = jnp.mean(xc * xc, axis=0, keepdims=True)
    x = xc * lax.rsqrt(var + EPS_LN)
    x = x * g_ref[...] + b_ref[...]                      # per-channel affine

    # ---- adaptive_avg_pool2d (block mean); affinity scale folded into pool --
    stoken_s = jnp.dot(x, pool_ref[...], preferred_element_type=f32)    # (C, L)

    # ---- dense affinity + masked softmax over the 9 neighbouring stokens ----
    # s[l, p] = scale * <stoken_l, x_p> restricted to the 3x3 neighbourhood of
    # blk(p) via an additive mask; padded (invalid) neighbours contribute
    # exp(0 - m) to the denominator exactly like the zero-padded unfold.
    s = lax.dot_general(stoken_s, x, _TN, preferred_element_type=f32)   # (L, HW)
    s = s + negmask_ref[...]
    m = jnp.maximum(jnp.max(s, axis=0, keepdims=True), 0.0)             # (1, HW)
    e = jnp.exp(s - m)                                   # masked entries underflow to 0
    pad = ninv_ref[...] * jnp.exp(-m)                    # zero-score padded slots
    denom = jnp.sum(e, axis=0, keepdims=True) + pad
    gmat = e * pl.reciprocal(denom, approx=True)         # (L, HW) == folded affinity

    # ---- aggregate pixels into super tokens: ONE fold matmul ----------------
    num = lax.dot_general(gmat, x, _NT, preferred_element_type=f32)     # (L, C)
    den = jnp.sum(gmat, axis=1, keepdims=True)                          # (L, 1)
    tok = num * pl.reciprocal(den + 1e-12, approx=True)                 # (L, C)

    # ---- refine: multi-head self-attention over the L super tokens ----------
    # fused qkv matmul; head scale already folded into the Wq columns.
    qkv = jnp.dot(tok, wqkv_ref[...], preferred_element_type=f32)       # (L, 3C)
    q = qkv[:, :C]
    kk = qkv[:, C:2 * C]
    v = qkv[:, 2 * C:]

    hm = hmask_ref[...]                                                 # (8L, C)
    qm = jnp.broadcast_to(q, (NUM_HEADS, L, C)).reshape(NUM_HEADS * L, C) * hm
    att = lax.dot_general(qm, kk, _NT, preferred_element_type=f32)      # (8L, L)
    att = att - jnp.max(att, axis=-1, keepdims=True)
    ea = jnp.exp(att)
    pa = ea * pl.reciprocal(jnp.sum(ea, axis=-1, keepdims=True), approx=True)
    o_all = jnp.dot(pa, v, preferred_element_type=f32)                  # (8L, C)
    attn = jnp.sum((o_all * hm).reshape(NUM_HEADS, L, C), axis=0)       # (L, C)
    refined = jnp.dot(attn, wp_ref[...], preferred_element_type=f32) + bp_ref[...]

    # ---- broadcast refined super tokens back to pixels -----------------------
    # out[c, p] = sum_l refined[l, c] * gmat[l, p]
    o_ref[...] = lax.dot_general(refined, gmat, _TN, preferred_element_type=f32)


# ------------------------------ public wrapper --------------------------------
@jax.jit
def stoken_attention_forward(x, params):
    """x: (B, C, H, W) float32 NCHW  ->  (B, C, H, W) float32 (same as PyTorch)."""
    B, C, H, W = x.shape
    # _interpolate is the identity when H % ph == 0 and W % pw == 0 (true here).
    # TODO(synk): bilinear F.interpolate fallback for non-divisible H/W not implemented.
    assert H % PH == 0 and W % PW == 0
    HW = H * W
    L = (H // PH) * (W // PW)
    head_dim = C // NUM_HEADS

    pool_np, negmask_np, ninv_np = _stoken_constants(H, W, PH, PW, C)
    hmask_np = _head_mask(L, C, NUM_HEADS)
    pool_s = jnp.asarray(pool_np)                        # (HW, L)
    negmask = jnp.asarray(negmask_np)                    # (L, HW)
    ninv = jnp.asarray(ninv_np)                          # (1, HW)
    hmask = jnp.asarray(hmask_np)                        # (8L, C)

    x2 = x.reshape(B, C, HW)                             # free reshape, no transpose
    g2 = params['ln_gamma'].reshape(C, 1)
    b2 = params['ln_beta'].reshape(C, 1)

    # qkv_bias=False; fold the attention head scale into the Wq columns (host-side).
    # NOTE: wqkv is (in, 3*out) column-blocked [q|k|v]; importing a PyTorch
    # nn.Linear (3C, C) checkpoint requires a transpose.
    head_scale = float(head_dim) ** -0.5
    wqkv_s = params['wqkv'].at[:, :C].multiply(head_scale)   # (C, 3C)
    bp = params['bproj'].reshape(1, C)

    out = pl.pallas_call(
        _stoken_kernel,
        grid=(B,),
        in_specs=[
            pl.BlockSpec((None, C, HW), lambda b: (b, 0, 0)),        # x (per batch)
            pl.BlockSpec((C, 1), lambda b: (0, 0)),                  # LN gamma
            pl.BlockSpec((C, 1), lambda b: (0, 0)),                  # LN beta
            pl.BlockSpec((HW, L), lambda b: (0, 0)),                 # scaled pooling
            pl.BlockSpec((L, HW), lambda b: (0, 0)),                 # additive 3x3 mask
            pl.BlockSpec((1, HW), lambda b: (0, 0)),                 # invalid-nbr count
            pl.BlockSpec((NUM_HEADS * L, C), lambda b: (0, 0)),      # stacked head mask
            pl.BlockSpec((C, 3 * C), lambda b: (0, 0)),              # fused Wqkv (scaled)
            pl.BlockSpec((C, C), lambda b: (0, 0)),                  # Wproj
            pl.BlockSpec((1, C), lambda b: (0, 0)),                  # bproj
        ],
        out_specs=pl.BlockSpec((None, C, HW), lambda b: (b, 0, 0)),  # lane-dense (C, HW)
        out_shape=jax.ShapeDtypeStruct((B, C, HW), jnp.float32),
        compiler_params=pltpu.CompilerParams(
            dimension_semantics=("parallel",),                       # 2 TCs on v7x
            vmem_limit_bytes=32 * 1024 * 1024),
    )(x2, g2, b2, pool_s, negmask, ninv, hmask, wqkv_s, params['wproj'], bp)

    return out.reshape(B, C, H, W)


# ------------------------------------- main ------------------------------------
if __name__ == "__main__":
    key = jax.random.PRNGKey(0)
    k_qkv, k_proj, k_x = jax.random.split(key, 3)

    params = {
        'ln_gamma': jnp.ones((DIM,), jnp.float32),
        'ln_beta':  jnp.zeros((DIM,), jnp.float32),
        'wqkv':  0.02 * jax.random.normal(k_qkv, (DIM, 3 * DIM), jnp.float32),
        'wproj': 0.02 * jax.random.normal(k_proj, (DIM, DIM), jnp.float32),
        'bproj': jnp.zeros((DIM,), jnp.float32),
    }

    # small shapes consistent with the module: B=2, C=dim=32, H=W=16, stoken=2x2
    x = jax.random.normal(k_x, (2, DIM, 16, 16), jnp.float32)

    out = stoken_attention_forward(x, params)
    jax.block_until_ready(out)
    assert out.shape == x.shape and out.dtype == jnp.float32
    print("KERNEL_OK")
</pallas_src>

<mosaic_0001>
module attributes {stable_mosaic.version = 11 : i64} {
  func.func @_stoken_kernel(%arg0: i32, %arg1: memref<1x32x256xf32, #tpu.memory_space<vmem>>, %arg2: memref<32x1xf32, #tpu.memory_space<vmem>>, %arg3: memref<32x1xf32, #tpu.memory_space<vmem>>, %arg4: memref<256x64xf32, #tpu.memory_space<vmem>>, %arg5: memref<64x256xf32, #tpu.memory_space<vmem>>, %arg6: memref<1x256xf32, #tpu.memory_space<vmem>>, %arg7: memref<512x32xf32, #tpu.memory_space<vmem>>, %arg8: memref<32x96xf32, #tpu.memory_space<vmem>>, %arg9: memref<32x32xf32, #tpu.memory_space<vmem>>, %arg10: memref<1x32xf32, #tpu.memory_space<vmem>>, %arg11: memref<1x32x256xf32, #tpu.memory_space<vmem>>) attributes {dimension_semantics = [#tpu.dimension_semantics<parallel>], iteration_bounds = array<i64: 2>, scalar_prefetch = 0 : i64, scratch_operands = 0 : i64, tpu.core_type = #tpu.core_type<tc>, window_params = [{transform_indices = @transform_0, window_bounds = array<i64: 1, 32, 256>}, {pipeline_mode = #tpu.pipeline_mode<synchronous>, transform_indices = @transform_1, window_bounds = array<i64: 32, 1>}, {pipeline_mode = #tpu.pipeline_mode<synchronous>, transform_indices = @transform_2, window_bounds = array<i64: 32, 1>}, {pipeline_mode = #tpu.pipeline_mode<synchronous>, transform_indices = @transform_3, window_bounds = array<i64: 256, 64>}, {pipeline_mode = #tpu.pipeline_mode<synchronous>, transform_indices = @transform_4, window_bounds = array<i64: 64, 256>}, {pipeline_mode = #tpu.pipeline_mode<synchronous>, transform_indices = @transform_5, window_bounds = array<i64: 1, 256>}, {pipeline_mode = #tpu.pipeline_mode<synchronous>, transform_indices = @transform_6, window_bounds = array<i64: 512, 32>}, {pipeline_mode = #tpu.pipeline_mode<synchronous>, transform_indices = @transform_7, window_bounds = array<i64: 32, 96>}, {pipeline_mode = #tpu.pipeline_mode<synchronous>, transform_indices = @transform_8, window_bounds = array<i64: 32, 32>}, {pipeline_mode = #tpu.pipeline_mode<synchronous>, transform_indices = @transform_9, window_bounds = array<i64: 1, 32>}, {transform_indices = @transform_10, window_bounds = array<i64: 1, 32, 256>}]} {
    %c0 = arith.constant 0 : index
    %c0_0 = arith.constant 0 : index
    %c0_1 = arith.constant 0 : index
    %0 = vector.load %arg1[%c0, %c0_0, %c0_1] : memref<1x32x256xf32, #tpu.memory_space<vmem>>, vector<1x32x256xf32>
    %1 = vector.shape_cast %0 : vector<1x32x256xf32> to vector<32x256xf32>
    %cst = arith.constant dense<0.000000e+00> : vector<256xf32>
    %2 = vector.multi_reduction <add>, %1, %cst [0] : vector<32x256xf32> to vector<256xf32>
    %3 = vector.shape_cast %2 : vector<256xf32> to vector<1x256xf32>
    %cst_2 = arith.constant 3.200000e+01 : f32
    %4 = vector.broadcast %cst_2 : f32 to vector<1x256xf32>
    %5 = arith.divf %3, %4 : vector<1x256xf32>
    %6 = vector.broadcast %5 : vector<1x256xf32> to vector<32x256xf32>
    %7 = arith.subf %1, %6 : vector<32x256xf32>
    %8 = arith.mulf %7, %7 : vector<32x256xf32>
    %cst_3 = arith.constant dense<0.000000e+00> : vector<256xf32>
    %9 = vector.multi_reduction <add>, %8, %cst_3 [0] : vector<32x256xf32> to vector<256xf32>
    %10 = vector.shape_cast %9 : vector<256xf32> to vector<1x256xf32>
    %cst_4 = arith.constant 3.200000e+01 : f32
    %11 = vector.broadcast %cst_4 : f32 to vector<1x256xf32>
    %12 = arith.divf %10, %11 : vector<1x256xf32>
    %cst_5 = arith.constant 9.99999997E-7 : f32
    %13 = vector.broadcast %cst_5 : f32 to vector<1x256xf32>
    %14 = arith.addf %12, %13 : vector<1x256xf32>
    %15 = math.rsqrt %14 : vector<1x256xf32>
    %16 = vector.broadcast %15 : vector<1x256xf32> to vector<32x256xf32>
    %17 = arith.mulf %7, %16 : vector<32x256xf32>
    %c0_6 = arith.constant 0 : index
    %c0_7 = arith.constant 0 : index
    %18 = vector.load %arg2[%c0_6, %c0_7] : memref<32x1xf32, #tpu.memory_space<vmem>>, vector<32x1xf32>
    %19 = vector.broadcast %18 : vector<32x1xf32> to vector<32x256xf32>
    %20 = arith.mulf %17, %19 : vector<32x256xf32>
    %c0_8 = arith.constant 0 : index
    %c0_9 = arith.constant 0 : index
    %21 = vector.load %arg3[%c0_8, %c0_9] : memref<32x1xf32, #tpu.memory_space<vmem>>, vector<32x1xf32>
    %22 = vector.broadcast %21 : vector<32x1xf32> to vector<32x256xf32>
    %23 = arith.addf %20, %22 : vector<32x256xf32>
    %c0_10 = arith.constant 0 : index
    %c0_11 = arith.constant 0 : index
    %24 = vector.load %arg4[%c0_10, %c0_11] : memref<256x64xf32, #tpu.memory_space<vmem>>, vector<256x64xf32>
    %cst_12 = arith.constant dense<0.000000e+00> : vector<32x64xf32>
    %25 = tpu.matmul %23, %24, %cst_12 {dimension_numbers = #tpu.dot_dimension_numbers<[1], [0], [0], [1], [0, 0, 1, 1], [], []>} : vector<32x256xf32>, vector<256x64xf32>, vector<32x64xf32> -> vector<32x64xf32>
    %cst_13 = arith.constant dense<0.000000e+00> : vector<64x256xf32>
    %26 = tpu.matmul %25, %23, %cst_13 {dimension_numbers = #tpu.dot_dimension_numbers<[0], [0], [1], [1], [0, 1, 1, 1], [], []>} : vector<32x64xf32>, vector<32x256xf32>, vector<64x256xf32> -> vector<64x256xf32>
    %c0_14 = arith.constant 0 : index
    %c0_15 = arith.constant 0 : index
    %27 = vector.load %arg5[%c0_14, %c0_15] : memref<64x256xf32, #tpu.memory_space<vmem>>, vector<64x256xf32>
    %28 = arith.addf %26, %27 : vector<64x256xf32>
    %cst_16 = arith.constant dense<0xFF800000> : vector<256xf32>
    %29 = vector.multi_reduction <maximumf>, %28, %cst_16 [0] : vector<64x256xf32> to vector<256xf32>
    %30 = vector.shape_cast %29 : vector<256xf32> to vector<1x256xf32>
    %cst_17 = arith.constant 0.000000e+00 : f32
    %31 = vector.broadcast %cst_17 : f32 to vector<1x256xf32>
    %32 = arith.maximumf %30, %31 : vector<1x256xf32>
    %33 = vector.broadcast %32 : vector<1x256xf32> to vector<64x256xf32>
    %34 = arith.subf %28, %33 : vector<64x256xf32>
    %35 = math.exp %34 : vector<64x256xf32>
    %c0_18 = arith.constant 0 : index
    %c0_19 = arith.constant 0 : index
    %36 = vector.load %arg6[%c0_18, %c0_19] : memref<1x256xf32, #tpu.memory_space<vmem>>, vector<1x256xf32>
    %cst_20 = arith.constant 0.000000e+00 : f32
    %37 = vector.broadcast %cst_20 : f32 to vector<1x256xf32>
    %38 = arith.subf %37, %32 : vector<1x256xf32>
    %39 = math.exp %38 : vector<1x256xf32>
    %40 = arith.mulf %36, %39 : vector<1x256xf32>
    %cst_21 = arith.constant dense<0.000000e+00> : vector<256xf32>
    %41 = vector.multi_reduction <add>, %35, %cst_21 [0] : vector<64x256xf32> to vector<256xf32>
    %42 = vector.shape_cast %41 : vector<256xf32> to vector<1x256xf32>
    %43 = arith.addf %42, %40 : vector<1x256xf32>
    %44 = tpu.reciprocal %43 {approx = true} : vector<1x256xf32> -> vector<1x256xf32>
    %45 = vector.broadcast %44 : vector<1x256xf32> to vector<64x256xf32>
    %46 = arith.mulf %35, %45 : vector<64x256xf32>
    %cst_22 = arith.constant dense<0.000000e+00> : vector<64x32xf32>
    %47 = tpu.matmul %46, %23, %cst_22 {dimension_numbers = #tpu.dot_dimension_numbers<[1], [1], [0], [0], [0, 0, 1, 0], [], []>} : vector<64x256xf32>, vector<32x256xf32>, vector<64x32xf32> -> vector<64x32xf32>
    %cst_23 = arith.constant dense<0.000000e+00> : vector<64xf32>
    %48 = vector.multi_reduction <add>, %46, %cst_23 [1] : vector<64x256xf32> to vector<64xf32>
    %49 = vector.shape_cast %48 : vector<64xf32> to vector<64x1xf32>
    %cst_24 = arith.constant 9.99999996E-13 : f32
    %50 = vector.broadcast %cst_24 : f32 to vector<64x1xf32>
    %51 = arith.addf %49, %50 : vector<64x1xf32>
    %52 = tpu.reciprocal %51 {approx = true} : vector<64x1xf32> -> vector<64x1xf32>
    %53 = vector.broadcast %52 : vector<64x1xf32> to vector<64x32xf32>
    %54 = arith.mulf %47, %53 : vector<64x32xf32>
    %c0_25 = arith.constant 0 : index
    %c0_26 = arith.constant 0 : index
    %55 = vector.load %arg8[%c0_25, %c0_26] : memref<32x96xf32, #tpu.memory_space<vmem>>, vector<32x96xf32>
    %cst_27 = arith.constant dense<0.000000e+00> : vector<64x96xf32>
    %56 = tpu.matmul %54, %55, %cst_27 {dimension_numbers = #tpu.dot_dimension_numbers<[1], [0], [0], [1], [0, 0, 1, 1], [], []>} : vector<64x32xf32>, vector<32x96xf32>, vector<64x96xf32> -> vector<64x96xf32>
    %57 = vector.extract_strided_slice %56 {offsets = [0, 0], sizes = [64, 32], strides = [1, 1]} : vector<64x96xf32> to vector<64x32xf32>
    %58 = vector.extract_strided_slice %56 {offsets = [0, 32], sizes = [64, 32], strides = [1, 1]} : vector<64x96xf32> to vector<64x32xf32>
    %59 = vector.extract_strided_slice %56 {offsets = [0, 64], sizes = [64, 32], strides = [1, 1]} : vector<64x96xf32> to vector<64x32xf32>
    %c0_28 = arith.constant 0 : index
    %c0_29 = arith.constant 0 : index
    %60 = vector.load %arg7[%c0_28, %c0_29] : memref<512x32xf32, #tpu.memory_space<vmem>>, vector<512x32xf32>
    %61 = vector.shape_cast %57 : vector<64x32xf32> to vector<1x64x32xf32>
    %62 = vector.broadcast %61 : vector<1x64x32xf32> to vector<8x64x32xf32>
    %63 = vector.shape_cast %62 : vector<8x64x32xf32> to vector<512x32xf32>
    %64 = arith.mulf %63, %60 : vector<512x32xf32>
    %cst_30 = arith.constant dense<0.000000e+00> : vector<512x64xf32>
    %65 = tpu.matmul %64, %58, %cst_30 {dimension_numbers = #tpu.dot_dimension_numbers<[1], [1], [0], [0], [0, 0, 1, 0], [], []>} : vector<512x32xf32>, vector<64x32xf32>, vector<512x64xf32> -> vector<512x64xf32>
    %cst_31 = arith.constant dense<0xFF800000> : vector<512xf32>
    %66 = vector.multi_reduction <maximumf>, %65, %cst_31 [1] : vector<512x64xf32> to vector<512xf32>
    %67 = vector.shape_cast %66 : vector<512xf32> to vector<512x1xf32>
    %68 = vector.broadcast %67 : vector<512x1xf32> to vector<512x64xf32>
    %69 = arith.subf %65, %68 : vector<512x64xf32>
    %70 = math.exp %69 : vector<512x64xf32>
    %cst_32 = arith.constant dense<0.000000e+00> : vector<512xf32>
    %71 = vector.multi_reduction <add>, %70, %cst_32 [1] : vector<512x64xf32> to vector<512xf32>
    %72 = vector.shape_cast %71 : vector<512xf32> to vector<512x1xf32>
    %73 = tpu.reciprocal %72 {approx = true} : vector<512x1xf32> -> vector<512x1xf32>
    %74 = vector.broadcast %73 : vector<512x1xf32> to vector<512x64xf32>
    %75 = arith.mulf %70, %74 : vector<512x64xf32>
    %cst_33 = arith.constant dense<0.000000e+00> : vector<512x32xf32>
    %76 = tpu.matmul %75, %59, %cst_33 {dimension_numbers = #tpu.dot_dimension_numbers<[1], [0], [0], [1], [0, 0, 1, 1], [], []>} : vector<512x64xf32>, vector<64x32xf32>, vector<512x32xf32> -> vector<512x32xf32>
    %77 = arith.mulf %76, %60 : vector<512x32xf32>
    %78 = vector.shape_cast %77 : vector<512x32xf32> to vector<8x64x32xf32>
    %cst_34 = arith.constant dense<0.000000e+00> : vector<64x32xf32>
    %79 = vector.multi_reduction <add>, %78, %cst_34 [0] : vector<8x64x32xf32> to vector<64x32xf32>
    %c0_35 = arith.constant 0 : index
    %c0_36 = arith.constant 0 : index
    %80 = vector.load %arg9[%c0_35, %c0_36] : memref<32x32xf32, #tpu.memory_space<vmem>>, vector<32x32xf32>
    %cst_37 = arith.constant dense<0.000000e+00> : vector<64x32xf32>
    %81 = tpu.matmul %79, %80, %cst_37 {dimension_numbers = #tpu.dot_dimension_numbers<[1], [0], [0], [1], [0, 0, 1, 1], [], []>} : vector<64x32xf32>, vector<32x32xf32>, vector<64x32xf32> -> vector<64x32xf32>
    %c0_38 = arith.constant 0 : index
    %c0_39 = arith.constant 0 : index
    %82 = vector.load %arg10[%c0_38, %c0_39] : memref<1x32xf32, #tpu.memory_space<vmem>>, vector<1x32xf32>
    %83 = vector.broadcast %82 : vector<1x32xf32> to vector<64x32xf32>
    %84 = arith.addf %81, %83 : vector<64x32xf32>
    %cst_40 = arith.constant dense<0.000000e+00> : vector<32x256xf32>
    %85 = tpu.matmul %84, %46, %cst_40 {dimension_numbers = #tpu.dot_dimension_numbers<[0], [0], [1], [1], [0, 1, 1, 1], [], []>} : vector<64x32xf32>, vector<64x256xf32>, vector<32x256xf32> -> vector<32x256xf32>
    %c0_41 = arith.constant 0 : index
    %c0_42 = arith.constant 0 : index
    %c0_43 = arith.constant 0 : index
    %86 = vector.load %arg11[%c0_41, %c0_42, %c0_43] : memref<1x32x256xf32, #tpu.memory_space<vmem>>, vector<1x32x256xf32>
    %87 = vector.shape_cast %86 : vector<1x32x256xf32> to vector<32x256xf32>
    %88 = vector.shape_cast %85 : vector<32x256xf32> to vector<1x32x256xf32>
    tpu.vector_store %arg11[%c0_41, %c0_42, %c0_43], %88 {strides = array<i32>} : memref<1x32x256xf32, #tpu.memory_space<vmem>>, vector<1x32x256xf32>,
    return
  }
  func.func @transform_0(%arg0: i32) -> (i32, i32, i32) {
    %c0_i32 = arith.constant 0 : i32
    %c0_i32_0 = arith.constant 0 : i32
    %c0_i32_1 = arith.constant 0 : i32
    return %arg0, %c0_i32, %c0_i32_0 : i32, i32, i32
  }
  func.func @transform_1(%arg0: i32) -> (i32, i32) {
    %c0_i32 = arith.constant 0 : i32
    %c0_i32_0 = arith.constant 0 : i32
    %c0_i32_1 = arith.constant 0 : i32
    return %c0_i32, %c0_i32_0 : i32, i32
  }
  func.func @transform_2(%arg0: i32) -> (i32, i32) {
    %c0_i32 = arith.constant 0 : i32
    %c0_i32_0 = arith.constant 0 : i32
    %c0_i32_1 = arith.constant 0 : i32
    return %c0_i32, %c0_i32_0 : i32, i32
  }
  func.func @transform_3(%arg0: i32) -> (i32, i32) {
    %c0_i32 = arith.constant 0 : i32
    %c0_i32_0 = arith.constant 0 : i32
    %c0_i32_1 = arith.constant 0 : i32
    return %c0_i32, %c0_i32_0 : i32, i32
  }
  func.func @transform_4(%arg0: i32) -> (i32, i32) {
    %c0_i32 = arith.constant 0 : i32
    %c0_i32_0 = arith.constant 0 : i32
    %c0_i32_1 = arith.constant 0 : i32
    return %c0_i32, %c0_i32_0 : i32, i32
  }
  func.func @transform_5(%arg0: i32) -> (i32, i32) {
    %c0_i32 = arith.constant 0 : i32
    %c0_i32_0 = arith.constant 0 : i32
    %c0_i32_1 = arith.constant 0 : i32
    return %c0_i32, %c0_i32_0 : i32, i32
  }
  func.func @transform_6(%arg0: i32) -> (i32, i32) {
    %c0_i32 = arith.constant 0 : i32
    %c0_i32_0 = arith.constant 0 : i32
    %c0_i32_1 = arith.constant 0 : i32
    return %c0_i32, %c0_i32_0 : i32, i32
  }
  func.func @transform_7(%arg0: i32) -> (i32, i32) {
    %c0_i32 = arith.constant 0 : i32
    %c0_i32_0 = arith.constant 0 : i32
    %c0_i32_1 = arith.constant 0 : i32
    return %c0_i32, %c0_i32_0 : i32, i32
  }
  func.func @transform_8(%arg0: i32) -> (i32, i32) {
    %c0_i32 = arith.constant 0 : i32
    %c0_i32_0 = arith.constant 0 : i32
    %c0_i32_1 = arith.constant 0 : i32
    return %c0_i32, %c0_i32_0 : i32, i32
  }
  func.func @transform_9(%arg0: i32) -> (i32, i32) {
    %c0_i32 = arith.constant 0 : i32
    %c0_i32_0 = arith.constant 0 : i32
    %c0_i32_1 = arith.constant 0 : i32
    return %c0_i32, %c0_i32_0 : i32, i32
  }
  func.func @transform_10(%arg0: i32) -> (i32, i32, i32) {
    %c0_i32 = arith.constant 0 : i32
    %c0_i32_0 = arith.constant 0 : i32
    %c0_i32_1 = arith.constant 0 : i32
    return %arg0, %c0_i32, %c0_i32_0 : i32, i32, i32
  }
}

</mosaic_0001>

<llo_original>
// kernel: stoken_attention_forward.1
$region0: #{stoken_attention_forward.1}
  #allocation0 [shape = 'u32[]', space=smem, size = 0x4, offset = 0x4, fixed_abs, tag = 'smem constant byte address 0x4 - core index']
  #allocation1 [shape = 'u32[144,128]{1,0:T(1,128)}', space=vmem, size = 0x12000, scoped, tag = 'internal scratch']
  %s0 = inlined_call_operand.vmem [shape: f32[2,32,256], index: 0, kind: input, shape index: {}]
  %s1 = inlined_call_operand.vmem [shape: f32[32,1], index: 1, kind: input, shape index: {}]
  %s2 = inlined_call_operand.vmem [shape: f32[32,1], index: 2, kind: input, shape index: {}]
  %s3 = inlined_call_operand.vmem [shape: f32[256,64], index: 3, kind: input, shape index: {}]
  %s4 = inlined_call_operand.vmem [shape: f32[64,256], index: 4, kind: input, shape index: {}]
  %s5 = inlined_call_operand.vmem [shape: f32[1,256], index: 5, kind: input, shape index: {}]
  %s6 = inlined_call_operand.vmem [shape: f32[512,32], index: 6, kind: input, shape index: {}]
  %s7 = inlined_call_operand.vmem [shape: f32[32,96], index: 7, kind: input, shape index: {}]
  %s8 = inlined_call_operand.vmem [shape: f32[32,32], index: 8, kind: input, shape index: {}]
  %s9 = inlined_call_operand.vmem [shape: f32[1,32], index: 9, kind: input, shape index: {}]
  %s10 = inlined_call_operand.vmem [shape: f32[2,32,256], index: 10, kind: output, shape index: {}]
  %s11 = sld [smem:[#allocation0]]
  $region73: #{stoken_attention_forward.1} parent=0
    _
  %s13 = ssub.s32 1, %s11
  %s14 = scalar_select 0, %s13, %s11
  loop: start=0, step=1, limit=4
  $region2: #{stoken_attention_forward.1} parent=0 // loop_pre_header
    _
  $region3: #{stoken_attention_forward.1} parent=0 // loop_header
    %s16 = sphi 0, %s20
    %p17 = scmp.ge.s32.totalorder %s16, 4
    %s26 = sphi 0, %s28
    %s29 = sphi 0, %s26
    %s30 = sphi 0, %s29
    %s46 = sphi 0, %s30
    %s50 = sphi 0, %s50
    %s52 = sphi 0, %s50
    %s53 = sphi 0, %s52
    %s67 = sphi 0, %s53
    %s71 = sphi 0, %s71
    %s73 = sphi 0, %s71
    %s74 = sphi 0, %s73
    %s88 = sphi 0, %s74
    %s92 = sphi 0, %s92
    %s94 = sphi 0, %s92
    %s95 = sphi 0, %s94
    %s109 = sphi 0, %s95
    %s113 = sphi 0, %s113
    %s115 = sphi 0, %s113
    %s116 = sphi 0, %s115
    %s130 = sphi 0, %s116
    %s134 = sphi 0, %s134
    %s136 = sphi 0, %s134
    %s137 = sphi 0, %s136
    %s151 = sphi 0, %s137
    %s155 = sphi 0, %s155
    %s157 = sphi 0, %s155
    %s158 = sphi 0, %s157
    %s172 = sphi 0, %s158
    %s176 = sphi 0, %s176
    %s178 = sphi 0, %s176
    %s179 = sphi 0, %s178
    %s193 = sphi 0, %s179
    %s197 = sphi 0, %s197
    %s199 = sphi 0, %s197
    %s200 = sphi 0, %s199
    %s214 = sphi 0, %s200
    %s218 = sphi 0, %s218
    %s220 = sphi 0, %s218
    %s221 = sphi 0, %s220
    %s235 = sphi 0, %s221
    %s241 = sphi 0, %s243
    %s244 = sphi 0, %s241
    %s245 = sphi 0, %s244
    %s261 = sphi 0, %s245
  $region4: #{stoken_attention_forward.1} parent=0 // loop_header_branch
    %19 = sbr.rel (%p17) target = $region8
  $region5: #{stoken_attention_forward.1} parent=0 // loop_body
    %s21 = ssub.s32 %s16, 1
    %s22 = ssub.s32 %s16, 2
    %s23 = sadd.s32 %s16, 1
    %s24 = ssub.s32 %s16, %s23
    %p25 = scmp.eq.s32.totalorder %s24, 0
    %s27 = sadd.s32 %s26, 1
    %s28 = scalar_select %p25, %s26, %s27
    %p31 = pneg %p25
    %p32 = scmp.eq.s32.totalorder %s16, 1
    %p33 = por %p31, %p32
    %p34 = scmp.ne.s32.totalorder %s26, %s29
    %p35 = scmp.eq.s32.totalorder %s16, 0
    %p36 = por %p34, %p35
    %p37 = scmp.ne.s32.totalorder %s26, %s29
    %p38 = scmp.eq.s32.totalorder %s21, 1
    %p39 = por %p37, %p38
    %p40 = scmp.ne.s32.totalorder %s29, %s30
    %p41 = scmp.eq.s32.totalorder %s21, 0
    %p42 = por %p40, %p41
    %p43 = scmp.ne.s32.totalorder %s29, %s30
    %p44 = scmp.eq.s32.totalorder %s22, 1
    %p45 = por %p43, %p44
    %p47 = scmp.ne.s32.totalorder %s30, %s46
    %p48 = scmp.eq.s32.totalorder %s22, 0
    %p49 = por %p47, %p48
    %s51 = sadd.s32 %s50, 1
    %p54 = scmp.eq.s32.totalorder %s16, 1
    %p55 = scmp.ne.s32.totalorder %s50, %s52
    %p56 = scmp.eq.s32.totalorder %s16, 0
    %p57 = por %p55, %p56
    %p58 = scmp.ne.s32.totalorder %s50, %s52
    %p59 = scmp.eq.s32.totalorder %s21, 1
    %p60 = por %p58, %p59
    %p61 = scmp.ne.s32.totalorder %s52, %s53
    %p62 = scmp.eq.s32.totalorder %s21, 0
    %p63 = por %p61, %p62
    %p64 = scmp.ne.s32.totalorder %s52, %s53
    %p65 = scmp.eq.s32.totalorder %s22, 1
    %p66 = por %p64, %p65
    %p68 = scmp.ne.s32.totalorder %s53, %s67
    %p69 = scmp.eq.s32.totalorder %s22, 0
    %p70 = por %p68, %p69
    %s72 = sadd.s32 %s71, 1
    %p75 = scmp.eq.s32.totalorder %s16, 1
    %p76 = scmp.ne.s32.totalorder %s71, %s73
    %p77 = scmp.eq.s32.totalorder %s16, 0
    %p78 = por %p76, %p77
    %p79 = scmp.ne.s32.totalorder %s71, %s73
    %p80 = scmp.eq.s32.totalorder %s21, 1
    %p81 = por %p79, %p80
    %p82 = scmp.ne.s32.totalorder %s73, %s74
    %p83 = scmp.eq.s32.totalorder %s21, 0
    %p84 = por %p82, %p83
    %p85 = scmp.ne.s32.totalorder %s73, %s74
    %p86 = scmp.eq.s32.totalorder %s22, 1
    %p87 = por %p85, %p86
    %p89 = scmp.ne.s32.totalorder %s74, %s88
    %p90 = scmp.eq.s32.totalorder %s22, 0
    %p91 = por %p89, %p90
    %s93 = sadd.s32 %s92, 1
    %p96 = scmp.eq.s32.totalorder %s16, 1
    %p97 = scmp.ne.s32.totalorder %s92, %s94
    %p98 = scmp.eq.s32.totalorder %s16, 0
    %p99 = por %p97, %p98
    %p100 = scmp.ne.s32.totalorder %s92, %s94
    %p101 = scmp.eq.s32.totalorder %s21, 1
    %p102 = por %p100, %p101
    %p103 = scmp.ne.s32.totalorder %s94, %s95
    %p104 = scmp.eq.s32.totalorder %s21, 0
    %p105 = por %p103, %p104
    %p106 = scmp.ne.s32.totalorder %s94, %s95
    %p107 = scmp.eq.s32.totalorder %s22, 1
    %p108 = por %p106, %p107
    %p110 = scmp.ne.s32.totalorder %s95, %s109
    %p111 = scmp.eq.s32.totalorder %s22, 0
    %p112 = por %p110, %p111
    %s114 = sadd.s32 %s113, 1
    %p117 = scmp.eq.s32.totalorder %s16, 1
    %p118 = scmp.ne.s32.totalorder %s113, %s115
    %p119 = scmp.eq.s32.totalorder %s16, 0
    %p120 = por %p118, %p119
    %p121 = scmp.ne.s32.totalorder %s113, %s115
    %p122 = scmp.eq.s32.totalorder %s21, 1
    %p123 = por %p121, %p122
    %p124 = scmp.ne.s32.totalorder %s115, %s116
    %p125 = scmp.eq.s32.totalorder %s21, 0
    %p126 = por %p124, %p125
    %p127 = scmp.ne.s32.totalorder %s115, %s116
    %p128 = scmp.eq.s32.totalorder %s22, 1
    %p129 = por %p127, %p128
    %p131 = scmp.ne.s32.totalorder %s116, %s130
    %p132 = scmp.eq.s32.totalorder %s22, 0
    %p133 = por %p131, %p132
    %s135 = sadd.s32 %s134, 1
    %p138 = scmp.eq.s32.totalorder %s16, 1
    %p139 = scmp.ne.s32.totalorder %s134, %s136
    %p140 = scmp.eq.s32.totalorder %s16, 0
    %p141 = por %p139, %p140
    %p142 = scmp.ne.s32.totalorder %s134, %s136
    %p143 = scmp.eq.s32.totalorder %s21, 1
    %p144 = por %p142, %p143
    %p145 = scmp.ne.s32.totalorder %s136, %s137
    %p146 = scmp.eq.s32.totalorder %s21, 0
    %p147 = por %p145, %p146
    %p148 = scmp.ne.s32.totalorder %s136, %s137
    %p149 = scmp.eq.s32.totalorder %s22, 1
    %p150 = por %p148, %p149
    %p152 = scmp.ne.s32.totalorder %s137, %s151
    %p153 = scmp.eq.s32.totalorder %s22, 0
    %p154 = por %p152, %p153
    %s156 = sadd.s32 %s155, 1
    %p159 = scmp.eq.s32.totalorder %s16, 1
    %p160 = scmp.ne.s32.totalorder %s155, %s157
    %p161 = scmp.eq.s32.totalorder %s16, 0
    %p162 = por %p160, %p161
    %p163 = scmp.ne.s32.totalorder %s155, %s157
    %p164 = scmp.eq.s32.totalorder %s21, 1
    %p165 = por %p163, %p164
    %p166 = scmp.ne.s32.totalorder %s157, %s158
    %p167 = scmp.eq.s32.totalorder %s21, 0
    %p168 = por %p166, %p167
    %p169 = scmp.ne.s32.totalorder %s157, %s158
    %p170 = scmp.eq.s32.totalorder %s22, 1
    %p171 = por %p169, %p170
    %p173 = scmp.ne.s32.totalorder %s158, %s172
    %p174 = scmp.eq.s32.totalorder %s22, 0
    %p175 = por %p173, %p174
    %s177 = sadd.s32 %s176, 1
    %p180 = scmp.eq.s32.totalorder %s16, 1
    %p181 = scmp.ne.s32.totalorder %s176, %s178
    %p182 = scmp.eq.s32.totalorder %s16, 0
    %p183 = por %p181, %p182
    %p184 = scmp.ne.s32.totalorder %s176, %s178
    %p185 = scmp.eq.s32.totalorder %s21, 1
    %p186 = por %p184, %p185
    %p187 = scmp.ne.s32.totalorder %s178, %s179
    %p188 = scmp.eq.s32.totalorder %s21, 0
    %p189 = por %p187, %p188
    %p190 = scmp.ne.s32.totalorder %s178, %s179
    %p191 = scmp.eq.s32.totalorder %s22, 1
    %p192 = por %p190, %p191
    %p194 = scmp.ne.s32.totalorder %s179, %s193
    %p195 = scmp.eq.s32.totalorder %s22, 0
    %p196 = por %p194, %p195
    %s198 = sadd.s32 %s197, 1
    %p201 = scmp.eq.s32.totalorder %s16, 1
    %p202 = scmp.ne.s32.totalorder %s197, %s199
    %p203 = scmp.eq.s32.totalorder %s16, 0
    %p204 = por %p202, %p203
    %p205 = scmp.ne.s32.totalorder %s197, %s199
    %p206 = scmp.eq.s32.totalorder %s21, 1
    %p207 = por %p205, %p206
    %p208 = scmp.ne.s32.totalorder %s199, %s200
    %p209 = scmp.eq.s32.totalorder %s21, 0
    %p210 = por %p208, %p209
    %p211 = scmp.ne.s32.totalorder %s199, %s200
    %p212 = scmp.eq.s32.totalorder %s22, 1
    %p213 = por %p211, %p212
    %p215 = scmp.ne.s32.totalorder %s200, %s214
    %p216 = scmp.eq.s32.totalorder %s22, 0
    %p217 = por %p215, %p216
    %s219 = sadd.s32 %s218, 1
    %p222 = scmp.eq.s32.totalorder %s16, 1
    %p223 = scmp.ne.s32.totalorder %s218, %s220
    %p224 = scmp.eq.s32.totalorder %s16, 0
    %p225 = por %p223, %p224
    %p226 = scmp.ne.s32.totalorder %s218, %s220
    %p227 = scmp.eq.s32.totalorder %s21, 1
    %p228 = por %p226, %p227
    %p229 = scmp.ne.s32.totalorder %s220, %s221
    %p230 = scmp.eq.s32.totalorder %s21, 0
    %p231 = por %p229, %p230
    %p232 = scmp.ne.s32.totalorder %s220, %s221
    %p233 = scmp.eq.s32.totalorder %s22, 1
    %p234 = por %p232, %p233
    %p236 = scmp.ne.s32.totalorder %s221, %s235
    %p237 = scmp.eq.s32.totalorder %s22, 0
    %p238 = por %p236, %p237
    %s239 = ssub.s32 %s16, %s23
    %p240 = scmp.eq.s32.totalorder %s239, 0
    %s242 = sadd.s32 %s241, 1
    %s243 = scalar_select %p240, %s241, %s242
    %p246 = pneg %p240
    %p247 = scmp.eq.s32.totalorder %s16, 1
    %p248 = por %p246, %p247
    %p249 = scmp.ne.s32.totalorder %s241, %s244
    %p250 = scmp.eq.s32.totalorder %s16, 0
    %p251 = por %p249, %p250
    %p252 = scmp.ne.s32.totalorder %s241, %s244
    %p253 = scmp.eq.s32.totalorder %s21, 1
    %p254 = por %p252, %p253
    %p255 = scmp.ne.s32.totalorder %s244, %s245
    %p256 = scmp.eq.s32.totalorder %s21, 0
    %p257 = por %p255, %p256
    %p258 = scmp.ne.s32.totalorder %s244, %s245
    %p259 = scmp.eq.s32.totalorder %s22, 1
    %p260 = por %p258, %p259
    %p262 = scmp.ne.s32.totalorder %s245, %s261
    %p263 = scmp.eq.s32.totalorder %s22, 0
    %p264 = por %p262, %p263
    %p265 = scmp.le.s32.totalorder 1, %s16
    %p266 = scmp.lt.s32.totalorder %s16, 3
    %p267 = pnand %p265, %p266
    %p268 = pneg %p267
    // Predicated region
    $region9: #{stoken_attention_forward.1} parent=5 // pred_check
      _
    $region10: #{stoken_attention_forward.1} parent=5 // pred_check_branch
      %270 = sbr.rel (%p267) target = $region12
    $region11: #{stoken_attention_forward.1} parent=5 // pred_region
      %s271 = ssub.s32 %s16, 1
      // Predicated region
      $region13: #{stoken_attention_forward.1} parent=11 // pred_check
        %p272 = pneg %p63
      $region14: #{stoken_attention_forward.1} parent=11 // pred_check_branch
        %274 = sbr.rel (%p272) target = $region16
      $region15: #{stoken_attention_forward.1} parent=11 // pred_region
        _
      $region16: #{stoken_attention_forward.1} parent=11 // pred_fallthru
        _
      // Predicated region
      $region17: #{stoken_attention_forward.1} parent=11 // pred_check
        %p275 = pneg %p84
      $region18: #{stoken_attention_forward.1} parent=11 // pred_check_branch
        %277 = sbr.rel (%p275) target = $region20
      $region19: #{stoken_attention_forward.1} parent=11 // pred_region
        _
      $region20: #{stoken_attention_forward.1} parent=11 // pred_fallthru
        _
      // Predicated region
      $region21: #{stoken_attention_forward.1} parent=11 // pred_check
        %p278 = pneg %p105
      $region22: #{stoken_attention_forward.1} parent=11 // pred_check_branch
        %280 = sbr.rel (%p278) target = $region24
      $region23: #{stoken_attention_forward.1} parent=11 // pred_region
        _
      $region24: #{stoken_attention_forward.1} parent=11 // pred_fallthru
        _
      // Predicated region
      $region25: #{stoken_attention_forward.1} parent=11 // pred_check
        %p281 = pneg %p126
      $region26: #{stoken_attention_forward.1} parent=11 // pred_check_branch
        %283 = sbr.rel (%p281) target = $region28
      $region27: #{stoken_attention_forward.1} parent=11 // pred_region
        _
      $region28: #{stoken_attention_forward.1} parent=11 // pred_fallthru
        _
      // Predicated region
      $region29: #{stoken_attention_forward.1} parent=11 // pred_check
        %p284 = pneg %p147
      $region30: #{stoken_attention_forward.1} parent=11 // pred_check_branch
        %286 = sbr.rel (%p284) target = $region32
      $region31: #{stoken_attention_forward.1} parent=11 // pred_region
        _
      $region32: #{stoken_attention_forward.1} parent=11 // pred_fallthru
        _
      // Predicated region
      $region33: #{stoken_attention_forward.1} parent=11 // pred_check
        %p287 = pneg %p168
      $region34: #{stoken_attention_forward.1} parent=11 // pred_check_branch
        %289 = sbr.rel (%p287) target = $region36
      $region35: #{stoken_attention_forward.1} parent=11 // pred_region
        _
      $region36: #{stoken_attention_forward.1} parent=11 // pred_fallthru
        _
      // Predicated region
      $region37: #{stoken_attention_forward.1} parent=11 // pred_check
        %p290 = pneg %p189
      $region38: #{stoken_attention_forward.1} parent=11 // pred_check_branch
        %292 = sbr.rel (%p290) target = $region40
      $region39: #{stoken_attention_forward.1} parent=11 // pred_region
        _
      $region40: #{stoken_attention_forward.1} parent=11 // pred_fallthru
        _
      // Predicated region
      $region41: #{stoken_attention_forward.1} parent=11 // pred_check
        %p293 = pneg %p210
      $region42: #{stoken_attention_forward.1} parent=11 // pred_check_branch
        %295 = sbr.rel (%p293) target = $region44
      $region43: #{stoken_attention_forward.1} parent=11 // pred_region
        _
      $region44: #{stoken_attention_forward.1} parent=11 // pred_fallthru
        _
      // Predicated region
      $region45: #{stoken_attention_forward.1} parent=11 // pred_check
        %p296 = pneg %p231
      $region46: #{stoken_attention_forward.1} parent=11 // pred_check_branch
        %298 = sbr.rel (%p296) target = $region48
      $region47: #{stoken_attention_forward.1} parent=11 // pred_region
        _
      $region48: #{stoken_attention_forward.1} parent=11 // pred_fallthru
        _
    $region12: #{stoken_attention_forward.1} parent=5 // pred_fallthru
      _
    %p299 = scmp.lt.s32.totalorder %s16, 2
    // Predicated region
    $region49: #{stoken_attention_forward.1} parent=5 // pred_check
      %p300 = pneg %p299
    $region50: #{stoken_attention_forward.1} parent=5 // pred_check_branch
      %302 = sbr.rel (%p300) target = $region52
    $region51: #{stoken_attention_forward.1} parent=5 // pred_region
      // Predicated region
      $region53: #{stoken_attention_forward.1} parent=51 // pred_check
        %p303 = pneg %p36
      $region54: #{stoken_attention_forward.1} parent=51 // pred_check_branch
        %305 = sbr.rel (%p303) target = $region56
      $region55: #{stoken_attention_forward.1} parent=51 // pred_region
        %p306 = scmp.lt.s32.totalorder %s16, 1
        %s307 = scalar_select %p306, %s16, 1
        %s308 = smul.addr %s307, 8
        %s309 = smul.addr %s308, 8
        %s310 = scalar_lea.vmem %s0, %s309
      $region56: #{stoken_attention_forward.1} parent=51 // pred_fallthru
        _
    $region52: #{stoken_attention_forward.1} parent=5 // pred_fallthru
      _
    %p311 = scmp.le.s32.totalorder 1, %s16
    %p312 = scmp.lt.s32.totalorder %s16, 3
    %p313 = pnand %p311, %p312
    %p314 = pneg %p313
    // Predicated region
    $region57: #{stoken_attention_forward.1} parent=5 // pred_check
      _
    $region58: #{stoken_attention_forward.1} parent=5 // pred_check_branch
      %316 = sbr.rel (%p313) target = $region60
    $region59: #{stoken_attention_forward.1} parent=5 // pred_region
      %s317 = ssub.s32 %s16, 1
      %p318 = scmp.lt.s32.totalorder %s21, 1
      %s319 = scalar_select %p318, %s21, 1
      %s320 = smul.addr %s319, 8
      %s321 = smul.addr %s320, 8
      %s322 = scalar_lea.vmem %s0, %s321
      %p323 = pneg %p42
      %p324 = pneg %p39
      %p325 = pneg %p63
      %p326 = pneg %p60
      %p327 = pneg %p84
      %p328 = pneg %p81
      %p329 = pneg %p105
      %p330 = pneg %p102
      %p331 = pneg %p126
      %p332 = pneg %p123
      %p333 = pneg %p147
      %p334 = pneg %p144
      %p335 = pneg %p168
      %p336 = pneg %p165
      %p337 = pneg %p189
      %p338 = pneg %p186
      %p339 = pneg %p210
      %p340 = pneg %p207
      %p341 = pneg %p231
      %p342 = pneg %p228
      %p343 = pneg %p257
      %p344 = pneg %p254
      %p345 = scmp.lt.s32.totalorder %s21, 1
      %s346 = scalar_select %p345, %s21, 1
      %s347 = smul.addr %s346, 8
      %s348 = smul.addr %s347, 8
      %s349 = scalar_lea.vmem %s10, %s348
      %p350 = scmp.lt.s32.totalorder %s21, 1
      %s351 = scalar_select %p350, %s21, 1
      %s352 = smul.addr %s351, 8
      %s353 = smul.addr %s352, 8
      %s354 = scalar_lea.vmem %s0, %s353
      %p355 = scmp.lt.s32.totalorder %s21, 1
      %s356 = scalar_select %p355, %s21, 1
      %s357 = smul.addr %s356, 8
      %s358 = smul.addr %s357, 8
      %s359 = scalar_lea.vmem %s10, %s358
      %v360 = vld [vmem:[%s354] sm:$0xff]
      %v361 = vld [vmem:[%s354 + $0x8] sm:$0xff]
      %v362 = vld [vmem:[%s354 + $0x10] sm:$0xff]
      %v363 = vld [vmem:[%s354 + $0x18] sm:$0xff]
      %v364 = vld [vmem:[%s354 + $0x20] sm:$0xff]
      %v365 = vld [vmem:[%s354 + $0x28] sm:$0xff]
      %v366 = vld [vmem:[%s354 + $0x30] sm:$0xff]
      %v367 = vld [vmem:[%s354 + $0x38] sm:$0xff]
      %v368 = vadd.f32 %v360, %v362
      %v369 = vadd.f32 %v368, %v364
      %v370 = vadd.f32 %v369, %v366
      %v371 = vrot.slane %v370, 4
      %v372 = vadd.f32 %v370, %v371
      %v373 = vrot.slane %v372, 2
      %v374 = vadd.f32 %v372, %v373
      %v375 = vrot.slane %v374, 1
      %v376 = vadd.f32 %v374, %v375
      %v377 = vadd.f32 %v361, %v363
      %v378 = vadd.f32 %v377, %v365
      %v379 = vadd.f32 %v378, %v367
      %v380 = vrot.slane %v379, 4
      %v381 = vadd.f32 %v379, %v380
      %v382 = vrot.slane %v381, 2
      %v383 = vadd.f32 %v381, %v382
      %v384 = vrot.slane %v383, 1
      %v385 = vadd.f32 %v383, %v384
      %v386 = vrcp.pop 32.0
      %v387 = vmul.f32 %v376, %v386
      %v388 = vmul.f32 %v385, %v386
      %v389 = vsub.f32 %v360, %v387
      %v390 = vsub.f32 %v361, %v388
      %v391 = vsub.f32 %v362, %v387
      %v392 = vsub.f32 %v363, %v388
      %v393 = vsub.f32 %v364, %v387
      %v394 = vsub.f32 %v365, %v388
      %v395 = vsub.f32 %v366, %v387
      %v396 = vsub.f32 %v367, %v388
      %v397 = vmul.f32 %v389, %v389
      %v398 = vmul.f32 %v390, %v390
      %v399 = vmul.f32 %v391, %v391
      %v400 = vmul.f32 %v392, %v392
      %v401 = vmul.f32 %v393, %v393
      %v402 = vmul.f32 %v394, %v394
      %v403 = vmul.f32 %v395, %v395
      %v404 = vmul.f32 %v396, %v396
      %v405 = vadd.f32 %v397, %v399
      %v406 = vadd.f32 %v405, %v401
      %v407 = vadd.f32 %v406, %v403
      %v408 = vrot.slane %v407, 4
      %v409 = vadd.f32 %v407, %v408
      %v410 = vrot.slane %v409, 2
      %v411 = vadd.f32 %v409, %v410
      %v412 = vrot.slane %v411, 1
      %v413 = vadd.f32 %v411, %v412
      %v414 = vadd.f32 %v398, %v400
      %v415 = vadd.f32 %v414, %v402
      %v416 = vadd.f32 %v415, %v404
      %v417 = vrot.slane %v416, 4
      %v418 = vadd.f32 %v416, %v417
      %v419 = vrot.slane %v418, 2
      %v420 = vadd.f32 %v418, %v419
      %v421 = vrot.slane %v420, 1
      %v422 = vadd.f32 %v420, %v421
      %v423 = vmul.f32 %v413, %v386
      %v424 = vmul.f32 %v422, %v386
      %v425 = vadd.f32 %v423, 1e-06
      %v426 = vadd.f32 %v424, 1e-06
      %v427 = vrsqrt.pop %v425
      %v428 = vrsqrt.pop %v426
      %v429 = vmul.f32 %v389, %v427
      %v430 = vmul.f32 %v390, %v428
      %v431 = vmul.f32 %v391, %v427
      %v432 = vmul.f32 %v392, %v428
      %v433 = vmul.f32 %v393, %v427
      %v434 = vmul.f32 %v394, %v428
      %v435 = vmul.f32 %v395, %v427
      %v436 = vmul.f32 %v396, %v428
      %v437 = vld [vmem:[%s1] sm:$0xff]
      %v438 = vld [vmem:[%s1 + $0x8] sm:$0xff]
      %v439 = vld [vmem:[%s1 + $0x10] sm:$0xff]
      %v440 = vld [vmem:[%s1 + $0x18] sm:$0xff]
      %442 = vset.pattern.permute.xlu0 0
      %443 = vperm.xlu0 %442, %v437
      %v444 = vpop.permute.xlu0 %443
      %447 = vset.pattern.permute.xlu0 0
      %448 = vperm.xlu0 %447, %v438
      %v449 = vpop.permute.xlu0 %448
      %452 = vset.pattern.permute.xlu0 0
      %453 = vperm.xlu0 %452, %v439
      %v454 = vpop.permute.xlu0 %453
      %457 = vset.pattern.permute.xlu0 0
      %458 = vperm.xlu0 %457, %v440
      %v459 = vpop.permute.xlu0 %458
      %v461 = vmul.f32 %v429, %v444
      %v462 = vmul.f32 %v430, %v444
      %v463 = vmul.f32 %v431, %v449
      %v464 = vmul.f32 %v432, %v449
      %v465 = vmul.f32 %v433, %v454
      %v466 = vmul.f32 %v434, %v454
      %v467 = vmul.f32 %v435, %v459
      %v468 = vmul.f32 %v436, %v459
      %v469 = vld [vmem:[%s2] sm:$0xff]
      %v470 = vld [vmem:[%s2 + $0x8] sm:$0xff]
      %v471 = vld [vmem:[%s2 + $0x10] sm:$0xff]
      %v472 = vld [vmem:[%s2 + $0x18] sm:$0xff]
      %474 = vset.pattern.permute.xlu0 0
      %475 = vperm.xlu0 %474, %v469
      %v476 = vpop.permute.xlu0 %475
      %479 = vset.pattern.permute.xlu0 0
      %480 = vperm.xlu0 %479, %v470
      %v481 = vpop.permute.xlu0 %480
      %484 = vset.pattern.permute.xlu0 0
      %485 = vperm.xlu0 %484, %v471
      %v486 = vpop.permute.xlu0 %485
      %489 = vset.pattern.permute.xlu0 0
      %490 = vperm.xlu0 %489, %v472
      %v491 = vpop.permute.xlu0 %490
      %v493 = vadd.f32 %v461, %v476
      %v494 = vadd.f32 %v462, %v476
      %v495 = vadd.f32 %v463, %v481
      %v496 = vadd.f32 %v464, %v481
      %v497 = vadd.f32 %v465, %v486
      %v498 = vadd.f32 %v466, %v486
      %v499 = vadd.f32 %v467, %v491
      %v500 = vadd.f32 %v468, %v491
      %v501 = vld [vmem:[%s3] sm:$0xff]
      %v502 = vld [vmem:[%s3 + $0x8] sm:$0xff]
      %v503 = vld [vmem:[%s3 + $0x10] sm:$0xff]
      %v504 = vld [vmem:[%s3 + $0x18] sm:$0xff]
      %v505 = vld [vmem:[%s3 + $0x20] sm:$0xff]
      %v506 = vld [vmem:[%s3 + $0x28] sm:$0xff]
      %v507 = vld [vmem:[%s3 + $0x30] sm:$0xff]
      %v508 = vld [vmem:[%s3 + $0x38] sm:$0xff]
      %v509 = vld [vmem:[%s3 + $0x40] sm:$0xff]
      %v510 = vld [vmem:[%s3 + $0x48] sm:$0xff]
      %v511 = vld [vmem:[%s3 + $0x50] sm:$0xff]
      %v512 = vld [vmem:[%s3 + $0x58] sm:$0xff]
      %v513 = vld [vmem:[%s3 + $0x60] sm:$0xff]
      %v514 = vld [vmem:[%s3 + $0x68] sm:$0xff]
      %v515 = vld [vmem:[%s3 + $0x70] sm:$0xff]
      %v516 = vld [vmem:[%s3 + $0x78] sm:$0xff]
      %v517 = vld [vmem:[%s3 + $0x80] sm:$0xff]
      %v518 = vld [vmem:[%s3 + $0x88] sm:$0xff]
      %v519 = vld [vmem:[%s3 + $0x90] sm:$0xff]
      %v520 = vld [vmem:[%s3 + $0x98] sm:$0xff]
      %v521 = vld [vmem:[%s3 + $0xa0] sm:$0xff]
      %v522 = vld [vmem:[%s3 + $0xa8] sm:$0xff]
      %v523 = vld [vmem:[%s3 + $0xb0] sm:$0xff]
      %v524 = vld [vmem:[%s3 + $0xb8] sm:$0xff]
      %v525 = vld [vmem:[%s3 + $0xc0] sm:$0xff]
      %v526 = vld [vmem:[%s3 + $0xc8] sm:$0xff]
      %v527 = vld [vmem:[%s3 + $0xd0] sm:$0xff]
      %v528 = vld [vmem:[%s3 + $0xd8] sm:$0xff]
      %v529 = vld [vmem:[%s3 + $0xe0] sm:$0xff]
      %v530 = vld [vmem:[%s3 + $0xe8] sm:$0xff]
      %v531 = vld [vmem:[%s3 + $0xf0] sm:$0xff]
      %v532 = vld [vmem:[%s3 + $0xf8] sm:$0xff]
      %533 = vmatprep.subr.mxu0 0.0
      %534 = vmatpush1.msra.mxu0 %v501
      %535 = vmatprep.subr.mxu0 0.0
      %536 = vmatpush1.msra.mxu0 %v502
      %537 = vmatprep.subr.mxu0 0.0
      %538 = vmatpush1.msra.mxu0 %v503
      %539 = vmatprep.subr.mxu0 0.0
      %540 = vmatpush1.msra.mxu0 %v504
      %541 = vmatprep.subr.mxu0 0.0
      %542 = vmatpush1.msra.mxu0 %v505
      %543 = vmatprep.subr.mxu0 0.0
      %544 = vmatpush1.msra.mxu0 %v506
      %545 = vmatprep.subr.mxu0 0.0
      %546 = vmatpush1.msra.mxu0 %v507
      %547 = vmatprep.subr.mxu0 0.0
      %548 = vmatpush1.msra.mxu0 %v508
      %549 = vmatprep.subr.mxu0 0.0
      %550 = vmatpush1.msra.mxu0 %v509
      %551 = vmatprep.subr.mxu0 0.0
      %552 = vmatpush1.msra.mxu0 %v510
      %553 = vmatprep.subr.mxu0 0.0
      %554 = vmatpush1.msra.mxu0 %v511
      %555 = vmatprep.subr.mxu0 0.0
      %556 = vmatpush1.msra.mxu0 %v512
      %557 = vmatprep.subr.mxu0 0.0
      %558 = vmatpush1.msra.mxu0 %v513
      %559 = vmatprep.subr.mxu0 0.0
      %560 = vmatpush1.msra.mxu0 %v514
      %561 = vmatprep.subr.mxu0 0.0
      %562 = vmatpush1.msra.mxu0 %v515
      %563 = vmatprep.subr.mxu0 0.0
      %564 = vmatpush1.msra.mxu0 %v516
      %565 = vmatprep.subr.mxu0 0.0
      %566 = vmatpush1.msra.mxu0 %v517
      %567 = vmatprep.subr.mxu0 0.0
      %568 = vmatpush1.msra.mxu0 %v518
      %569 = vmatprep.subr.mxu0 0.0
      %570 = vmatpush1.msra.mxu0 %v519
      %571 = vmatprep.subr.mxu0 0.0
      %572 = vmatpush1.msra.mxu0 %v520
      %573 = vmatprep.subr.mxu0 0.0
      %574 = vmatpush1.msra.mxu0 %v521
      %575 = vmatprep.subr.mxu0 0.0
      %576 = vmatpush1.msra.mxu0 %v522
      %577 = vmatprep.subr.mxu0 0.0
      %578 = vmatpush1.msra.mxu0 %v523
      %579 = vmatprep.subr.mxu0 0.0
      %580 = vmatpush1.msra.mxu0 %v524
      %581 = vmatprep.subr.mxu0 0.0
      %582 = vmatpush1.msra.mxu0 %v525
      %583 = vmatprep.subr.mxu0 0.0
      %584 = vmatpush1.msra.mxu0 %v526
      %585 = vmatprep.subr.mxu0 0.0
      %586 = vmatpush1.msra.mxu0 %v527
      %587 = vmatprep.subr.mxu0 0.0
      %588 = vmatpush1.msra.mxu0 %v528
      %589 = vmatprep.subr.mxu0 0.0
      %590 = vmatpush1.msra.mxu0 %v529
      %591 = vmatprep.subr.mxu0 0.0
      %592 = vmatpush1.msra.mxu0 %v530
      %593 = vmatprep.subr.mxu0 0.0
      %594 = vmatpush1.msra.mxu0 %v531
      %595 = vmatprep.subr.mxu0 0.0
      %596 = vmatpush1.msra.mxu0 %v532
      %597 = vmatprep.mubr.f32.mxu0 %v494
      %598 = vmatmul.mubr.f32.gmra.mrb[0].mxu0 %v493
      %v599 = vpop.f32.mrb[0].mxu0
      %v600 = vadd.f32 0.0, %v599
      %v601 = vpop.f32.mrb[0].mxu0
      %602 = vmatprep.mubr.f32.mxu0 %v496
      %603 = vmatmul.mubr.f32.gmra.mrb[0].mxu0 %v495
      %v604 = vpop.f32.mrb[0].mxu0
      %v605 = vadd.f32 0.0, %v604
      %v606 = vpop.f32.mrb[0].mxu0
      %607 = vmatprep.mubr.f32.mxu0 %v498
      %608 = vmatmul.mubr.f32.gmra.mrb[0].mxu0 %v497
      %v609 = vpop.f32.mrb[0].mxu0
      %v610 = vadd.f32 0.0, %v609
      %v611 = vpop.f32.mrb[0].mxu0
      %612 = vmatprep.mubr.f32.mxu0 %v500
      %613 = vmatmul.mubr.f32.gmra.mrb[0].mxu0 %v499
      %v614 = vpop.f32.mrb[0].mxu0
      %v615 = vadd.f32 0.0, %v614
      %v616 = vpop.f32.mrb[0].mxu0
      %617 = vdwg.mxu0
      %v618 = vld [vmem:[%s4] sm:$0xff]
      %v619 = vld [vmem:[%s4 + $0x8] sm:$0xff]
      %v620 = vld [vmem:[%s4 + $0x10] sm:$0xff]
      %v621 = vld [vmem:[%s4 + $0x18] sm:$0xff]
      %v622 = vld [vmem:[%s4 + $0x20] sm:$0xff]
      %v623 = vld [vmem:[%s4 + $0x28] sm:$0xff]
      %v624 = vld [vmem:[%s4 + $0x30] sm:$0xff]
      %v625 = vld [vmem:[%s4 + $0x38] sm:$0xff]
      %v626 = vld [vmem:[%s4 + $0x40] sm:$0xff]
      %v627 = vld [vmem:[%s4 + $0x48] sm:$0xff]
      %v628 = vld [vmem:[%s4 + $0x50] sm:$0xff]
      %v629 = vld [vmem:[%s4 + $0x58] sm:$0xff]
      %v630 = vld [vmem:[%s4 + $0x60] sm:$0xff]
      %v631 = vld [vmem:[%s4 + $0x68] sm:$0xff]
      %v632 = vld [vmem:[%s4 + $0x70] sm:$0xff]
      %v633 = vld [vmem:[%s4 + $0x78] sm:$0xff]
      %634 = vxpose.xlu0.b32.start [1/16] %v600, 128
      %635 = vxpose.xlu0.b32.cont [2/16] %v605, 128
      %636 = vxpose.xlu0.b32.cont [3/16] %v610, 128
      %637 = vxpose.xlu0.b32.cont [4/16] %v615, 128
      %638 = vxpose.xlu0.b32.cont [5/16] 0.0, 128
      %639 = vxpose.xlu0.b32.cont [6/16] 0.0, 128
      %640 = vxpose.xlu0.b32.cont [7/16] 0.0, 128
      %641 = vxpose.xlu0.b32.cont [8/16] 0.0, 128
      %642 = vxpose.xlu0.b32.cont [9/16] 0.0, 128
      %643 = vxpose.xlu0.b32.cont [10/16] 0.0, 128
      %644 = vxpose.xlu0.b32.cont [11/16] 0.0, 128
      %645 = vxpose.xlu0.b32.cont [12/16] 0.0, 128
      %646 = vxpose.xlu0.b32.cont [13/16] 0.0, 128
      %647 = vxpose.xlu0.b32.cont [14/16] 0.0, 128
      %648 = vxpose.xlu0.b32.cont [15/16] 0.0, 128
      %649 = vxpose.xlu0.b32.end [16/16] 0.0, 128
      %v650 = vpop.trf.xlu0
      %v651 = vpop.trf.xlu0
      %v652 = vpop.trf.xlu0
      %v653 = vpop.trf.xlu0
      %v654 = vpop.trf.xlu0
      %v655 = vpop.trf.xlu0
      %v656 = vpop.trf.xlu0
      %v657 = vpop.trf.xlu0
      %v658 = vpop.trf.xlu0
      %v659 = vpop.trf.xlu0
      %v660 = vpop.trf.xlu0
      %v661 = vpop.trf.xlu0
      %v662 = vpop.trf.xlu0
      %v663 = vpop.trf.xlu0
      %v664 = vpop.trf.xlu0
      %v665 = vpop.trf.xlu0
      %vm666 = vcmask 261120
      %v668 = vsel %vm666, %v650, 0
      %v671 = vsel %vm666, %v651, 0
      %v674 = vsel %vm666, %v652, 0
      %v677 = vsel %vm666, %v653, 0
      %v680 = vsel %vm666, %v654, 0
      %v683 = vsel %vm666, %v655, 0
      %v686 = vsel %vm666, %v656, 0
      %v689 = vsel %vm666, %v657, 0
      %691 = vmatprep.subr.mxu0 %v494
      %692 = vmatpush1.msra.mxu0 %v493
      %693 = vmatprep.subr.mxu0 %v496
      %694 = vmatpush1.msra.mxu0 %v495
      %695 = vmatprep.subr.mxu0 %v498
      %696 = vmatpush1.msra.mxu0 %v497
      %697 = vmatprep.subr.mxu0 %v500
      %698 = vmatpush1.msra.mxu0 %v499
      %699 = vmatprep.subr.mxu0 0.0
      %700 = vmatpush1.msra.mxu0 0.0
      %701 = vmatprep.subr.mxu0 0.0
      %702 = vmatpush1.msra.mxu0 0.0
      %703 = vmatprep.subr.mxu0 0.0
      %704 = vmatpush1.msra.mxu0 0.0
      %705 = vmatprep.subr.mxu0 0.0
      %706 = vmatpush1.msra.mxu0 0.0
      %707 = vmatprep.subr.mxu0 0.0
      %708 = vmatpush1.msra.mxu0 0.0
      %709 = vmatprep.subr.mxu0 0.0
      %710 = vmatpush1.msra.mxu0 0.0
      %711 = vmatprep.subr.mxu0 0.0
      %712 = vmatpush1.msra.mxu0 0.0
      %713 = vmatprep.subr.mxu0 0.0
      %714 = vmatpush1.msra.mxu0 0.0
      %715 = vmatprep.subr.mxu0 0.0
      %716 = vmatpush1.msra.mxu0 0.0
      %717 = vmatprep.subr.mxu0 0.0
      %718 = vmatpush1.msra.mxu0 0.0
      %719 = vmatprep.subr.mxu0 0.0
      %720 = vmatpush1.msra.mxu0 0.0
      %721 = vmatprep.subr.mxu0 0.0
      %722 = vmatpush1.msra.mxu0 0.0
      %723 = vmatprep.subr.mxu0 0.0
      %724 = vmatpush1.msra.mxu0 0.0
      %725 = vmatprep.subr.mxu0 0.0
      %726 = vmatpush1.msra.mxu0 0.0
      %727 = vmatprep.subr.mxu0 0.0
      %728 = vmatpush1.msra.mxu0 0.0
      %729 = vmatprep.subr.mxu0 0.0
      %730 = vmatpush1.msra.mxu0 0.0
      %731 = vmatprep.subr.mxu0 0.0
      %732 = vmatpush1.msra.mxu0 0.0
      %733 = vmatprep.subr.mxu0 0.0
      %734 = vmatpush1.msra.mxu0 0.0
      %735 = vmatprep.subr.mxu0 0.0
      %736 = vmatpush1.msra.mxu0 0.0
      %737 = vmatprep.subr.mxu0 0.0
      %738 = vmatpush1.msra.mxu0 0.0
      %739 = vmatprep.subr.mxu0 0.0
      %740 = vmatpush1.msra.mxu0 0.0
      %741 = vmatprep.subr.mxu0 0.0
      %742 = vmatpush1.msra.mxu0 0.0
      %743 = vmatprep.subr.mxu0 0.0
      %744 = vmatpush1.msra.mxu0 0.0
      %745 = vmatprep.subr.mxu0 0.0
      %746 = vmatpush1.msra.mxu0 0.0
      %747 = vmatprep.subr.mxu0 0.0
      %748 = vmatpush1.msra.mxu0 0.0
      %749 = vmatprep.subr.mxu0 0.0
      %750 = vmatpush1.msra.mxu0 0.0
      %751 = vmatprep.subr.mxu0 0.0
      %752 = vmatpush1.msra.mxu0 0.0
      %753 = vmatprep.subr.mxu0 0.0
      %754 = vmatpush1.msra.mxu0 0.0
      %755 = vmatprep.mubr.f32.mxu0 0.0
      %756 = vmatmul.mubr.f32.gmra.mrb[0].mxu0 %v668
      %v757 = vpop.f32.mrb[0].mxu0
      %v758 = vadd.f32 %v618, %v757
      %v759 = vpop.f32.mrb[0].mxu0
      %v760 = vadd.f32 %v619, %v759
      %761 = vmatprep.mubr.f32.mxu0 0.0
      %762 = vmatmul.mubr.f32.gmra.mrb[0].mxu0 %v671
      %v763 = vpop.f32.mrb[0].mxu0
      %v764 = vadd.f32 %v620, %v763
      %v765 = vpop.f32.mrb[0].mxu0
      %v766 = vadd.f32 %v621, %v765
      %767 = vmatprep.mubr.f32.mxu0 0.0
      %768 = vmatmul.mubr.f32.gmra.mrb[0].mxu0 %v674
      %v769 = vpop.f32.mrb[0].mxu0
      %v770 = vadd.f32 %v622, %v769
      %v771 = vpop.f32.mrb[0].mxu0
      %v772 = vadd.f32 %v623, %v771
      %773 = vmatprep.mubr.f32.mxu0 0.0
      %774 = vmatmul.mubr.f32.gmra.mrb[0].mxu0 %v677
      %v775 = vpop.f32.mrb[0].mxu0
      %v776 = vadd.f32 %v624, %v775
      %v777 = vpop.f32.mrb[0].mxu0
      %v778 = vadd.f32 %v625, %v777
      %779 = vmatprep.mubr.f32.mxu0 0.0
      %780 = vmatmul.mubr.f32.gmra.mrb[0].mxu0 %v680
      %v781 = vpop.f32.mrb[0].mxu0
      %v782 = vadd.f32 %v626, %v781
      %v783 = vpop.f32.mrb[0].mxu0
      %v784 = vadd.f32 %v627, %v783
      %785 = vmatprep.mubr.f32.mxu0 0.0
      %786 = vmatmul.mubr.f32.gmra.mrb[0].mxu0 %v683
      %v787 = vpop.f32.mrb[0].mxu0
      %v788 = vadd.f32 %v628, %v787
      %v789 = vpop.f32.mrb[0].mxu0
      %v790 = vadd.f32 %v629, %v789
      %791 = vmatprep.mubr.f32.mxu0 0.0
      %792 = vmatmul.mubr.f32.gmra.mrb[0].mxu0 %v686
      %v793 = vpop.f32.mrb[0].mxu0
      %v794 = vadd.f32 %v630, %v793
      %v795 = vpop.f32.mrb[0].mxu0
      %v796 = vadd.f32 %v631, %v795
      %797 = vmatprep.mubr.f32.mxu0 0.0
      %798 = vmatmul.mubr.f32.gmra.mrb[0].mxu0 %v689
      %v799 = vpop.f32.mrb[0].mxu0
      %v800 = vadd.f32 %v632, %v799
      %v801 = vpop.f32.mrb[0].mxu0
      %v802 = vadd.f32 %v633, %v801
      %803 = vdwg.mxu0
      %v804 = vmax.f32 %v758, %v770
      %v805 = vmax.f32 %v764, %v776
      %v806 = vmax.f32 %v804, %v782
      %v807 = vmax.f32 %v805, %v788
      %v808 = vmax.f32 %v806, %v794
      %v809 = vmax.f32 %v807, %v800
      %v810 = vmax.f32 %v808, %v809
      %v811 = vrot.slane %v810, 4
      %v812 = vmax.f32 %v810, %v811
      %v813 = vrot.slane %v812, 2
      %v814 = vmax.f32 %v812, %v813
      %v815 = vrot.slane %v814, 1
      %v816 = vmax.f32 %v814, %v815
      %v817 = vmax.f32 %v760, %v772
      %v818 = vmax.f32 %v766, %v778
      %v819 = vmax.f32 %v817, %v784
      %v820 = vmax.f32 %v818, %v790
      %v821 = vmax.f32 %v819, %v796
      %v822 = vmax.f32 %v820, %v802
      %v823 = vmax.f32 %v821, %v822
      %v824 = vrot.slane %v823, 4
      %v825 = vmax.f32 %v823, %v824
      %v826 = vrot.slane %v825, 2
      %v827 = vmax.f32 %v825, %v826
      %v828 = vrot.slane %v827, 1
      %v829 = vmax.f32 %v827, %v828
      %v830 = vmax.f32 %v816, 0.0
      %v831 = vmax.f32 %v829, 0.0
      %v832 = vsub.f32 %v758, %v830
      %v833 = vsub.f32 %v760, %v831
      %v834 = vsub.f32 %v764, %v830
      %v835 = vsub.f32 %v766, %v831
      %v836 = vsub.f32 %v770, %v830
      %v837 = vsub.f32 %v772, %v831
      %v838 = vsub.f32 %v776, %v830
      %v839 = vsub.f32 %v778, %v831
      %v840 = vsub.f32 %v782, %v830
      %v841 = vsub.f32 %v784, %v831
      %v842 = vsub.f32 %v788, %v830
      %v843 = vsub.f32 %v790, %v831
      %v844 = vsub.f32 %v794, %v830
      %v845 = vsub.f32 %v796, %v831
      %v846 = vsub.f32 %v800, %v830
      %v847 = vsub.f32 %v802, %v831
      %v848 = vmul.f32 %v832, 1.442695
      %v849 = vpow.pop %v848
      %v850 = vmul.f32 %v833, 1.442695
      %v851 = vpow.pop %v850
      %v852 = vmul.f32 %v834, 1.442695
      %v853 = vpow.pop %v852
      %v854 = vmul.f32 %v835, 1.442695
      %v855 = vpow.pop %v854
      %v856 = vmul.f32 %v836, 1.442695
      %v857 = vpow.pop %v856
      %v858 = vmul.f32 %v837, 1.442695
      %v859 = vpow.pop %v858
      %v860 = vmul.f32 %v838, 1.442695
      %v861 = vpow.pop %v860
      %v862 = vmul.f32 %v839, 1.442695
      %v863 = vpow.pop %v862
      %v864 = vmul.f32 %v840, 1.442695
      %v865 = vpow.pop %v864
      %v866 = vmul.f32 %v841, 1.442695
      %v867 = vpow.pop %v866
      %v868 = vmul.f32 %v842, 1.442695
      %v869 = vpow.pop %v868
      %v870 = vmul.f32 %v843, 1.442695
      %v871 = vpow.pop %v870
      %v872 = vmul.f32 %v844, 1.442695
      %v873 = vpow.pop %v872
      %v874 = vmul.f32 %v845, 1.442695
      %v875 = vpow.pop %v874
      %v876 = vmul.f32 %v846, 1.442695
      %v877 = vpow.pop %v876
      %v878 = vmul.f32 %v847, 1.442695
      %v879 = vpow.pop %v878
      %v880 = vld [vmem:[%s5] sm:$0x3]
      %v881 = vsub.f32 0.0, %v830
      %v882 = vsub.f32 0.0, %v831
      %v883 = vmul.f32 %v881, 1.442695
      %v884 = vpow.pop %v883
      %v885 = vmul.f32 %v882, 1.442695
      %v886 = vpow.pop %v885
      %v889 = vcombine.low %v884, %v886
      %v891 = vunpack.c.l.s4 1966171168
      %v892 = vunpack.c.0.s8 %v891
      %v893 = vlaneseq
      %v894 = vshrl.u32 %v893, 7
      %v895 = vsub.s32 %v892, %v894
      %v896 = vrot.slane %v889, %v895
      %v898 = vunpack.c.l.s4 1966171168
      %v899 = vunpack.c.0.s8 %v898
      %v900 = vlaneseq
      %v901 = vshrl.u32 %v900, 7
      %v902 = vsub.s32 %v899, %v901
      %v903 = vrot.slane %v896, %v902
      %v905 = vmul.f32 %v880, %v903
      %v906 = vadd.f32 %v849, %v853
      %v907 = vadd.f32 %v906, %v857
      %v908 = vadd.f32 %v907, %v861
      %v909 = vadd.f32 %v908, %v865
      %v910 = vadd.f32 %v909, %v869
      %v911 = vadd.f32 %v910, %v873
      %v912 = vadd.f32 %v911, %v877
      %v913 = vrot.slane %v912, 4
      %v914 = vadd.f32 %v912, %v913
      %v915 = vrot.slane %v914, 2
      %v916 = vadd.f32 %v914, %v915
      %v917 = vrot.slane %v916, 1
      %v918 = vadd.f32 %v916, %v917
      %v919 = vadd.f32 %v851, %v855
      %v920 = vadd.f32 %v919, %v859
      %v921 = vadd.f32 %v920, %v863
      %v922 = vadd.f32 %v921, %v867
      %v923 = vadd.f32 %v922, %v871
      %v924 = vadd.f32 %v923, %v875
      %v925 = vadd.f32 %v924, %v879
      %v926 = vrot.slane %v925, 4
      %v927 = vadd.f32 %v925, %v926
      %v928 = vrot.slane %v927, 2
      %v929 = vadd.f32 %v927, %v928
      %v930 = vrot.slane %v929, 1
      %v931 = vadd.f32 %v929, %v930
      %v933 = vlaneseq
      %v934 = vshrl.u32 %v933, 7
      %v935 = vsub.s32 0, %v934
      %v936 = vrot.slane %v905, %v935
      %v937 = vlaneseq
      %v938 = vshrl.u32 %v937, 7
      %v939 = vsub.s32 1, %v938
      %v940 = vrot.slane %v905, %v939
      %v943 = vadd.f32 %v918, %v936
      %v944 = vadd.f32 %v931, %v940
      %v945 = vrcp.pop %v943
      %v946 = vrcp.pop %v944
      %v947 = vlaneseq
      %v948 = vshrl.u32 %v947, 7
      %v949 = vsub.s32 0, %v948
      %v950 = vrot.slane %v945, %v949
      %v951 = vlaneseq
      %v952 = vshrl.u32 %v951, 7
      %v953 = vsub.s32 0, %v952
      %v954 = vrot.slane %v946, %v953
      %v955 = vmul.f32 %v849, %v950
      %v956 = vmul.f32 %v851, %v954
      %v957 = vmul.f32 %v853, %v950
      %v958 = vmul.f32 %v855, %v954
      %v959 = vmul.f32 %v857, %v950
      %v960 = vmul.f32 %v859, %v954
      %v961 = vmul.f32 %v861, %v950
      %v962 = vmul.f32 %v863, %v954
      %v963 = vmul.f32 %v865, %v950
      %v964 = vmul.f32 %v867, %v954
      %v965 = vmul.f32 %v869, %v950
      %v966 = vmul.f32 %v871, %v954
      %v967 = vmul.f32 %v873, %v950
      %v968 = vmul.f32 %v875, %v954
      %v969 = vmul.f32 %v877, %v950
      %v970 = vmul.f32 %v879, %v954
      %971 = vmatprep.subr.mxu0 %v494
      %972 = vmatpush1.xpose.msra.mxu0 %v493
      %973 = vmatprep.subr.mxu0 %v496
      %974 = vmatpush1.xpose.msra.mxu0 %v495
      %975 = vmatprep.subr.mxu0 %v498
      %976 = vmatpush1.xpose.msra.mxu0 %v497
      %977 = vmatprep.subr.mxu0 %v500
      %978 = vmatpush1.xpose.msra.mxu0 %v499
      %979 = vmatprep.subr.mxu0 0.0
      %980 = vmatpush1.xpose.msra.mxu0 0.0
      %981 = vmatprep.subr.mxu0 0.0
      %982 = vmatpush1.xpose.msra.mxu0 0.0
      %983 = vmatprep.subr.mxu0 0.0
      %984 = vmatpush1.xpose.msra.mxu0 0.0
      %985 = vmatprep.subr.mxu0 0.0
      %986 = vmatpush1.xpose.msra.mxu0 0.0
      %987 = vmatprep.subr.mxu0 0.0
      %988 = vmatpush1.xpose.msra.mxu0 0.0
      %989 = vmatprep.subr.mxu0 0.0
      %990 = vmatpush1.xpose.msra.mxu0 0.0
      %991 = vmatprep.subr.mxu0 0.0
      %992 = vmatpush1.xpose.msra.mxu0 0.0
      %993 = vmatprep.subr.mxu0 0.0
      %994 = vmatpush1.xpose.msra.mxu0 0.0
      %995 = vmatprep.subr.mxu0 0.0
      %996 = vmatpush1.xpose.msra.mxu0 0.0
      %997 = vmatprep.subr.mxu0 0.0
      %998 = vmatpush1.xpose.msra.mxu0 0.0
      %999 = vmatprep.subr.mxu0 0.0
      %1000 = vmatpush1.xpose.msra.mxu0 0.0
      %1001 = vmatprep.subr.mxu0 0.0
      %1002 = vmatpush1.xpose.msra.mxu0 0.0
      %1003 = vmatprep.subr.mxu0 0.0
      %1004 = vmatpush1.xpose.msra.mxu0 0.0
      %1005 = vmatprep.subr.mxu0 0.0
      %1006 = vmatpush1.xpose.msra.mxu0 0.0
      %1007 = vmatprep.subr.mxu0 0.0
      %1008 = vmatpush1.xpose.msra.mxu0 0.0
      %1009 = vmatprep.subr.mxu0 0.0
      %1010 = vmatpush1.xpose.msra.mxu0 0.0
      %1011 = vmatprep.subr.mxu0 0.0
      %1012 = vmatpush1.xpose.msra.mxu0 0.0
      %1013 = vmatprep.subr.mxu0 0.0
      %1014 = vmatpush1.xpose.msra.mxu0 0.0
      %1015 = vmatprep.subr.mxu0 0.0
      %1016 = vmatpush1.xpose.msra.mxu0 0.0
      %1017 = vmatprep.subr.mxu0 0.0
      %1018 = vmatpush1.xpose.msra.mxu0 0.0
      %1019 = vmatprep.subr.mxu0 0.0
      %1020 = vmatpush1.xpose.msra.mxu0 0.0
      %1021 = vmatprep.subr.mxu0 0.0
      %1022 = vmatpush1.xpose.msra.mxu0 0.0
      %1023 = vmatprep.subr.mxu0 0.0
      %1024 = vmatpush1.xpose.msra.mxu0 0.0
      %1025 = vmatprep.subr.mxu0 0.0
      %1026 = vmatpush1.xpose.msra.mxu0 0.0
      %1027 = vmatprep.subr.mxu0 0.0
      %1028 = vmatpush1.xpose.msra.mxu0 0.0
      %1029 = vmatprep.subr.mxu0 0.0
      %1030 = vmatpush1.xpose.msra.mxu0 0.0
      %1031 = vmatprep.subr.mxu0 0.0
      %1032 = vmatpush1.xpose.msra.mxu0 0.0
      %1033 = vmatprep.subr.mxu0 0.0
      %1034 = vmatpush1.xpose.msra.mxu0 0.0
      %1035 = vmatprep.mubr.f32.mxu0 %v956
      %1036 = vmatmul.mubr.f32.gmra.mrb[0].mxu0 %v955
      %v1037 = vpop.f32.mrb[0].mxu0
      %v1038 = vadd.f32 0.0, %v1037
      %v1039 = vpop.f32.mrb[0].mxu0
      %1040 = vmatprep.mubr.f32.mxu0 %v958
      %1041 = vmatmul.mubr.f32.gmra.mrb[0].mxu0 %v957
      %v1042 = vpop.f32.mrb[0].mxu0
      %v1043 = vadd.f32 0.0, %v1042
      %v1044 = vpop.f32.mrb[0].mxu0
      %1045 = vmatprep.mubr.f32.mxu0 %v960
      %1046 = vmatmul.mubr.f32.gmra.mrb[0].mxu0 %v959
      %v1047 = vpop.f32.mrb[0].mxu0
      %v1048 = vadd.f32 0.0, %v1047
      %v1049 = vpop.f32.mrb[0].mxu0
      %1050 = vmatprep.mubr.f32.mxu0 %v962
      %1051 = vmatmul.mubr.f32.gmra.mrb[0].mxu0 %v961
      %v1052 = vpop.f32.mrb[0].mxu0
      %v1053 = vadd.f32 0.0, %v1052
      %v1054 = vpop.f32.mrb[0].mxu0
      %1055 = vmatprep.mubr.f32.mxu0 %v964
      %1056 = vmatmul.mubr.f32.gmra.mrb[0].mxu0 %v963
      %v1057 = vpop.f32.mrb[0].mxu0
      %v1058 = vadd.f32 0.0, %v1057
      %v1059 = vpop.f32.mrb[0].mxu0
      %1060 = vmatprep.mubr.f32.mxu0 %v966
      %1061 = vmatmul.mubr.f32.gmra.mrb[0].mxu0 %v965
      %v1062 = vpop.f32.mrb[0].mxu0
      %v1063 = vadd.f32 0.0, %v1062
      %v1064 = vpop.f32.mrb[0].mxu0
      %1065 = vmatprep.mubr.f32.mxu0 %v968
      %1066 = vmatmul.mubr.f32.gmra.mrb[0].mxu0 %v967
      %v1067 = vpop.f32.mrb[0].mxu0
      %v1068 = vadd.f32 0.0, %v1067
      %v1069 = vpop.f32.mrb[0].mxu0
      %1070 = vmatprep.mubr.f32.mxu0 %v970
      %1071 = vmatmul.mubr.f32.gmra.mrb[0].mxu0 %v969
      %v1072 = vpop.f32.mrb[0].mxu0
      %v1073 = vadd.f32 0.0, %v1072
      %v1074 = vpop.f32.mrb[0].mxu0
      %1075 = vdwg.mxu0
      %v1076 = vadd.f32 %v955, %v956
      %1077 = vadd.xlane.f32.xlu0 %v1076
      %v1078 = vpop.xlane.xlu0 %1077
      %v1079 = vadd.f32 %v957, %v958
      %1080 = vadd.xlane.f32.xlu0 %v1079
      %v1081 = vpop.xlane.xlu0 %1080
      %v1082 = vadd.f32 %v959, %v960
      %1083 = vadd.xlane.f32.xlu0 %v1082
      %v1084 = vpop.xlane.xlu0 %1083
      %v1085 = vadd.f32 %v961, %v962
      %1086 = vadd.xlane.f32.xlu0 %v1085
      %v1087 = vpop.xlane.xlu0 %1086
      %v1088 = vadd.f32 %v963, %v964
      %1089 = vadd.xlane.f32.xlu0 %v1088
      %v1090 = vpop.xlane.xlu0 %1089
      %v1091 = vadd.f32 %v965, %v966
      %1092 = vadd.xlane.f32.xlu0 %v1091
      %v1093 = vpop.xlane.xlu0 %1092
      %v1094 = vadd.f32 %v967, %v968
      %1095 = vadd.xlane.f32.xlu0 %v1094
      %v1096 = vpop.xlane.xlu0 %1095
      %v1097 = vadd.f32 %v969, %v970
      %1098 = vadd.xlane.f32.xlu0 %v1097
      %v1099 = vpop.xlane.xlu0 %1098
      %v1100 = vadd.f32 %v1078, 1e-12
      %v1101 = vadd.f32 %v1081, 1e-12
      %v1102 = vadd.f32 %v1084, 1e-12
      %v1103 = vadd.f32 %v1087, 1e-12
      %v1104 = vadd.f32 %v1090, 1e-12
      %v1105 = vadd.f32 %v1093, 1e-12
      %v1106 = vadd.f32 %v1096, 1e-12
      %v1107 = vadd.f32 %v1099, 1e-12
      %v1108 = vrcp.pop %v1100
      %v1109 = vrcp.pop %v1101
      %v1110 = vrcp.pop %v1102
      %v1111 = vrcp.pop %v1103
      %v1112 = vrcp.pop %v1104
      %v1113 = vrcp.pop %v1105
      %v1114 = vrcp.pop %v1106
      %v1115 = vrcp.pop %v1107
      %v1116 = vmul.f32 %v1038, %v1108
      %v1117 = vmul.f32 %v1043, %v1109
      %v1118 = vmul.f32 %v1048, %v1110
      %v1119 = vmul.f32 %v1053, %v1111
      %v1120 = vmul.f32 %v1058, %v1112
      %v1121 = vmul.f32 %v1063, %v1113
      %v1122 = vmul.f32 %v1068, %v1114
      %v1123 = vmul.f32 %v1073, %v1115
      %v1124 = vld [vmem:[%s7] sm:$0xff]
      %v1125 = vld [vmem:[%s7 + $0x8] sm:$0xff]
      %v1126 = vld [vmem:[%s7 + $0x10] sm:$0xff]
      %v1127 = vld [vmem:[%s7 + $0x18] sm:$0xff]
      %v1129 = vsel %vm666, %v1116, 0
      %v1132 = vsel %vm666, %v1117, 0
      %v1135 = vsel %vm666, %v1118, 0
      %v1138 = vsel %vm666, %v1119, 0
      %v1141 = vsel %vm666, %v1120, 0
      %v1144 = vsel %vm666, %v1121, 0
      %v1147 = vsel %vm666, %v1122, 0
      %v1150 = vsel %vm666, %v1123, 0
      %1152 = vmatprep.subr.mxu0 0.0
      %1153 = vmatpush1.msra.mxu0 %v1124
      %1154 = vmatprep.subr.mxu0 0.0
      %1155 = vmatpush1.msra.mxu0 %v1125
      %1156 = vmatprep.subr.mxu0 0.0
      %1157 = vmatpush1.msra.mxu0 %v1126
      %1158 = vmatprep.subr.mxu0 0.0
      %1159 = vmatpush1.msra.mxu0 %v1127
      %1160 = vmatprep.subr.mxu0 0.0
      %1161 = vmatpush1.msra.mxu0 0.0
      %1162 = vmatprep.subr.mxu0 0.0
      %1163 = vmatpush1.msra.mxu0 0.0
      %1164 = vmatprep.subr.mxu0 0.0
      %1165 = vmatpush1.msra.mxu0 0.0
      %1166 = vmatprep.subr.mxu0 0.0
      %1167 = vmatpush1.msra.mxu0 0.0
      %1168 = vmatprep.subr.mxu0 0.0
      %1169 = vmatpush1.msra.mxu0 0.0
      %1170 = vmatprep.subr.mxu0 0.0
      %1171 = vmatpush1.msra.mxu0 0.0
      %1172 = vmatprep.subr.mxu0 0.0
      %1173 = vmatpush1.msra.mxu0 0.0
      %1174 = vmatprep.subr.mxu0 0.0
      %1175 = vmatpush1.msra.mxu0 0.0
      %1176 = vmatprep.subr.mxu0 0.0
      %1177 = vmatpush1.msra.mxu0 0.0
      %1178 = vmatprep.subr.mxu0 0.0
      %1179 = vmatpush1.msra.mxu0 0.0
      %1180 = vmatprep.subr.mxu0 0.0
      %1181 = vmatpush1.msra.mxu0 0.0
      %1182 = vmatprep.subr.mxu0 0.0
      %1183 = vmatpush1.msra.mxu0 0.0
      %1184 = vmatprep.subr.mxu0 0.0
      %1185 = vmatpush1.msra.mxu0 0.0
      %1186 = vmatprep.subr.mxu0 0.0
      %1187 = vmatpush1.msra.mxu0 0.0
      %1188 = vmatprep.subr.mxu0 0.0
      %1189 = vmatpush1.msra.mxu0 0.0
      %1190 = vmatprep.subr.mxu0 0.0
      %1191 = vmatpush1.msra.mxu0 0.0
      %1192 = vmatprep.subr.mxu0 0.0
      %1193 = vmatpush1.msra.mxu0 0.0
      %1194 = vmatprep.subr.mxu0 0.0
      %1195 = vmatpush1.msra.mxu0 0.0
      %1196 = vmatprep.subr.mxu0 0.0
      %1197 = vmatpush1.msra.mxu0 0.0
      %1198 = vmatprep.subr.mxu0 0.0
      %1199 = vmatpush1.msra.mxu0 0.0
      %1200 = vmatprep.subr.mxu0 0.0
      %1201 = vmatpush1.msra.mxu0 0.0
      %1202 = vmatprep.subr.mxu0 0.0
      %1203 = vmatpush1.msra.mxu0 0.0
      %1204 = vmatprep.subr.mxu0 0.0
      %1205 = vmatpush1.msra.mxu0 0.0
      %1206 = vmatprep.subr.mxu0 0.0
      %1207 = vmatpush1.msra.mxu0 0.0
      %1208 = vmatprep.subr.mxu0 0.0
      %1209 = vmatpush1.msra.mxu0 0.0
      %1210 = vmatprep.subr.mxu0 0.0
      %1211 = vmatpush1.msra.mxu0 0.0
      %1212 = vmatprep.subr.mxu0 0.0
      %1213 = vmatpush1.msra.mxu0 0.0
      %1214 = vmatprep.subr.mxu0 0.0
      %1215 = vmatpush1.msra.mxu0 0.0
      %1216 = vmatprep.mubr.f32.mxu0 0.0
      %1217 = vmatmul.mubr.f32.gmra.mrb[0].mxu0 %v1129
      %v1218 = vpop.f32.mrb[0].mxu0
      %v1219 = vadd.f32 0.0, %v1218
      %v1220 = vpop.f32.mrb[0].mxu0
      %1221 = vmatprep.mubr.f32.mxu0 0.0
      %1222 = vmatmul.mubr.f32.gmra.mrb[0].mxu0 %v1132
      %v1223 = vpop.f32.mrb[0].mxu0
      %v1224 = vadd.f32 0.0, %v1223
      %v1225 = vpop.f32.mrb[0].mxu0
      %1226 = vmatprep.mubr.f32.mxu0 0.0
      %1227 = vmatmul.mubr.f32.gmra.mrb[0].mxu0 %v1135
      %v1228 = vpop.f32.mrb[0].mxu0
      %v1229 = vadd.f32 0.0, %v1228
      %v1230 = vpop.f32.mrb[0].mxu0
      %1231 = vmatprep.mubr.f32.mxu0 0.0
      %1232 = vmatmul.mubr.f32.gmra.mrb[0].mxu0 %v1138
      %v1233 = vpop.f32.mrb[0].mxu0
      %v1234 = vadd.f32 0.0, %v1233
      %v1235 = vpop.f32.mrb[0].mxu0
      %1236 = vmatprep.mubr.f32.mxu0 0.0
      %1237 = vmatmul.mubr.f32.gmra.mrb[0].mxu0 %v1141
      %v1238 = vpop.f32.mrb[0].mxu0
      %v1239 = vadd.f32 0.0, %v1238
      %v1240 = vpop.f32.mrb[0].mxu0
      %1241 = vmatprep.mubr.f32.mxu0 0.0
      %1242 = vmatmul.mubr.f32.gmra.mrb[0].mxu0 %v1144
      %v1243 = vpop.f32.mrb[0].mxu0
      %v1244 = vadd.f32 0.0, %v1243
      %v1245 = vpop.f32.mrb[0].mxu0
      %1246 = vmatprep.mubr.f32.mxu0 0.0
      %1247 = vmatmul.mubr.f32.gmra.mrb[0].mxu0 %v1147
      %v1248 = vpop.f32.mrb[0].mxu0
      %v1249 = vadd.f32 0.0, %v1248
      %v1250 = vpop.f32.mrb[0].mxu0
      %1251 = vmatprep.mubr.f32.mxu0 0.0
      %1252 = vmatmul.mubr.f32.gmra.mrb[0].mxu0 %v1150
      %v1253 = vpop.f32.mrb[0].mxu0
      %v1254 = vadd.f32 0.0, %v1253
      %v1255 = vpop.f32.mrb[0].mxu0
      %1256 = vdwg.mxu0
      %v1257 = vld [vmem:[%s6] sm:$0xff]
      %v1258 = vld [vmem:[%s6 + $0x8] sm:$0xff]
      %v1259 = vld [vmem:[%s6 + $0x10] sm:$0xff]
      %v1260 = vld [vmem:[%s6 + $0x18] sm:$0xff]
      %v1261 = vld [vmem:[%s6 + $0x20] sm:$0xff]
      %v1262 = vld [vmem:[%s6 + $0x28] sm:$0xff]
      %v1263 = vld [vmem:[%s6 + $0x30] sm:$0xff]
      %v1264 = vld [vmem:[%s6 + $0x38] sm:$0xff]
      %v1265 = vld [vmem:[%s6 + $0x40] sm:$0xff]
      %v1266 = vld [vmem:[%s6 + $0x48] sm:$0xff]
      %v1267 = vld [vmem:[%s6 + $0x50] sm:$0xff]
      %v1268 = vld [vmem:[%s6 + $0x58] sm:$0xff]
      %v1269 = vld [vmem:[%s6 + $0x60] sm:$0xff]
      %v1270 = vld [vmem:[%s6 + $0x68] sm:$0xff]
      %v1271 = vld [vmem:[%s6 + $0x70] sm:$0xff]
      %v1272 = vld [vmem:[%s6 + $0x78] sm:$0xff]
      %v1273 = vld [vmem:[%s6 + $0x80] sm:$0xff]
      %v1274 = vld [vmem:[%s6 + $0x88] sm:$0xff]
      %v1275 = vld [vmem:[%s6 + $0x90] sm:$0xff]
      %v1276 = vld [vmem:[%s6 + $0x98] sm:$0xff]
      %v1277 = vld [vmem:[%s6 + $0xa0] sm:$0xff]
      %v1278 = vld [vmem:[%s6 + $0xa8] sm:$0xff]
      %v1279 = vld [vmem:[%s6 + $0xb0] sm:$0xff]
      %v1280 = vld [vmem:[%s6 + $0xb8] sm:$0xff]
      %v1281 = vld [vmem:[%s6 + $0xc0] sm:$0xff]
      %v1282 = vld [vmem:[%s6 + $0xc8] sm:$0xff]
      %v1283 = vld [vmem:[%s6 + $0xd0] sm:$0xff]
      %v1284 = vld [vmem:[%s6 + $0xd8] sm:$0xff]
      %v1285 = vld [vmem:[%s6 + $0xe0] sm:$0xff]
      %v1286 = vld [vmem:[%s6 + $0xe8] sm:$0xff]
      %v1287 = vld [vmem:[%s6 + $0xf0] sm:$0xff]
      %v1288 = vld [vmem:[%s6 + $0xf8] sm:$0xff]
      %v1289 = vld [vmem:[%s6 + $0x100] sm:$0xff]
      %v1290 = vld [vmem:[%s6 + $0x108] sm:$0xff]
      %v1291 = vld [vmem:[%s6 + $0x110] sm:$0xff]
      %v1292 = vld [vmem:[%s6 + $0x118] sm:$0xff]
      %v1293 = vld [vmem:[%s6 + $0x120] sm:$0xff]
      %v1294 = vld [vmem:[%s6 + $0x128] sm:$0xff]
      %v1295 = vld [vmem:[%s6 + $0x130] sm:$0xff]
      %v1296 = vld [vmem:[%s6 + $0x138] sm:$0xff]
      %v1297 = vld [vmem:[%s6 + $0x140] sm:$0xff]
      %v1298 = vld [vmem:[%s6 + $0x148] sm:$0xff]
      %v1299 = vld [vmem:[%s6 + $0x150] sm:$0xff]
      %v1300 = vld [vmem:[%s6 + $0x158] sm:$0xff]
      %v1301 = vld [vmem:[%s6 + $0x160] sm:$0xff]
      %v1302 = vld [vmem:[%s6 + $0x168] sm:$0xff]
      %v1303 = vld [vmem:[%s6 + $0x170] sm:$0xff]
      %v1304 = vld [vmem:[%s6 + $0x178] sm:$0xff]
      %v1305 = vld [vmem:[%s6 + $0x180] sm:$0xff]
      %v1306 = vld [vmem:[%s6 + $0x188] sm:$0xff]
      %v1307 = vld [vmem:[%s6 + $0x190] sm:$0xff]
      %v1308 = vld [vmem:[%s6 + $0x198] sm:$0xff]
      %v1309 = vld [vmem:[%s6 + $0x1a0] sm:$0xff]
      %v1310 = vld [vmem:[%s6 + $0x1a8] sm:$0xff]
      %v1311 = vld [vmem:[%s6 + $0x1b0] sm:$0xff]
      %v1312 = vld [vmem:[%s6 + $0x1b8] sm:$0xff]
      %v1313 = vld [vmem:[%s6 + $0x1c0] sm:$0xff]
      %v1314 = vld [vmem:[%s6 + $0x1c8] sm:$0xff]
      %v1315 = vld [vmem:[%s6 + $0x1d0] sm:$0xff]
      %v1316 = vld [vmem:[%s6 + $0x1d8] sm:$0xff]
      %v1317 = vld [vmem:[%s6 + $0x1e0] sm:$0xff]
      %v1318 = vld [vmem:[%s6 + $0x1e8] sm:$0xff]
      %v1319 = vld [vmem:[%s6 + $0x1f0] sm:$0xff]
      %v1320 = vld [vmem:[%s6 + $0x1f8] sm:$0xff]
      %v1321 = vmul.f32 %v1219, %v1257
      %v1322 = vmul.f32 %v1224, %v1258
      %v1323 = vmul.f32 %v1229, %v1259
      %v1324 = vmul.f32 %v1234, %v1260
      %v1325 = vmul.f32 %v1239, %v1261
      %v1326 = vmul.f32 %v1244, %v1262
      %v1327 = vmul.f32 %v1249, %v1263
      %v1328 = vmul.f32 %v1254, %v1264
      %v1329 = vmul.f32 %v1219, %v1265
      %v1330 = vmul.f32 %v1224, %v1266
      %v1331 = vmul.f32 %v1229, %v1267
      %v1332 = vmul.f32 %v1234, %v1268
      %v1333 = vmul.f32 %v1239, %v1269
      %v1334 = vmul.f32 %v1244, %v1270
      %v1335 = vmul.f32 %v1249, %v1271
      %v1336 = vmul.f32 %v1254, %v1272
      %v1337 = vmul.f32 %v1219, %v1273
      %v1338 = vmul.f32 %v1224, %v1274
      %v1339 = vmul.f32 %v1229, %v1275
      %v1340 = vmul.f32 %v1234, %v1276
      %v1341 = vmul.f32 %v1239, %v1277
      %v1342 = vmul.f32 %v1244, %v1278
      %v1343 = vmul.f32 %v1249, %v1279
      %v1344 = vmul.f32 %v1254, %v1280
      %v1345 = vmul.f32 %v1219, %v1281
      %v1346 = vmul.f32 %v1224, %v1282
      %v1347 = vmul.f32 %v1229, %v1283
      %v1348 = vmul.f32 %v1234, %v1284
      %v1349 = vmul.f32 %v1239, %v1285
      %v1350 = vmul.f32 %v1244, %v1286
      %v1351 = vmul.f32 %v1249, %v1287
      %v1352 = vmul.f32 %v1254, %v1288
      %v1353 = vmul.f32 %v1219, %v1289
      %v1354 = vmul.f32 %v1224, %v1290
      %v1355 = vmul.f32 %v1229, %v1291
      %v1356 = vmul.f32 %v1234, %v1292
      %v1357 = vmul.f32 %v1239, %v1293
      %v1358 = vmul.f32 %v1244, %v1294
      %v1359 = vmul.f32 %v1249, %v1295
      %v1360 = vmul.f32 %v1254, %v1296
      %v1361 = vmul.f32 %v1219, %v1297
      %v1362 = vmul.f32 %v1224, %v1298
      %v1363 = vmul.f32 %v1229, %v1299
      %v1364 = vmul.f32 %v1234, %v1300
      %v1365 = vmul.f32 %v1239, %v1301
      %v1366 = vmul.f32 %v1244, %v1302
      %v1367 = vmul.f32 %v1249, %v1303
      %v1368 = vmul.f32 %v1254, %v1304
      %v1369 = vmul.f32 %v1219, %v1305
      %v1370 = vmul.f32 %v1224, %v1306
      %v1371 = vmul.f32 %v1229, %v1307
      %v1372 = vmul.f32 %v1234, %v1308
      %v1373 = vmul.f32 %v1239, %v1309
      %v1374 = vmul.f32 %v1244, %v1310
      %v1375 = vmul.f32 %v1249, %v1311
      %v1376 = vmul.f32 %v1254, %v1312
      %v1377 = vmul.f32 %v1219, %v1313
      %v1378 = vmul.f32 %v1224, %v1314
      %v1379 = vmul.f32 %v1229, %v1315
      %v1380 = vmul.f32 %v1234, %v1316
      %v1381 = vmul.f32 %v1239, %v1317
      %v1382 = vmul.f32 %v1244, %v1318
      %v1383 = vmul.f32 %v1249, %v1319
      %v1384 = vmul.f32 %v1254, %v1320
      %1393 = vrot.lane.b32.xlu0 %v1219, 96
      %v1394 = vpop.permute.xlu0 %1393
      %1395 = vrot.lane.b32.xlu0 %v1224, 96
      %v1396 = vpop.permute.xlu0 %1395
      %1397 = vrot.lane.b32.xlu0 %v1229, 96
      %v1398 = vpop.permute.xlu0 %1397
      %1399 = vrot.lane.b32.xlu0 %v1234, 96
      %v1400 = vpop.permute.xlu0 %1399
      %1401 = vrot.lane.b32.xlu0 %v1239, 96
      %v1402 = vpop.permute.xlu0 %1401
      %1403 = vrot.lane.b32.xlu0 %v1244, 96
      %v1404 = vpop.permute.xlu0 %1403
      %1405 = vrot.lane.b32.xlu0 %v1249, 96
      %v1406 = vpop.permute.xlu0 %1405
      %1407 = vrot.lane.b32.xlu0 %v1254, 96
      %v1408 = vpop.permute.xlu0 %1407
      %v1410 = vsel %vm666, %v1321, 0
      %v1413 = vsel %vm666, %v1322, 0
      %v1416 = vsel %vm666, %v1323, 0
      %v1419 = vsel %vm666, %v1324, 0
      %v1422 = vsel %vm666, %v1325, 0
      %v1425 = vsel %vm666, %v1326, 0
      %v1428 = vsel %vm666, %v1327, 0
      %v1431 = vsel %vm666, %v1328, 0
      %v1434 = vsel %vm666, %v1329, 0
      %v1437 = vsel %vm666, %v1330, 0
      %v1440 = vsel %vm666, %v1331, 0
      %v1443 = vsel %vm666, %v1332, 0
      %v1446 = vsel %vm666, %v1333, 0
      %v1449 = vsel %vm666, %v1334, 0
      %v1452 = vsel %vm666, %v1335, 0
      %v1455 = vsel %vm666, %v1336, 0
      %v1458 = vsel %vm666, %v1337, 0
      %v1461 = vsel %vm666, %v1338, 0
      %v1464 = vsel %vm666, %v1339, 0
      %v1467 = vsel %vm666, %v1340, 0
      %v1470 = vsel %vm666, %v1341, 0
      %v1473 = vsel %vm666, %v1342, 0
      %v1476 = vsel %vm666, %v1343, 0
      %v1479 = vsel %vm666, %v1344, 0
      %v1482 = vsel %vm666, %v1345, 0
      %v1485 = vsel %vm666, %v1346, 0
      %v1488 = vsel %vm666, %v1347, 0
      %v1491 = vsel %vm666, %v1348, 0
      %v1494 = vsel %vm666, %v1349, 0
      %v1497 = vsel %vm666, %v1350, 0
      %v1500 = vsel %vm666, %v1351, 0
      %v1503 = vsel %vm666, %v1352, 0
      %v1506 = vsel %vm666, %v1353, 0
      %v1509 = vsel %vm666, %v1354, 0
      %v1512 = vsel %vm666, %v1355, 0
      %v1515 = vsel %vm666, %v1356, 0
      %v1518 = vsel %vm666, %v1357, 0
      %v1521 = vsel %vm666, %v1358, 0
      %v1524 = vsel %vm666, %v1359, 0
      %v1527 = vsel %vm666, %v1360, 0
      %v1530 = vsel %vm666, %v1361, 0
      %v1533 = vsel %vm666, %v1362, 0
      %v1536 = vsel %vm666, %v1363, 0
      %v1539 = vsel %vm666, %v1364, 0
      %v1542 = vsel %vm666, %v1365, 0
      %v1545 = vsel %vm666, %v1366, 0
      %v1548 = vsel %vm666, %v1367, 0
      %v1551 = vsel %vm666, %v1368, 0
      %v1554 = vsel %vm666, %v1369, 0
      %v1557 = vsel %vm666, %v1370, 0
      %v1560 = vsel %vm666, %v1371, 0
      %v1563 = vsel %vm666, %v1372, 0
      %v1566 = vsel %vm666, %v1373, 0
      %v1569 = vsel %vm666, %v1374, 0
      %v1572 = vsel %vm666, %v1375, 0
      %v1575 = vsel %vm666, %v1376, 0
      %v1578 = vsel %vm666, %v1377, 0
      %v1581 = vsel %vm666, %v1378, 0
      %v1584 = vsel %vm666, %v1379, 0
      %v1587 = vsel %vm666, %v1380, 0
      %v1590 = vsel %vm666, %v1381, 0
      %v1593 = vsel %vm666, %v1382, 0
      %v1596 = vsel %vm666, %v1383, 0
      %v1599 = vsel %vm666, %v1384, 0
      %v1601 = vsel %vm666, %v1394, 0
      %v1603 = vsel %vm666, %v1396, 0
      %v1605 = vsel %vm666, %v1398, 0
      %v1607 = vsel %vm666, %v1400, 0
      %v1609 = vsel %vm666, %v1402, 0
      %v1611 = vsel %vm666, %v1404, 0
      %v1613 = vsel %vm666, %v1406, 0
      %v1615 = vsel %vm666, %v1408, 0
      %1617 = vmatprep.subr.mxu0 0.0
      %1618 = vmatpush1.xpose.msra.mxu0 %v1601
      %1619 = vmatprep.subr.mxu0 0.0
      %1620 = vmatpush1.xpose.msra.mxu0 %v1603
      %1621 = vmatprep.subr.mxu0 0.0
      %1622 = vmatpush1.xpose.msra.mxu0 %v1605
      %1623 = vmatprep.subr.mxu0 0.0
      %1624 = vmatpush1.xpose.msra.mxu0 %v1607
      %1625 = vmatprep.subr.mxu0 0.0
      %1626 = vmatpush1.xpose.msra.mxu0 %v1609
      %1627 = vmatprep.subr.mxu0 0.0
      %1628 = vmatpush1.xpose.msra.mxu0 %v1611
      %1629 = vmatprep.subr.mxu0 0.0
      %1630 = vmatpush1.xpose.msra.mxu0 %v1613
      %1631 = vmatprep.subr.mxu0 0.0
      %1632 = vmatpush1.xpose.msra.mxu0 %v1615
      %1633 = vmatprep.subr.mxu0 0.0
      %1634 = vmatpush1.xpose.msra.mxu0 0.0
      %1635 = vmatprep.subr.mxu0 0.0
      %1636 = vmatpush1.xpose.msra.mxu0 0.0
      %1637 = vmatprep.subr.mxu0 0.0
      %1638 = vmatpush1.xpose.msra.mxu0 0.0
      %1639 = vmatprep.subr.mxu0 0.0
      %1640 = vmatpush1.xpose.msra.mxu0 0.0
      %1641 = vmatprep.subr.mxu0 0.0
      %1642 = vmatpush1.xpose.msra.mxu0 0.0
      %1643 = vmatprep.subr.mxu0 0.0
      %1644 = vmatpush1.xpose.msra.mxu0 0.0
      %1645 = vmatprep.subr.mxu0 0.0
      %1646 = vmatpush1.xpose.msra.mxu0 0.0
      %1647 = vmatprep.subr.mxu0 0.0
      %1648 = vmatpush1.xpose.msra.mxu0 0.0
      %1649 = vmatprep.subr.mxu0 0.0
      %1650 = vmatpush1.xpose.msra.mxu0 0.0
      %1651 = vmatprep.subr.mxu0 0.0
      %1652 = vmatpush1.xpose.msra.mxu0 0.0
      %1653 = vmatprep.subr.mxu0 0.0
      %1654 = vmatpush1.xpose.msra.mxu0 0.0
      %1655 = vmatprep.subr.mxu0 0.0
      %1656 = vmatpush1.xpose.msra.mxu0 0.0
      %1657 = vmatprep.subr.mxu0 0.0
      %1658 = vmatpush1.xpose.msra.mxu0 0.0
      %1659 = vmatprep.subr.mxu0 0.0
      %1660 = vmatpush1.xpose.msra.mxu0 0.0
      %1661 = vmatprep.subr.mxu0 0.0
      %1662 = vmatpush1.xpose.msra.mxu0 0.0
      %1663 = vmatprep.subr.mxu0 0.0
      %1664 = vmatpush1.xpose.msra.mxu0 0.0
      %1665 = vmatprep.subr.mxu0 0.0
      %1666 = vmatpush1.xpose.msra.mxu0 0.0
      %1667 = vmatprep.subr.mxu0 0.0
      %1668 = vmatpush1.xpose.msra.mxu0 0.0
      %1669 = vmatprep.subr.mxu0 0.0
      %1670 = vmatpush1.xpose.msra.mxu0 0.0
      %1671 = vmatprep.subr.mxu0 0.0
      %1672 = vmatpush1.xpose.msra.mxu0 0.0
      %1673 = vmatprep.subr.mxu0 0.0
      %1674 = vmatpush1.xpose.msra.mxu0 0.0
      %1675 = vmatprep.subr.mxu0 0.0
      %1676 = vmatpush1.xpose.msra.mxu0 0.0
      %1677 = vmatprep.subr.mxu0 0.0
      %1678 = vmatpush1.xpose.msra.mxu0 0.0
      %1679 = vmatprep.subr.mxu0 0.0
      %1680 = vmatpush1.xpose.msra.mxu0 0.0
      %1681 = vmatprep.mubr.f32.mxu0 0.0
      %1682 = vmatmul.mubr.f32.gmra.mrb[0].mxu0 %v1410
      %v1683 = vpop.f32.mrb[0].mxu0
      %v1684 = vadd.f32 0.0, %v1683
      %v1685 = vpop.f32.mrb[0].mxu0
      %1686 = vmatprep.mubr.f32.mxu0 0.0
      %1687 = vmatmul.mubr.f32.gmra.mrb[0].mxu0 %v1413
      %v1688 = vpop.f32.mrb[0].mxu0
      %v1689 = vadd.f32 0.0, %v1688
      %v1690 = vpop.f32.mrb[0].mxu0
      %1691 = vmatprep.mubr.f32.mxu0 0.0
      %1692 = vmatmul.mubr.f32.gmra.mrb[0].mxu0 %v1416
      %v1693 = vpop.f32.mrb[0].mxu0
      %v1694 = vadd.f32 0.0, %v1693
      %v1695 = vpop.f32.mrb[0].mxu0
      %1696 = vmatprep.mubr.f32.mxu0 0.0
      %1697 = vmatmul.mubr.f32.gmra.mrb[0].mxu0 %v1419
      %v1698 = vpop.f32.mrb[0].mxu0
      %v1699 = vadd.f32 0.0, %v1698
      %v1700 = vpop.f32.mrb[0].mxu0
      %1701 = vmatprep.mubr.f32.mxu0 0.0
      %1702 = vmatmul.mubr.f32.gmra.mrb[0].mxu0 %v1422
      %v1703 = vpop.f32.mrb[0].mxu0
      %v1704 = vadd.f32 0.0, %v1703
      %v1705 = vpop.f32.mrb[0].mxu0
      %1706 = vmatprep.mubr.f32.mxu0 0.0
      %1707 = vmatmul.mubr.f32.gmra.mrb[0].mxu0 %v1425
      %v1708 = vpop.f32.mrb[0].mxu0
      %v1709 = vadd.f32 0.0, %v1708
      %v1710 = vpop.f32.mrb[0].mxu0
      %1711 = vmatprep.mubr.f32.mxu0 0.0
      %1712 = vmatmul.mubr.f32.gmra.mrb[0].mxu0 %v1428
      %v1713 = vpop.f32.mrb[0].mxu0
      %v1714 = vadd.f32 0.0, %v1713
      %v1715 = vpop.f32.mrb[0].mxu0
      %1716 = vmatprep.mubr.f32.mxu0 0.0
      %1717 = vmatmul.mubr.f32.gmra.mrb[0].mxu0 %v1431
      %v1718 = vpop.f32.mrb[0].mxu0
      %v1719 = vadd.f32 0.0, %v1718
      %v1720 = vpop.f32.mrb[0].mxu0
      %1721 = vmatprep.mubr.f32.mxu0 0.0
      %1722 = vmatmul.mubr.f32.gmra.mrb[0].mxu0 %v1434
      %v1723 = vpop.f32.mrb[0].mxu0
      %v1724 = vadd.f32 0.0, %v1723
      %v1725 = vpop.f32.mrb[0].mxu0
      %1726 = vmatprep.mubr.f32.mxu0 0.0
      %1727 = vmatmul.mubr.f32.gmra.mrb[0].mxu0 %v1437
      %v1728 = vpop.f32.mrb[0].mxu0
      %v1729 = vadd.f32 0.0, %v1728
      %v1730 = vpop.f32.mrb[0].mxu0
      %1731 = vmatprep.mubr.f32.mxu0 0.0
      %1732 = vmatmul.mubr.f32.gmra.mrb[0].mxu0 %v1440
      %v1733 = vpop.f32.mrb[0].mxu0
      %v1734 = vadd.f32 0.0, %v1733
      %v1735 = vpop.f32.mrb[0].mxu0
      %1736 = vmatprep.mubr.f32.mxu0 0.0
      %1737 = vmatmul.mubr.f32.gmra.mrb[0].mxu0 %v1443
      %v1738 = vpop.f32.mrb[0].mxu0
      %v1739 = vadd.f32 0.0, %v1738
      %v1740 = vpop.f32.mrb[0].mxu0
      %1741 = vmatprep.mubr.f32.mxu0 0.0
      %1742 = vmatmul.mubr.f32.gmra.mrb[0].mxu0 %v1446
      %v1743 = vpop.f32.mrb[0].mxu0
      %v1744 = vadd.f32 0.0, %v1743
      %v1745 = vpop.f32.mrb[0].mxu0
      %1746 = vmatprep.mubr.f32.mxu0 0.0
      %1747 = vmatmul.mubr.f32.gmra.mrb[0].mxu0 %v1449
      %v1748 = vpop.f32.mrb[0].mxu0
      %v1749 = vadd.f32 0.0, %v1748
      %v1750 = vpop.f32.mrb[0].mxu0
      %1751 = vmatprep.mubr.f32.mxu0 0.0
      %1752 = vmatmul.mubr.f32.gmra.mrb[0].mxu0 %v1452
      %v1753 = vpop.f32.mrb[0].mxu0
      %v1754 = vadd.f32 0.0, %v1753
      %v1755 = vpop.f32.mrb[0].mxu0
      %1756 = vmatprep.mubr.f32.mxu0 0.0
      %1757 = vmatmul.mubr.f32.gmra.mrb[0].mxu0 %v1455
      %v1758 = vpop.f32.mrb[0].mxu0
      %v1759 = vadd.f32 0.0, %v1758
      %v1760 = vpop.f32.mrb[0].mxu0
      %1761 = vmatprep.mubr.f32.mxu0 0.0
      %1762 = vmatmul.mubr.f32.gmra.mrb[0].mxu0 %v1458
      %v1763 = vpop.f32.mrb[0].mxu0
      %v1764 = vadd.f32 0.0, %v1763
      %v1765 = vpop.f32.mrb[0].mxu0
      %1766 = vmatprep.mubr.f32.mxu0 0.0
      %1767 = vmatmul.mubr.f32.gmra.mrb[0].mxu0 %v1461
      %v1768 = vpop.f32.mrb[0].mxu0
      %v1769 = vadd.f32 0.0, %v1768
      %v1770 = vpop.f32.mrb[0].mxu0
      %1771 = vmatprep.mubr.f32.mxu0 0.0
      %1772 = vmatmul.mubr.f32.gmra.mrb[0].mxu0 %v1464
      %v1773 = vpop.f32.mrb[0].mxu0
      %v1774 = vadd.f32 0.0, %v1773
      %v1775 = vpop.f32.mrb[0].mxu0
      %1776 = vmatprep.mubr.f32.mxu0 0.0
      %1777 = vmatmul.mubr.f32.gmra.mrb[0].mxu0 %v1467
      %v1778 = vpop.f32.mrb[0].mxu0
      %v1779 = vadd.f32 0.0, %v1778
      %v1780 = vpop.f32.mrb[0].mxu0
      %1781 = vmatprep.mubr.f32.mxu0 0.0
      %1782 = vmatmul.mubr.f32.gmra.mrb[0].mxu0 %v1470
      %v1783 = vpop.f32.mrb[0].mxu0
      %v1784 = vadd.f32 0.0, %v1783
      %v1785 = vpop.f32.mrb[0].mxu0
      %1786 = vmatprep.mubr.f32.mxu0 0.0
      %1787 = vmatmul.mubr.f32.gmra.mrb[0].mxu0 %v1473
      %v1788 = vpop.f32.mrb[0].mxu0
      %v1789 = vadd.f32 0.0, %v1788
      %v1790 = vpop.f32.mrb[0].mxu0
      %1791 = vmatprep.mubr.f32.mxu0 0.0
      %1792 = vmatmul.mubr.f32.gmra.mrb[0].mxu0 %v1476
      %v1793 = vpop.f32.mrb[0].mxu0
      %v1794 = vadd.f32 0.0, %v1793
      %v1795 = vpop.f32.mrb[0].mxu0
      %1796 = vmatprep.mubr.f32.mxu0 0.0
      %1797 = vmatmul.mubr.f32.gmra.mrb[0].mxu0 %v1479
      %v1798 = vpop.f32.mrb[0].mxu0
      %v1799 = vadd.f32 0.0, %v1798
      %v1800 = vpop.f32.mrb[0].mxu0
      %1801 = vmatprep.mubr.f32.mxu0 0.0
      %1802 = vmatmul.mubr.f32.gmra.mrb[0].mxu0 %v1482
      %v1803 = vpop.f32.mrb[0].mxu0
      %v1804 = vadd.f32 0.0, %v1803
      %v1805 = vpop.f32.mrb[0].mxu0
      %1806 = vmatprep.mubr.f32.mxu0 0.0
      %1807 = vmatmul.mubr.f32.gmra.mrb[0].mxu0 %v1485
      %v1808 = vpop.f32.mrb[0].mxu0
      %v1809 = vadd.f32 0.0, %v1808
      %v1810 = vpop.f32.mrb[0].mxu0
      %1811 = vmatprep.mubr.f32.mxu0 0.0
      %1812 = vmatmul.mubr.f32.gmra.mrb[0].mxu0 %v1488
      %v1813 = vpop.f32.mrb[0].mxu0
      %v1814 = vadd.f32 0.0, %v1813
      %v1815 = vpop.f32.mrb[0].mxu0
      %1816 = vmatprep.mubr.f32.mxu0 0.0
      %1817 = vmatmul.mubr.f32.gmra.mrb[0].mxu0 %v1491
      %v1818 = vpop.f32.mrb[0].mxu0
      %v1819 = vadd.f32 0.0, %v1818
      %v1820 = vpop.f32.mrb[0].mxu0
      %1821 = vmatprep.mubr.f32.mxu0 0.0
      %1822 = vmatmul.mubr.f32.gmra.mrb[0].mxu0 %v1494
      %v1823 = vpop.f32.mrb[0].mxu0
      %v1824 = vadd.f32 0.0, %v1823
      %v1825 = vpop.f32.mrb[0].mxu0
      %1826 = vmatprep.mubr.f32.mxu0 0.0
      %1827 = vmatmul.mubr.f32.gmra.mrb[0].mxu0 %v1497
      %v1828 = vpop.f32.mrb[0].mxu0
      %v1829 = vadd.f32 0.0, %v1828
      %v1830 = vpop.f32.mrb[0].mxu0
      %1831 = vmatprep.mubr.f32.mxu0 0.0
      %1832 = vmatmul.mubr.f32.gmra.mrb[0].mxu0 %v1500
      %v1833 = vpop.f32.mrb[0].mxu0
      %v1834 = vadd.f32 0.0, %v1833
      %v1835 = vpop.f32.mrb[0].mxu0
      %1836 = vmatprep.mubr.f32.mxu0 0.0
      %1837 = vmatmul.mubr.f32.gmra.mrb[0].mxu0 %v1503
      %v1838 = vpop.f32.mrb[0].mxu0
      %v1839 = vadd.f32 0.0, %v1838
      %v1840 = vpop.f32.mrb[0].mxu0
      %1841 = vmatprep.mubr.f32.mxu0 0.0
      %1842 = vmatmul.mubr.f32.gmra.mrb[0].mxu0 %v1506
      %v1843 = vpop.f32.mrb[0].mxu0
      %v1844 = vadd.f32 0.0, %v1843
      %v1845 = vpop.f32.mrb[0].mxu0
      %1846 = vmatprep.mubr.f32.mxu0 0.0
      %1847 = vmatmul.mubr.f32.gmra.mrb[0].mxu0 %v1509
      %v1848 = vpop.f32.mrb[0].mxu0
      %v1849 = vadd.f32 0.0, %v1848
      %v1850 = vpop.f32.mrb[0].mxu0
      %1851 = vmatprep.mubr.f32.mxu0 0.0
      %1852 = vmatmul.mubr.f32.gmra.mrb[0].mxu0 %v1512
      %v1853 = vpop.f32.mrb[0].mxu0
      %v1854 = vadd.f32 0.0, %v1853
      %v1855 = vpop.f32.mrb[0].mxu0
      %1856 = vmatprep.mubr.f32.mxu0 0.0
      %1857 = vmatmul.mubr.f32.gmra.mrb[0].mxu0 %v1515
      %v1858 = vpop.f32.mrb[0].mxu0
      %v1859 = vadd.f32 0.0, %v1858
      %v1860 = vpop.f32.mrb[0].mxu0
      %1861 = vmatprep.mubr.f32.mxu0 0.0
      %1862 = vmatmul.mubr.f32.gmra.mrb[0].mxu0 %v1518
      %v1863 = vpop.f32.mrb[0].mxu0
      %v1864 = vadd.f32 0.0, %v1863
      %v1865 = vpop.f32.mrb[0].mxu0
      %1866 = vmatprep.mubr.f32.mxu0 0.0
      %1867 = vmatmul.mubr.f32.gmra.mrb[0].mxu0 %v1521
      %v1868 = vpop.f32.mrb[0].mxu0
      %v1869 = vadd.f32 0.0, %v1868
      %v1870 = vpop.f32.mrb[0].mxu0
      %1871 = vmatprep.mubr.f32.mxu0 0.0
      %1872 = vmatmul.mubr.f32.gmra.mrb[0].mxu0 %v1524
      %v1873 = vpop.f32.mrb[0].mxu0
      %v1874 = vadd.f32 0.0, %v1873
      %v1875 = vpop.f32.mrb[0].mxu0
      %1876 = vmatprep.mubr.f32.mxu0 0.0
      %1877 = vmatmul.mubr.f32.gmra.mrb[0].mxu0 %v1527
      %v1878 = vpop.f32.mrb[0].mxu0
      %v1879 = vadd.f32 0.0, %v1878
      %v1880 = vpop.f32.mrb[0].mxu0
      %1881 = vmatprep.mubr.f32.mxu0 0.0
      %1882 = vmatmul.mubr.f32.gmra.mrb[0].mxu0 %v1530
      %v1883 = vpop.f32.mrb[0].mxu0
      %v1884 = vadd.f32 0.0, %v1883
      %v1885 = vpop.f32.mrb[0].mxu0
      %1886 = vmatprep.mubr.f32.mxu0 0.0
      %1887 = vmatmul.mubr.f32.gmra.mrb[0].mxu0 %v1533
      %v1888 = vpop.f32.mrb[0].mxu0
      %v1889 = vadd.f32 0.0, %v1888
      %v1890 = vpop.f32.mrb[0].mxu0
      %1891 = vmatprep.mubr.f32.mxu0 0.0
      %1892 = vmatmul.mubr.f32.gmra.mrb[0].mxu0 %v1536
      %v1893 = vpop.f32.mrb[0].mxu0
      %v1894 = vadd.f32 0.0, %v1893
      %v1895 = vpop.f32.mrb[0].mxu0
      %1896 = vmatprep.mubr.f32.mxu0 0.0
      %1897 = vmatmul.mubr.f32.gmra.mrb[0].mxu0 %v1539
      %v1898 = vpop.f32.mrb[0].mxu0
      %v1899 = vadd.f32 0.0, %v1898
      %v1900 = vpop.f32.mrb[0].mxu0
      %1901 = vmatprep.mubr.f32.mxu0 0.0
      %1902 = vmatmul.mubr.f32.gmra.mrb[0].mxu0 %v1542
      %v1903 = vpop.f32.mrb[0].mxu0
      %v1904 = vadd.f32 0.0, %v1903
      %v1905 = vpop.f32.mrb[0].mxu0
      %1906 = vmatprep.mubr.f32.mxu0 0.0
      %1907 = vmatmul.mubr.f32.gmra.mrb[0].mxu0 %v1545
      %v1908 = vpop.f32.mrb[0].mxu0
      %v1909 = vadd.f32 0.0, %v1908
      %v1910 = vpop.f32.mrb[0].mxu0
      %1911 = vmatprep.mubr.f32.mxu0 0.0
      %1912 = vmatmul.mubr.f32.gmra.mrb[0].mxu0 %v1548
      %v1913 = vpop.f32.mrb[0].mxu0
      %v1914 = vadd.f32 0.0, %v1913
      %v1915 = vpop.f32.mrb[0].mxu0
      %1916 = vmatprep.mubr.f32.mxu0 0.0
      %1917 = vmatmul.mubr.f32.gmra.mrb[0].mxu0 %v1551
      %v1918 = vpop.f32.mrb[0].mxu0
      %v1919 = vadd.f32 0.0, %v1918
      %v1920 = vpop.f32.mrb[0].mxu0
      %1921 = vmatprep.mubr.f32.mxu0 0.0
      %1922 = vmatmul.mubr.f32.gmra.mrb[0].mxu0 %v1554
      %v1923 = vpop.f32.mrb[0].mxu0
      %v1924 = vadd.f32 0.0, %v1923
      %v1925 = vpop.f32.mrb[0].mxu0
      %1926 = vmatprep.mubr.f32.mxu0 0.0
      %1927 = vmatmul.mubr.f32.gmra.mrb[0].mxu0 %v1557
      %v1928 = vpop.f32.mrb[0].mxu0
      %v1929 = vadd.f32 0.0, %v1928
      %v1930 = vpop.f32.mrb[0].mxu0
      %1931 = vmatprep.mubr.f32.mxu0 0.0
      %1932 = vmatmul.mubr.f32.gmra.mrb[0].mxu0 %v1560
      %v1933 = vpop.f32.mrb[0].mxu0
      %v1934 = vadd.f32 0.0, %v1933
      %v1935 = vpop.f32.mrb[0].mxu0
      %1936 = vmatprep.mubr.f32.mxu0 0.0
      %1937 = vmatmul.mubr.f32.gmra.mrb[0].mxu0 %v1563
      %v1938 = vpop.f32.mrb[0].mxu0
      %v1939 = vadd.f32 0.0, %v1938
      %v1940 = vpop.f32.mrb[0].mxu0
      %1941 = vmatprep.mubr.f32.mxu0 0.0
      %1942 = vmatmul.mubr.f32.gmra.mrb[0].mxu0 %v1566
      %v1943 = vpop.f32.mrb[0].mxu0
      %v1944 = vadd.f32 0.0, %v1943
      %v1945 = vpop.f32.mrb[0].mxu0
      %1946 = vmatprep.mubr.f32.mxu0 0.0
      %1947 = vmatmul.mubr.f32.gmra.mrb[0].mxu0 %v1569
      %v1948 = vpop.f32.mrb[0].mxu0
      %v1949 = vadd.f32 0.0, %v1948
      %v1950 = vpop.f32.mrb[0].mxu0
      %1951 = vmatprep.mubr.f32.mxu0 0.0
      %1952 = vmatmul.mubr.f32.gmra.mrb[0].mxu0 %v1572
      %v1953 = vpop.f32.mrb[0].mxu0
      %v1954 = vadd.f32 0.0, %v1953
      %v1955 = vpop.f32.mrb[0].mxu0
      %1956 = vmatprep.mubr.f32.mxu0 0.0
      %1957 = vmatmul.mubr.f32.gmra.mrb[0].mxu0 %v1575
      %v1958 = vpop.f32.mrb[0].mxu0
      %v1959 = vadd.f32 0.0, %v1958
      %v1960 = vpop.f32.mrb[0].mxu0
      %1961 = vmatprep.mubr.f32.mxu0 0.0
      %1962 = vmatmul.mubr.f32.gmra.mrb[0].mxu0 %v1578
      %v1963 = vpop.f32.mrb[0].mxu0
      %v1964 = vadd.f32 0.0, %v1963
      %v1965 = vpop.f32.mrb[0].mxu0
      %1966 = vmatprep.mubr.f32.mxu0 0.0
      %1967 = vmatmul.mubr.f32.gmra.mrb[0].mxu0 %v1581
      %v1968 = vpop.f32.mrb[0].mxu0
      %v1969 = vadd.f32 0.0, %v1968
      %v1970 = vpop.f32.mrb[0].mxu0
      %1971 = vmatprep.mubr.f32.mxu0 0.0
      %1972 = vmatmul.mubr.f32.gmra.mrb[0].mxu0 %v1584
      %v1973 = vpop.f32.mrb[0].mxu0
      %v1974 = vadd.f32 0.0, %v1973
      %v1975 = vpop.f32.mrb[0].mxu0
      %1976 = vmatprep.mubr.f32.mxu0 0.0
      %1977 = vmatmul.mubr.f32.gmra.mrb[0].mxu0 %v1587
      %v1978 = vpop.f32.mrb[0].mxu0
      %v1979 = vadd.f32 0.0, %v1978
      %v1980 = vpop.f32.mrb[0].mxu0
      %1981 = vmatprep.mubr.f32.mxu0 0.0
      %1982 = vmatmul.mubr.f32.gmra.mrb[0].mxu0 %v1590
      %v1983 = vpop.f32.mrb[0].mxu0
      %v1984 = vadd.f32 0.0, %v1983
      %v1985 = vpop.f32.mrb[0].mxu0
      %1986 = vmatprep.mubr.f32.mxu0 0.0
      %1987 = vmatmul.mubr.f32.gmra.mrb[0].mxu0 %v1593
      %v1988 = vpop.f32.mrb[0].mxu0
      %v1989 = vadd.f32 0.0, %v1988
      %v1990 = vpop.f32.mrb[0].mxu0
      %1991 = vmatprep.mubr.f32.mxu0 0.0
      %1992 = vmatmul.mubr.f32.gmra.mrb[0].mxu0 %v1596
      %v1993 = vpop.f32.mrb[0].mxu0
      %v1994 = vadd.f32 0.0, %v1993
      %v1995 = vpop.f32.mrb[0].mxu0
      %1996 = vmatprep.mubr.f32.mxu0 0.0
      %1997 = vmatmul.mubr.f32.gmra.mrb[0].mxu0 %v1599
      %v1998 = vpop.f32.mrb[0].mxu0
      %v1999 = vadd.f32 0.0, %v1998
      %v2000 = vpop.f32.mrb[0].mxu0
      %2001 = vdwg.mxu0
      %vm2002 = vcmask 523264
      %v2003 = vsel %vm2002, %v1684, -inf
      %2004 = vmax.xlane.f32.xlu0 %v2003
      %v2005 = vpop.xlane.xlu0 %2004
      %v2006 = vsel %vm2002, %v1689, -inf
      %2007 = vmax.xlane.f32.xlu0 %v2006
      %v2008 = vpop.xlane.xlu0 %2007
      %v2009 = vsel %vm2002, %v1694, -inf
      %2010 = vmax.xlane.f32.xlu0 %v2009
      %v2011 = vpop.xlane.xlu0 %2010
      %v2012 = vsel %vm2002, %v1699, -inf
      %2013 = vmax.xlane.f32.xlu0 %v2012
      %v2014 = vpop.xlane.xlu0 %2013
      %v2015 = vsel %vm2002, %v1704, -inf
      %2016 = vmax.xlane.f32.xlu0 %v2015
      %v2017 = vpop.xlane.xlu0 %2016
      %v2018 = vsel %vm2002, %v1709, -inf
      %2019 = vmax.xlane.f32.xlu0 %v2018
      %v2020 = vpop.xlane.xlu0 %2019
      %v2021 = vsel %vm2002, %v1714, -inf
      %2022 = vmax.xlane.f32.xlu0 %v2021
      %v2023 = vpop.xlane.xlu0 %2022
      %v2024 = vsel %vm2002, %v1719, -inf
      %2025 = vmax.xlane.f32.xlu0 %v2024
      %v2026 = vpop.xlane.xlu0 %2025
      %v2027 = vsel %vm2002, %v1724, -inf
      %2028 = vmax.xlane.f32.xlu0 %v2027
      %v2029 = vpop.xlane.xlu0 %2028
      %v2030 = vsel %vm2002, %v1729, -inf
      %2031 = vmax.xlane.f32.xlu0 %v2030
      %v2032 = vpop.xlane.xlu0 %2031
      %v2033 = vsel %vm2002, %v1734, -inf
      %2034 = vmax.xlane.f32.xlu0 %v2033
      %v2035 = vpop.xlane.xlu0 %2034
      %v2036 = vsel %vm2002, %v1739, -inf
      %2037 = vmax.xlane.f32.xlu0 %v2036
      %v2038 = vpop.xlane.xlu0 %2037
      %v2039 = vsel %vm2002, %v1744, -inf
      %2040 = vmax.xlane.f32.xlu0 %v2039
      %v2041 = vpop.xlane.xlu0 %2040
      %v2042 = vsel %vm2002, %v1749, -inf
      %2043 = vmax.xlane.f32.xlu0 %v2042
      %v2044 = vpop.xlane.xlu0 %2043
      %v2045 = vsel %vm2002, %v1754, -inf
      %2046 = vmax.xlane.f32.xlu0 %v2045
      %v2047 = vpop.xlane.xlu0 %2046
      %v2048 = vsel %vm2002, %v1759, -inf
      %2049 = vmax.xlane.f32.xlu0 %v2048
      %v2050 = vpop.xlane.xlu0 %2049
      %v2051 = vsel %vm2002, %v1764, -inf
      %2052 = vmax.xlane.f32.xlu0 %v2051
      %v2053 = vpop.xlane.xlu0 %2052
      %v2054 = vsel %vm2002, %v1769, -inf
      %2055 = vmax.xlane.f32.xlu0 %v2054
      %v2056 = vpop.xlane.xlu0 %2055
      %v2057 = vsel %vm2002, %v1774, -inf
      %2058 = vmax.xlane.f32.xlu0 %v2057
      %v2059 = vpop.xlane.xlu0 %2058
      %v2060 = vsel %vm2002, %v1779, -inf
      %2061 = vmax.xlane.f32.xlu0 %v2060
      %v2062 = vpop.xlane.xlu0 %2061
      %v2063 = vsel %vm2002, %v1784, -inf
      %2064 = vmax.xlane.f32.xlu0 %v2063
      %v2065 = vpop.xlane.xlu0 %2064
      %v2066 = vsel %vm2002, %v1789, -inf
      %2067 = vmax.xlane.f32.xlu0 %v2066
      %v2068 = vpop.xlane.xlu0 %2067
      %v2069 = vsel %vm2002, %v1794, -inf
      %2070 = vmax.xlane.f32.xlu0 %v2069
      %v2071 = vpop.xlane.xlu0 %2070
      %v2072 = vsel %vm2002, %v1799, -inf
      %2073 = vmax.xlane.f32.xlu0 %v2072
      %v2074 = vpop.xlane.xlu0 %2073
      %v2075 = vsel %vm2002, %v1804, -inf
      %2076 = vmax.xlane.f32.xlu0 %v2075
      %v2077 = vpop.xlane.xlu0 %2076
      %v2078 = vsel %vm2002, %v1809, -inf
      %2079 = vmax.xlane.f32.xlu0 %v2078
      %v2080 = vpop.xlane.xlu0 %2079
      %v2081 = vsel %vm2002, %v1814, -inf
      %2082 = vmax.xlane.f32.xlu0 %v2081
      %v2083 = vpop.xlane.xlu0 %2082
      %v2084 = vsel %vm2002, %v1819, -inf
      %2085 = vmax.xlane.f32.xlu0 %v2084
      %v2086 = vpop.xlane.xlu0 %2085
      %v2087 = vsel %vm2002, %v1824, -inf
      %2088 = vmax.xlane.f32.xlu0 %v2087
      %v2089 = vpop.xlane.xlu0 %2088
      %v2090 = vsel %vm2002, %v1829, -inf
      %2091 = vmax.xlane.f32.xlu0 %v2090
      %v2092 = vpop.xlane.xlu0 %2091
      %v2093 = vsel %vm2002, %v1834, -inf
      %2094 = vmax.xlane.f32.xlu0 %v2093
      %v2095 = vpop.xlane.xlu0 %2094
      %v2096 = vsel %vm2002, %v1839, -inf
      %2097 = vmax.xlane.f32.xlu0 %v2096
      %v2098 = vpop.xlane.xlu0 %2097
      %v2099 = vsel %vm2002, %v1844, -inf
      %2100 = vmax.xlane.f32.xlu0 %v2099
      %v2101 = vpop.xlane.xlu0 %2100
      %v2102 = vsel %vm2002, %v1849, -inf
      %2103 = vmax.xlane.f32.xlu0 %v2102
      %v2104 = vpop.xlane.xlu0 %2103
      %v2105 = vsel %vm2002, %v1854, -inf
      %2106 = vmax.xlane.f32.xlu0 %v2105
      %v2107 = vpop.xlane.xlu0 %2106
      %v2108 = vsel %vm2002, %v1859, -inf
      %2109 = vmax.xlane.f32.xlu0 %v2108
      %v2110 = vpop.xlane.xlu0 %2109
      %v2111 = vsel %vm2002, %v1864, -inf
      %2112 = vmax.xlane.f32.xlu0 %v2111
      %v2113 = vpop.xlane.xlu0 %2112
      %v2114 = vsel %vm2002, %v1869, -inf
      %2115 = vmax.xlane.f32.xlu0 %v2114
      %v2116 = vpop.xlane.xlu0 %2115
      %v2117 = vsel %vm2002, %v1874, -inf
      %2118 = vmax.xlane.f32.xlu0 %v2117
      %v2119 = vpop.xlane.xlu0 %2118
      %v2120 = vsel %vm2002, %v1879, -inf
      %2121 = vmax.xlane.f32.xlu0 %v2120
      %v2122 = vpop.xlane.xlu0 %2121
      %v2123 = vsel %vm2002, %v1884, -inf
      %2124 = vmax.xlane.f32.xlu0 %v2123
      %v2125 = vpop.xlane.xlu0 %2124
      %v2126 = vsel %vm2002, %v1889, -inf
      %2127 = vmax.xlane.f32.xlu0 %v2126
      %v2128 = vpop.xlane.xlu0 %2127
      %v2129 = vsel %vm2002, %v1894, -inf
      %2130 = vmax.xlane.f32.xlu0 %v2129
      %v2131 = vpop.xlane.xlu0 %2130
      %v2132 = vsel %vm2002, %v1899, -inf
      %2133 = vmax.xlane.f32.xlu0 %v2132
      %v2134 = vpop.xlane.xlu0 %2133
      %v2135 = vsel %vm2002, %v1904, -inf
      %2136 = vmax.xlane.f32.xlu0 %v2135
      %v2137 = vpop.xlane.xlu0 %2136
      %v2138 = vsel %vm2002, %v1909, -inf
      %2139 = vmax.xlane.f32.xlu0 %v2138
      %v2140 = vpop.xlane.xlu0 %2139
      %v2141 = vsel %vm2002, %v1914, -inf
      %2142 = vmax.xlane.f32.xlu0 %v2141
      %v2143 = vpop.xlane.xlu0 %2142
      %v2144 = vsel %vm2002, %v1919, -inf
      %2145 = vmax.xlane.f32.xlu0 %v2144
      %v2146 = vpop.xlane.xlu0 %2145
      %v2147 = vsel %vm2002, %v1924, -inf
      %2148 = vmax.xlane.f32.xlu0 %v2147
      %v2149 = vpop.xlane.xlu0 %2148
      %v2150 = vsel %vm2002, %v1929, -inf
      %2151 = vmax.xlane.f32.xlu0 %v2150
      %v2152 = vpop.xlane.xlu0 %2151
      %v2153 = vsel %vm2002, %v1934, -inf
      %2154 = vmax.xlane.f32.xlu0 %v2153
      %v2155 = vpop.xlane.xlu0 %2154
      %v2156 = vsel %vm2002, %v1939, -inf
      %2157 = vmax.xlane.f32.xlu0 %v2156
      %v2158 = vpop.xlane.xlu0 %2157
      %v2159 = vsel %vm2002, %v1944, -inf
      %2160 = vmax.xlane.f32.xlu0 %v2159
      %v2161 = vpop.xlane.xlu0 %2160
      %v2162 = vsel %vm2002, %v1949, -inf
      %2163 = vmax.xlane.f32.xlu0 %v2162
      %v2164 = vpop.xlane.xlu0 %2163
      %v2165 = vsel %vm2002, %v1954, -inf
      %2166 = vmax.xlane.f32.xlu0 %v2165
      %v2167 = vpop.xlane.xlu0 %2166
      %v2168 = vsel %vm2002, %v1959, -inf
      %2169 = vmax.xlane.f32.xlu0 %v2168
      %v2170 = vpop.xlane.xlu0 %2169
      %v2171 = vsel %vm2002, %v1964, -inf
      %2172 = vmax.xlane.f32.xlu0 %v2171
      %v2173 = vpop.xlane.xlu0 %2172
      %v2174 = vsel %vm2002, %v1969, -inf
      %2175 = vmax.xlane.f32.xlu0 %v2174
      %v2176 = vpop.xlane.xlu0 %2175
      %v2177 = vsel %vm2002, %v1974, -inf
      %2178 = vmax.xlane.f32.xlu0 %v2177
      %v2179 = vpop.xlane.xlu0 %2178
      %v2180 = vsel %vm2002, %v1979, -inf
      %2181 = vmax.xlane.f32.xlu0 %v2180
      %v2182 = vpop.xlane.xlu0 %2181
      %v2183 = vsel %vm2002, %v1984, -inf
      %2184 = vmax.xlane.f32.xlu0 %v2183
      %v2185 = vpop.xlane.xlu0 %2184
      %v2186 = vsel %vm2002, %v1989, -inf
      %2187 = vmax.xlane.f32.xlu0 %v2186
      %v2188 = vpop.xlane.xlu0 %2187
      %v2189 = vsel %vm2002, %v1994, -inf
      %2190 = vmax.xlane.f32.xlu0 %v2189
      %v2191 = vpop.xlane.xlu0 %2190
      %v2192 = vsel %vm2002, %v1999, -inf
      %2193 = vmax.xlane.f32.xlu0 %v2192
      %v2194 = vpop.xlane.xlu0 %2193
      %v2195 = vsub.f32 %v1684, %v2005
      %v2196 = vsub.f32 %v1689, %v2008
      %v2197 = vsub.f32 %v1694, %v2011
      %v2198 = vsub.f32 %v1699, %v2014
      %v2199 = vsub.f32 %v1704, %v2017
      %v2200 = vsub.f32 %v1709, %v2020
      %v2201 = vsub.f32 %v1714, %v2023
      %v2202 = vsub.f32 %v1719, %v2026
      %v2203 = vsub.f32 %v1724, %v2029
      %v2204 = vsub.f32 %v1729, %v2032
      %v2205 = vsub.f32 %v1734, %v2035
      %v2206 = vsub.f32 %v1739, %v2038
      %v2207 = vsub.f32 %v1744, %v2041
      %v2208 = vsub.f32 %v1749, %v2044
      %v2209 = vsub.f32 %v1754, %v2047
      %v2210 = vsub.f32 %v1759, %v2050
      %v2211 = vsub.f32 %v1764, %v2053
      %v2212 = vsub.f32 %v1769, %v2056
      %v2213 = vsub.f32 %v1774, %v2059
      %v2214 = vsub.f32 %v1779, %v2062
      %v2215 = vsub.f32 %v1784, %v2065
      %v2216 = vsub.f32 %v1789, %v2068
      %v2217 = vsub.f32 %v1794, %v2071
      %v2218 = vsub.f32 %v1799, %v2074
      %v2219 = vsub.f32 %v1804, %v2077
      %v2220 = vsub.f32 %v1809, %v2080
      %v2221 = vsub.f32 %v1814, %v2083
      %v2222 = vsub.f32 %v1819, %v2086
      %v2223 = vsub.f32 %v1824, %v2089
      %v2224 = vsub.f32 %v1829, %v2092
      %v2225 = vsub.f32 %v1834, %v2095
      %v2226 = vsub.f32 %v1839, %v2098
      %v2227 = vsub.f32 %v1844, %v2101
      %v2228 = vsub.f32 %v1849, %v2104
      %v2229 = vsub.f32 %v1854, %v2107
      %v2230 = vsub.f32 %v1859, %v2110
      %v2231 = vsub.f32 %v1864, %v2113
      %v2232 = vsub.f32 %v1869, %v2116
      %v2233 = vsub.f32 %v1874, %v2119
      %v2234 = vsub.f32 %v1879, %v2122
      %v2235 = vsub.f32 %v1884, %v2125
      %v2236 = vsub.f32 %v1889, %v2128
      %v2237 = vsub.f32 %v1894, %v2131
      %v2238 = vsub.f32 %v1899, %v2134
      %v2239 = vsub.f32 %v1904, %v2137
      %v2240 = vsub.f32 %v1909, %v2140
      %v2241 = vsub.f32 %v1914, %v2143
      %v2242 = vsub.f32 %v1919, %v2146
      %v2243 = vsub.f32 %v1924, %v2149
      %v2244 = vsub.f32 %v1929, %v2152
      %v2245 = vsub.f32 %v1934, %v2155
      %v2246 = vsub.f32 %v1939, %v2158
      %v2247 = vsub.f32 %v1944, %v2161
      %v2248 = vsub.f32 %v1949, %v2164
      %v2249 = vsub.f32 %v1954, %v2167
      %v2250 = vsub.f32 %v1959, %v2170
      %v2251 = vsub.f32 %v1964, %v2173
      %v2252 = vsub.f32 %v1969, %v2176
      %v2253 = vsub.f32 %v1974, %v2179
      %v2254 = vsub.f32 %v1979, %v2182
      %v2255 = vsub.f32 %v1984, %v2185
      %v2256 = vsub.f32 %v1989, %v2188
      %v2257 = vsub.f32 %v1994, %v2191
      %v2258 = vsub.f32 %v1999, %v2194
      %v2259 = vmul.f32 %v2195, 1.442695
      %v2260 = vpow.pop %v2259
      %v2261 = vmul.f32 %v2196, 1.442695
      %v2262 = vpow.pop %v2261
      %v2263 = vmul.f32 %v2197, 1.442695
      %v2264 = vpow.pop %v2263
      %v2265 = vmul.f32 %v2198, 1.442695
      %v2266 = vpow.pop %v2265
      %v2267 = vmul.f32 %v2199, 1.442695
      %v2268 = vpow.pop %v2267
      %v2269 = vmul.f32 %v2200, 1.442695
      %v2270 = vpow.pop %v2269
      %v2271 = vmul.f32 %v2201, 1.442695
      %v2272 = vpow.pop %v2271
      %v2273 = vmul.f32 %v2202, 1.442695
      %v2274 = vpow.pop %v2273
      %v2275 = vmul.f32 %v2203, 1.442695
      %v2276 = vpow.pop %v2275
      %v2277 = vmul.f32 %v2204, 1.442695
      %v2278 = vpow.pop %v2277
      %v2279 = vmul.f32 %v2205, 1.442695
      %v2280 = vpow.pop %v2279
      %v2281 = vmul.f32 %v2206, 1.442695
      %v2282 = vpow.pop %v2281
      %v2283 = vmul.f32 %v2207, 1.442695
      %v2284 = vpow.pop %v2283
      %v2285 = vmul.f32 %v2208, 1.442695
      %v2286 = vpow.pop %v2285
      %v2287 = vmul.f32 %v2209, 1.442695
      %v2288 = vpow.pop %v2287
      %v2289 = vmul.f32 %v2210, 1.442695
      %v2290 = vpow.pop %v2289
      %v2291 = vmul.f32 %v2211, 1.442695
      %v2292 = vpow.pop %v2291
      %v2293 = vmul.f32 %v2212, 1.442695
      %v2294 = vpow.pop %v2293
      %v2295 = vmul.f32 %v2213, 1.442695
      %v2296 = vpow.pop %v2295
      %v2297 = vmul.f32 %v2214, 1.442695
      %v2298 = vpow.pop %v2297
      %v2299 = vmul.f32 %v2215, 1.442695
      %v2300 = vpow.pop %v2299
      %v2301 = vmul.f32 %v2216, 1.442695
      %v2302 = vpow.pop %v2301
      %v2303 = vmul.f32 %v2217, 1.442695
      %v2304 = vpow.pop %v2303
      %v2305 = vmul.f32 %v2218, 1.442695
      %v2306 = vpow.pop %v2305
      %v2307 = vmul.f32 %v2219, 1.442695
      %v2308 = vpow.pop %v2307
      %v2309 = vmul.f32 %v2220, 1.442695
      %v2310 = vpow.pop %v2309
      %v2311 = vmul.f32 %v2221, 1.442695
      %v2312 = vpow.pop %v2311
      %v2313 = vmul.f32 %v2222, 1.442695
      %v2314 = vpow.pop %v2313
      %v2315 = vmul.f32 %v2223, 1.442695
      %v2316 = vpow.pop %v2315
      %v2317 = vmul.f32 %v2224, 1.442695
      %v2318 = vpow.pop %v2317
      %v2319 = vmul.f32 %v2225, 1.442695
      %v2320 = vpow.pop %v2319
      %v2321 = vmul.f32 %v2226, 1.442695
      %v2322 = vpow.pop %v2321
      %v2323 = vmul.f32 %v2227, 1.442695
      %v2324 = vpow.pop %v2323
      %v2325 = vmul.f32 %v2228, 1.442695
      %v2326 = vpow.pop %v2325
      %v2327 = vmul.f32 %v2229, 1.442695
      %v2328 = vpow.pop %v2327
      %v2329 = vmul.f32 %v2230, 1.442695
      %v2330 = vpow.pop %v2329
      %v2331 = vmul.f32 %v2231, 1.442695
      %v2332 = vpow.pop %v2331
      %v2333 = vmul.f32 %v2232, 1.442695
      %v2334 = vpow.pop %v2333
      %v2335 = vmul.f32 %v2233, 1.442695
      %v2336 = vpow.pop %v2335
      %v2337 = vmul.f32 %v2234, 1.442695
      %v2338 = vpow.pop %v2337
      %v2339 = vmul.f32 %v2235, 1.442695
      %v2340 = vpow.pop %v2339
      %v2341 = vmul.f32 %v2236, 1.442695
      %v2342 = vpow.pop %v2341
      %v2343 = vmul.f32 %v2237, 1.442695
      %v2344 = vpow.pop %v2343
      %v2345 = vmul.f32 %v2238, 1.442695
      %v2346 = vpow.pop %v2345
      %v2347 = vmul.f32 %v2239, 1.442695
      %v2348 = vpow.pop %v2347
      %v2349 = vmul.f32 %v2240, 1.442695
      %v2350 = vpow.pop %v2349
      %v2351 = vmul.f32 %v2241, 1.442695
      %v2352 = vpow.pop %v2351
      %v2353 = vmul.f32 %v2242, 1.442695
      %v2354 = vpow.pop %v2353
      %v2355 = vmul.f32 %v2243, 1.442695
      %v2356 = vpow.pop %v2355
      %v2357 = vmul.f32 %v2244, 1.442695
      %v2358 = vpow.pop %v2357
      %v2359 = vmul.f32 %v2245, 1.442695
      %v2360 = vpow.pop %v2359
      %v2361 = vmul.f32 %v2246, 1.442695
      %v2362 = vpow.pop %v2361
      %v2363 = vmul.f32 %v2247, 1.442695
      %v2364 = vpow.pop %v2363
      %v2365 = vmul.f32 %v2248, 1.442695
      %v2366 = vpow.pop %v2365
      %v2367 = vmul.f32 %v2249, 1.442695
      %v2368 = vpow.pop %v2367
      %v2369 = vmul.f32 %v2250, 1.442695
      %v2370 = vpow.pop %v2369
      %v2371 = vmul.f32 %v2251, 1.442695
      %v2372 = vpow.pop %v2371
      %v2373 = vmul.f32 %v2252, 1.442695
      %v2374 = vpow.pop %v2373
      %v2375 = vmul.f32 %v2253, 1.442695
      %v2376 = vpow.pop %v2375
      %v2377 = vmul.f32 %v2254, 1.442695
      %v2378 = vpow.pop %v2377
      %v2379 = vmul.f32 %v2255, 1.442695
      %v2380 = vpow.pop %v2379
      %v2381 = vmul.f32 %v2256, 1.442695
      %v2382 = vpow.pop %v2381
      %v2383 = vmul.f32 %v2257, 1.442695
      %v2384 = vpow.pop %v2383
      %v2385 = vmul.f32 %v2258, 1.442695
      %v2386 = vpow.pop %v2385
      %v2387 = vsel %vm2002, %v2260, 0.0
      %2388 = vadd.xlane.f32.xlu0 %v2387
      %v2389 = vpop.xlane.xlu0 %2388
      %v2390 = vsel %vm2002, %v2262, 0.0
      %2391 = vadd.xlane.f32.xlu0 %v2390
      %v2392 = vpop.xlane.xlu0 %2391
      %v2393 = vsel %vm2002, %v2264, 0.0
      %2394 = vadd.xlane.f32.xlu0 %v2393
      %v2395 = vpop.xlane.xlu0 %2394
      %v2396 = vsel %vm2002, %v2266, 0.0
      %2397 = vadd.xlane.f32.xlu0 %v2396
      %v2398 = vpop.xlane.xlu0 %2397
      %v2399 = vsel %vm2002, %v2268, 0.0
      %2400 = vadd.xlane.f32.xlu0 %v2399
      %v2401 = vpop.xlane.xlu0 %2400
      %v2402 = vsel %vm2002, %v2270, 0.0
      %2403 = vadd.xlane.f32.xlu0 %v2402
      %v2404 = vpop.xlane.xlu0 %2403
      %v2405 = vsel %vm2002, %v2272, 0.0
      %2406 = vadd.xlane.f32.xlu0 %v2405
      %v2407 = vpop.xlane.xlu0 %2406
      %v2408 = vsel %vm2002, %v2274, 0.0
      %2409 = vadd.xlane.f32.xlu0 %v2408
      %v2410 = vpop.xlane.xlu0 %2409
      %v2411 = vsel %vm2002, %v2276, 0.0
      %2412 = vadd.xlane.f32.xlu0 %v2411
      %v2413 = vpop.xlane.xlu0 %2412
      %v2414 = vsel %vm2002, %v2278, 0.0
      %2415 = vadd.xlane.f32.xlu0 %v2414
      %v2416 = vpop.xlane.xlu0 %2415
      %v2417 = vsel %vm2002, %v2280, 0.0
      %2418 = vadd.xlane.f32.xlu0 %v2417
      %v2419 = vpop.xlane.xlu0 %2418
      %v2420 = vsel %vm2002, %v2282, 0.0
      %2421 = vadd.xlane.f32.xlu0 %v2420
      %v2422 = vpop.xlane.xlu0 %2421
      %v2423 = vsel %vm2002, %v2284, 0.0
      %2424 = vadd.xlane.f32.xlu0 %v2423
      %v2425 = vpop.xlane.xlu0 %2424
      %v2426 = vsel %vm2002, %v2286, 0.0
      %2427 = vadd.xlane.f32.xlu0 %v2426
      %v2428 = vpop.xlane.xlu0 %2427
      %v2429 = vsel %vm2002, %v2288, 0.0
      %2430 = vadd.xlane.f32.xlu0 %v2429
      %v2431 = vpop.xlane.xlu0 %2430
      %v2432 = vsel %vm2002, %v2290, 0.0
      %2433 = vadd.xlane.f32.xlu0 %v2432
      %v2434 = vpop.xlane.xlu0 %2433
      %v2435 = vsel %vm2002, %v2292, 0.0
      %2436 = vadd.xlane.f32.xlu0 %v2435
      %v2437 = vpop.xlane.xlu0 %2436
      %v2438 = vsel %vm2002, %v2294, 0.0
      %2439 = vadd.xlane.f32.xlu0 %v2438
      %v2440 = vpop.xlane.xlu0 %2439
      %v2441 = vsel %vm2002, %v2296, 0.0
      %2442 = vadd.xlane.f32.xlu0 %v2441
      %v2443 = vpop.xlane.xlu0 %2442
      %v2444 = vsel %vm2002, %v2298, 0.0
      %2445 = vadd.xlane.f32.xlu0 %v2444
      %v2446 = vpop.xlane.xlu0 %2445
      %v2447 = vsel %vm2002, %v2300, 0.0
      %2448 = vadd.xlane.f32.xlu0 %v2447
      %v2449 = vpop.xlane.xlu0 %2448
      %v2450 = vsel %vm2002, %v2302, 0.0
      %2451 = vadd.xlane.f32.xlu0 %v2450
      %v2452 = vpop.xlane.xlu0 %2451
      %v2453 = vsel %vm2002, %v2304, 0.0
      %2454 = vadd.xlane.f32.xlu0 %v2453
      %v2455 = vpop.xlane.xlu0 %2454
      %v2456 = vsel %vm2002, %v2306, 0.0
      %2457 = vadd.xlane.f32.xlu0 %v2456
      %v2458 = vpop.xlane.xlu0 %2457
      %v2459 = vsel %vm2002, %v2308, 0.0
      %2460 = vadd.xlane.f32.xlu0 %v2459
      %v2461 = vpop.xlane.xlu0 %2460
      %v2462 = vsel %vm2002, %v2310, 0.0
      %2463 = vadd.xlane.f32.xlu0 %v2462
      %v2464 = vpop.xlane.xlu0 %2463
      %v2465 = vsel %vm2002, %v2312, 0.0
      %2466 = vadd.xlane.f32.xlu0 %v2465
      %v2467 = vpop.xlane.xlu0 %2466
      %v2468 = vsel %vm2002, %v2314, 0.0
      %2469 = vadd.xlane.f32.xlu0 %v2468
      %v2470 = vpop.xlane.xlu0 %2469
      %v2471 = vsel %vm2002, %v2316, 0.0
      %2472 = vadd.xlane.f32.xlu0 %v2471
      %v2473 = vpop.xlane.xlu0 %2472
      %v2474 = vsel %vm2002, %v2318, 0.0
      %2475 = vadd.xlane.f32.xlu0 %v2474
      %v2476 = vpop.xlane.xlu0 %2475
      %v2477 = vsel %vm2002, %v2320, 0.0
      %2478 = vadd.xlane.f32.xlu0 %v2477
      %v2479 = vpop.xlane.xlu0 %2478
      %v2480 = vsel %vm2002, %v2322, 0.0
      %2481 = vadd.xlane.f32.xlu0 %v2480
      %v2482 = vpop.xlane.xlu0 %2481
      %v2483 = vsel %vm2002, %v2324, 0.0
      %2484 = vadd.xlane.f32.xlu0 %v2483
      %v2485 = vpop.xlane.xlu0 %2484
      %v2486 = vsel %vm2002, %v2326, 0.0
      %2487 = vadd.xlane.f32.xlu0 %v2486
      %v2488 = vpop.xlane.xlu0 %2487
      %v2489 = vsel %vm2002, %v2328, 0.0
      %2490 = vadd.xlane.f32.xlu0 %v2489
      %v2491 = vpop.xlane.xlu0 %2490
      %v2492 = vsel %vm2002, %v2330, 0.0
      %2493 = vadd.xlane.f32.xlu0 %v2492
      %v2494 = vpop.xlane.xlu0 %2493
      %v2495 = vsel %vm2002, %v2332, 0.0
      %2496 = vadd.xlane.f32.xlu0 %v2495
      %v2497 = vpop.xlane.xlu0 %2496
      %v2498 = vsel %vm2002, %v2334, 0.0
      %2499 = vadd.xlane.f32.xlu0 %v2498
      %v2500 = vpop.xlane.xlu0 %2499
      %v2501 = vsel %vm2002, %v2336, 0.0
      %2502 = vadd.xlane.f32.xlu0 %v2501
      %v2503 = vpop.xlane.xlu0 %2502
      %v2504 = vsel %vm2002, %v2338, 0.0
      %2505 = vadd.xlane.f32.xlu0 %v2504
      %v2506 = vpop.xlane.xlu0 %2505
      %v2507 = vsel %vm2002, %v2340, 0.0
      %2508 = vadd.xlane.f32.xlu0 %v2507
      %v2509 = vpop.xlane.xlu0 %2508
      %v2510 = vsel %vm2002, %v2342, 0.0
      %2511 = vadd.xlane.f32.xlu0 %v2510
      %v2512 = vpop.xlane.xlu0 %2511
      %v2513 = vsel %vm2002, %v2344, 0.0
      %2514 = vadd.xlane.f32.xlu0 %v2513
      %v2515 = vpop.xlane.xlu0 %2514
      %v2516 = vsel %vm2002, %v2346, 0.0
      %2517 = vadd.xlane.f32.xlu0 %v2516
      %v2518 = vpop.xlane.xlu0 %2517
      %v2519 = vsel %vm2002, %v2348, 0.0
      %2520 = vadd.xlane.f32.xlu0 %v2519
      %v2521 = vpop.xlane.xlu0 %2520
      %v2522 = vsel %vm2002, %v2350, 0.0
      %2523 = vadd.xlane.f32.xlu0 %v2522
      %v2524 = vpop.xlane.xlu0 %2523
      %v2525 = vsel %vm2002, %v2352, 0.0
      %2526 = vadd.xlane.f32.xlu0 %v2525
      %v2527 = vpop.xlane.xlu0 %2526
      %v2528 = vsel %vm2002, %v2354, 0.0
      %2529 = vadd.xlane.f32.xlu0 %v2528
      %v2530 = vpop.xlane.xlu0 %2529
      %v2531 = vsel %vm2002, %v2356, 0.0
      %2532 = vadd.xlane.f32.xlu0 %v2531
      %v2533 = vpop.xlane.xlu0 %2532
      %v2534 = vsel %vm2002, %v2358, 0.0
      %2535 = vadd.xlane.f32.xlu0 %v2534
      %v2536 = vpop.xlane.xlu0 %2535
      %v2537 = vsel %vm2002, %v2360, 0.0
      %2538 = vadd.xlane.f32.xlu0 %v2537
      %v2539 = vpop.xlane.xlu0 %2538
      %v2540 = vsel %vm2002, %v2362, 0.0
      %2541 = vadd.xlane.f32.xlu0 %v2540
      %v2542 = vpop.xlane.xlu0 %2541
      %v2543 = vsel %vm2002, %v2364, 0.0
      %2544 = vadd.xlane.f32.xlu0 %v2543
      %v2545 = vpop.xlane.xlu0 %2544
      %v2546 = vsel %vm2002, %v2366, 0.0
      %2547 = vadd.xlane.f32.xlu0 %v2546
      %v2548 = vpop.xlane.xlu0 %2547
      %v2549 = vsel %vm2002, %v2368, 0.0
      %2550 = vadd.xlane.f32.xlu0 %v2549
      %v2551 = vpop.xlane.xlu0 %2550
      %v2552 = vsel %vm2002, %v2370, 0.0
      %2553 = vadd.xlane.f32.xlu0 %v2552
      %v2554 = vpop.xlane.xlu0 %2553
      %v2555 = vsel %vm2002, %v2372, 0.0
      %2556 = vadd.xlane.f32.xlu0 %v2555
      %v2557 = vpop.xlane.xlu0 %2556
      %v2558 = vsel %vm2002, %v2374, 0.0
      %2559 = vadd.xlane.f32.xlu0 %v2558
      %v2560 = vpop.xlane.xlu0 %2559
      %v2561 = vsel %vm2002, %v2376, 0.0
      %2562 = vadd.xlane.f32.xlu0 %v2561
      %v2563 = vpop.xlane.xlu0 %2562
      %v2564 = vsel %vm2002, %v2378, 0.0
      %2565 = vadd.xlane.f32.xlu0 %v2564
      %v2566 = vpop.xlane.xlu0 %2565
      %v2567 = vsel %vm2002, %v2380, 0.0
      %2568 = vadd.xlane.f32.xlu0 %v2567
      %v2569 = vpop.xlane.xlu0 %2568
      %v2570 = vsel %vm2002, %v2382, 0.0
      %2571 = vadd.xlane.f32.xlu0 %v2570
      %v2572 = vpop.xlane.xlu0 %2571
      %v2573 = vsel %vm2002, %v2384, 0.0
      %2574 = vadd.xlane.f32.xlu0 %v2573
      %v2575 = vpop.xlane.xlu0 %2574
      %v2576 = vsel %vm2002, %v2386, 0.0
      %2577 = vadd.xlane.f32.xlu0 %v2576
      %v2578 = vpop.xlane.xlu0 %2577
      %v2579 = vrcp.pop %v2389
      %v2580 = vrcp.pop %v2392
      %v2581 = vrcp.pop %v2395
      %v2582 = vrcp.pop %v2398
      %v2583 = vrcp.pop %v2401
      %v2584 = vrcp.pop %v2404
      %v2585 = vrcp.pop %v2407
      %v2586 = vrcp.pop %v2410
      %v2587 = vrcp.pop %v2413
      %v2588 = vrcp.pop %v2416
      %v2589 = vrcp.pop %v2419
      %v2590 = vrcp.pop %v2422
      %v2591 = vrcp.pop %v2425
      %v2592 = vrcp.pop %v2428
      %v2593 = vrcp.pop %v2431
      %v2594 = vrcp.pop %v2434
      %v2595 = vrcp.pop %v2437
      %v2596 = vrcp.pop %v2440
      %v2597 = vrcp.pop %v2443
      %v2598 = vrcp.pop %v2446
      %v2599 = vrcp.pop %v2449
      %v2600 = vrcp.pop %v2452
      %v2601 = vrcp.pop %v2455
      %v2602 = vrcp.pop %v2458
      %v2603 = vrcp.pop %v2461
      %v2604 = vrcp.pop %v2464
      %v2605 = vrcp.pop %v2467
      %v2606 = vrcp.pop %v2470
      %v2607 = vrcp.pop %v2473
      %v2608 = vrcp.pop %v2476
      %v2609 = vrcp.pop %v2479
      %v2610 = vrcp.pop %v2482
      %v2611 = vrcp.pop %v2485
      %v2612 = vrcp.pop %v2488
      %v2613 = vrcp.pop %v2491
      %v2614 = vrcp.pop %v2494
      %v2615 = vrcp.pop %v2497
      %v2616 = vrcp.pop %v2500
      %v2617 = vrcp.pop %v2503
      %v2618 = vrcp.pop %v2506
      %v2619 = vrcp.pop %v2509
      %v2620 = vrcp.pop %v2512
      %v2621 = vrcp.pop %v2515
      %v2622 = vrcp.pop %v2518
      %v2623 = vrcp.pop %v2521
      %v2624 = vrcp.pop %v2524
      %v2625 = vrcp.pop %v2527
      %v2626 = vrcp.pop %v2530
      %v2627 = vrcp.pop %v2533
      %v2628 = vrcp.pop %v2536
      %v2629 = vrcp.pop %v2539
      %v2630 = vrcp.pop %v2542
      %v2631 = vrcp.pop %v2545
      %v2632 = vrcp.pop %v2548
      %v2633 = vrcp.pop %v2551
      %v2634 = vrcp.pop %v2554
      %v2635 = vrcp.pop %v2557
      %v2636 = vrcp.pop %v2560
      %v2637 = vrcp.pop %v2563
      %v2638 = vrcp.pop %v2566
      %v2639 = vrcp.pop %v2569
      %v2640 = vrcp.pop %v2572
      %v2641 = vrcp.pop %v2575
      %v2642 = vrcp.pop %v2578
      %v2643 = vmul.f32 %v2260, %v2579
      %v2644 = vmul.f32 %v2262, %v2580
      %v2645 = vmul.f32 %v2264, %v2581
      %v2646 = vmul.f32 %v2266, %v2582
      %v2647 = vmul.f32 %v2268, %v2583
      %v2648 = vmul.f32 %v2270, %v2584
      %v2649 = vmul.f32 %v2272, %v2585
      %v2650 = vmul.f32 %v2274, %v2586
      %v2651 = vmul.f32 %v2276, %v2587
      %v2652 = vmul.f32 %v2278, %v2588
      %v2653 = vmul.f32 %v2280, %v2589
      %v2654 = vmul.f32 %v2282, %v2590
      %v2655 = vmul.f32 %v2284, %v2591
      %v2656 = vmul.f32 %v2286, %v2592
      %v2657 = vmul.f32 %v2288, %v2593
      %v2658 = vmul.f32 %v2290, %v2594
      %v2659 = vmul.f32 %v2292, %v2595
      %v2660 = vmul.f32 %v2294, %v2596
      %v2661 = vmul.f32 %v2296, %v2597
      %v2662 = vmul.f32 %v2298, %v2598
      %v2663 = vmul.f32 %v2300, %v2599
      %v2664 = vmul.f32 %v2302, %v2600
      %v2665 = vmul.f32 %v2304, %v2601
      %v2666 = vmul.f32 %v2306, %v2602
      %v2667 = vmul.f32 %v2308, %v2603
      %v2668 = vmul.f32 %v2310, %v2604
      %v2669 = vmul.f32 %v2312, %v2605
      %v2670 = vmul.f32 %v2314, %v2606
      %v2671 = vmul.f32 %v2316, %v2607
      %v2672 = vmul.f32 %v2318, %v2608
      %v2673 = vmul.f32 %v2320, %v2609
      %v2674 = vmul.f32 %v2322, %v2610
      %v2675 = vmul.f32 %v2324, %v2611
      %v2676 = vmul.f32 %v2326, %v2612
      %v2677 = vmul.f32 %v2328, %v2613
      %v2678 = vmul.f32 %v2330, %v2614
      %v2679 = vmul.f32 %v2332, %v2615
      %v2680 = vmul.f32 %v2334, %v2616
      %v2681 = vmul.f32 %v2336, %v2617
      %v2682 = vmul.f32 %v2338, %v2618
      %v2683 = vmul.f32 %v2340, %v2619
      %v2684 = vmul.f32 %v2342, %v2620
      %v2685 = vmul.f32 %v2344, %v2621
      %v2686 = vmul.f32 %v2346, %v2622
      %v2687 = vmul.f32 %v2348, %v2623
      %v2688 = vmul.f32 %v2350, %v2624
      %v2689 = vmul.f32 %v2352, %v2625
      %v2690 = vmul.f32 %v2354, %v2626
      %v2691 = vmul.f32 %v2356, %v2627
      %v2692 = vmul.f32 %v2358, %v2628
      %v2693 = vmul.f32 %v2360, %v2629
      %v2694 = vmul.f32 %v2362, %v2630
      %v2695 = vmul.f32 %v2364, %v2631
      %v2696 = vmul.f32 %v2366, %v2632
      %v2697 = vmul.f32 %v2368, %v2633
      %v2698 = vmul.f32 %v2370, %v2634
      %v2699 = vmul.f32 %v2372, %v2635
      %v2700 = vmul.f32 %v2374, %v2636
      %v2701 = vmul.f32 %v2376, %v2637
      %v2702 = vmul.f32 %v2378, %v2638
      %v2703 = vmul.f32 %v2380, %v2639
      %v2704 = vmul.f32 %v2382, %v2640
      %v2705 = vmul.f32 %v2384, %v2641
      %v2706 = vmul.f32 %v2386, %v2642
      %2707 = vrot.lane.b32.xlu0 %v1219, 64
      %v2708 = vpop.permute.xlu0 %2707
      %2709 = vrot.lane.b32.xlu0 %v1224, 64
      %v2710 = vpop.permute.xlu0 %2709
      %2711 = vrot.lane.b32.xlu0 %v1229, 64
      %v2712 = vpop.permute.xlu0 %2711
      %2713 = vrot.lane.b32.xlu0 %v1234, 64
      %v2714 = vpop.permute.xlu0 %2713
      %2715 = vrot.lane.b32.xlu0 %v1239, 64
      %v2716 = vpop.permute.xlu0 %2715
      %2717 = vrot.lane.b32.xlu0 %v1244, 64
      %v2718 = vpop.permute.xlu0 %2717
      %2719 = vrot.lane.b32.xlu0 %v1249, 64
      %v2720 = vpop.permute.xlu0 %2719
      %2721 = vrot.lane.b32.xlu0 %v1254, 64
      %v2722 = vpop.permute.xlu0 %2721
      %v2732 = vsel %vm2002, %v2643, 0
      %v2735 = vsel %vm2002, %v2644, 0
      %v2738 = vsel %vm2002, %v2645, 0
      %v2741 = vsel %vm2002, %v2646, 0
      %v2744 = vsel %vm2002, %v2647, 0
      %v2747 = vsel %vm2002, %v2648, 0
      %v2750 = vsel %vm2002, %v2649, 0
      %v2753 = vsel %vm2002, %v2650, 0
      %v2756 = vsel %vm2002, %v2651, 0
      %v2759 = vsel %vm2002, %v2652, 0
      %v2762 = vsel %vm2002, %v2653, 0
      %v2765 = vsel %vm2002, %v2654, 0
      %v2768 = vsel %vm2002, %v2655, 0
      %v2771 = vsel %vm2002, %v2656, 0
      %v2774 = vsel %vm2002, %v2657, 0
      %v2777 = vsel %vm2002, %v2658, 0
      %v2780 = vsel %vm2002, %v2659, 0
      %v2783 = vsel %vm2002, %v2660, 0
      %v2786 = vsel %vm2002, %v2661, 0
      %v2789 = vsel %vm2002, %v2662, 0
      %v2792 = vsel %vm2002, %v2663, 0
      %v2795 = vsel %vm2002, %v2664, 0
      %v2798 = vsel %vm2002, %v2665, 0
      %v2801 = vsel %vm2002, %v2666, 0
      %v2804 = vsel %vm2002, %v2667, 0
      %v2807 = vsel %vm2002, %v2668, 0
      %v2810 = vsel %vm2002, %v2669, 0
      %v2813 = vsel %vm2002, %v2670, 0
      %v2816 = vsel %vm2002, %v2671, 0
      %v2819 = vsel %vm2002, %v2672, 0
      %v2822 = vsel %vm2002, %v2673, 0
      %v2825 = vsel %vm2002, %v2674, 0
      %v2828 = vsel %vm2002, %v2675, 0
      %v2831 = vsel %vm2002, %v2676, 0
      %v2834 = vsel %vm2002, %v2677, 0
      %v2837 = vsel %vm2002, %v2678, 0
      %v2840 = vsel %vm2002, %v2679, 0
      %v2843 = vsel %vm2002, %v2680, 0
      %v2846 = vsel %vm2002, %v2681, 0
      %v2849 = vsel %vm2002, %v2682, 0
      %v2852 = vsel %vm2002, %v2683, 0
      %v2855 = vsel %vm2002, %v2684, 0
      %v2858 = vsel %vm2002, %v2685, 0
      %v2861 = vsel %vm2002, %v2686, 0
      %v2864 = vsel %vm2002, %v2687, 0
      %v2867 = vsel %vm2002, %v2688, 0
      %v2870 = vsel %vm2002, %v2689, 0
      %v2873 = vsel %vm2002, %v2690, 0
      %v2876 = vsel %vm2002, %v2691, 0
      %v2879 = vsel %vm2002, %v2692, 0
      %v2882 = vsel %vm2002, %v2693, 0
      %v2885 = vsel %vm2002, %v2694, 0
      %v2888 = vsel %vm2002, %v2695, 0
      %v2891 = vsel %vm2002, %v2696, 0
      %v2894 = vsel %vm2002, %v2697, 0
      %v2897 = vsel %vm2002, %v2698, 0
      %v2900 = vsel %vm2002, %v2699, 0
      %v2903 = vsel %vm2002, %v2700, 0
      %v2906 = vsel %vm2002, %v2701, 0
      %v2909 = vsel %vm2002, %v2702, 0
      %v2912 = vsel %vm2002, %v2703, 0
      %v2915 = vsel %vm2002, %v2704, 0
      %v2918 = vsel %vm2002, %v2705, 0
      %v2921 = vsel %vm2002, %v2706, 0
      %2923 = vmatprep.subr.mxu0 0.0
      %2924 = vmatpush1.msra.mxu0 %v2708
      %2925 = vmatprep.subr.mxu0 0.0
      %2926 = vmatpush1.msra.mxu0 %v2710
      %2927 = vmatprep.subr.mxu0 0.0
      %2928 = vmatpush1.msra.mxu0 %v2712
      %2929 = vmatprep.subr.mxu0 0.0
      %2930 = vmatpush1.msra.mxu0 %v2714
      %2931 = vmatprep.subr.mxu0 0.0
      %2932 = vmatpush1.msra.mxu0 %v2716
      %2933 = vmatprep.subr.mxu0 0.0
      %2934 = vmatpush1.msra.mxu0 %v2718
      %2935 = vmatprep.subr.mxu0 0.0
      %2936 = vmatpush1.msra.mxu0 %v2720
      %2937 = vmatprep.subr.mxu0 0.0
      %2938 = vmatpush1.msra.mxu0 %v2722
      %2939 = vmatprep.subr.mxu0 0.0
      %2940 = vmatpush1.msra.mxu0 0.0
      %2941 = vmatprep.subr.mxu0 0.0
      %2942 = vmatpush1.msra.mxu0 0.0
      %2943 = vmatprep.subr.mxu0 0.0
      %2944 = vmatpush1.msra.mxu0 0.0
      %2945 = vmatprep.subr.mxu0 0.0
      %2946 = vmatpush1.msra.mxu0 0.0
      %2947 = vmatprep.subr.mxu0 0.0
      %2948 = vmatpush1.msra.mxu0 0.0
      %2949 = vmatprep.subr.mxu0 0.0
      %2950 = vmatpush1.msra.mxu0 0.0
      %2951 = vmatprep.subr.mxu0 0.0
      %2952 = vmatpush1.msra.mxu0 0.0
      %2953 = vmatprep.subr.mxu0 0.0
      %2954 = vmatpush1.msra.mxu0 0.0
      %2955 = vmatprep.subr.mxu0 0.0
      %2956 = vmatpush1.msra.mxu0 0.0
      %2957 = vmatprep.subr.mxu0 0.0
      %2958 = vmatpush1.msra.mxu0 0.0
      %2959 = vmatprep.subr.mxu0 0.0
      %2960 = vmatpush1.msra.mxu0 0.0
      %2961 = vmatprep.subr.mxu0 0.0
      %2962 = vmatpush1.msra.mxu0 0.0
      %2963 = vmatprep.subr.mxu0 0.0
      %2964 = vmatpush1.msra.mxu0 0.0
      %2965 = vmatprep.subr.mxu0 0.0
      %2966 = vmatpush1.msra.mxu0 0.0
      %2967 = vmatprep.subr.mxu0 0.0
      %2968 = vmatpush1.msra.mxu0 0.0
      %2969 = vmatprep.subr.mxu0 0.0
      %2970 = vmatpush1.msra.mxu0 0.0
      %2971 = vmatprep.subr.mxu0 0.0
      %2972 = vmatpush1.msra.mxu0 0.0
      %2973 = vmatprep.subr.mxu0 0.0
      %2974 = vmatpush1.msra.mxu0 0.0
      %2975 = vmatprep.subr.mxu0 0.0
      %2976 = vmatpush1.msra.mxu0 0.0
      %2977 = vmatprep.subr.mxu0 0.0
      %2978 = vmatpush1.msra.mxu0 0.0
      %2979 = vmatprep.subr.mxu0 0.0
      %2980 = vmatpush1.msra.mxu0 0.0
      %2981 = vmatprep.subr.mxu0 0.0
      %2982 = vmatpush1.msra.mxu0 0.0
      %2983 = vmatprep.subr.mxu0 0.0
      %2984 = vmatpush1.msra.mxu0 0.0
      %2985 = vmatprep.subr.mxu0 0.0
      %2986 = vmatpush1.msra.mxu0 0.0
      %2987 = vmatprep.mubr.f32.mxu0 0.0
      %2988 = vmatmul.mubr.f32.gmra.mrb[0].mxu0 %v2732
      %v2989 = vpop.f32.mrb[0].mxu0
      %v2990 = vadd.f32 0.0, %v2989
      %v2991 = vpop.f32.mrb[0].mxu0
      %2992 = vmatprep.mubr.f32.mxu0 0.0
      %2993 = vmatmul.mubr.f32.gmra.mrb[0].mxu0 %v2735
      %v2994 = vpop.f32.mrb[0].mxu0
      %v2995 = vadd.f32 0.0, %v2994
      %v2996 = vpop.f32.mrb[0].mxu0
      %2997 = vmatprep.mubr.f32.mxu0 0.0
      %2998 = vmatmul.mubr.f32.gmra.mrb[0].mxu0 %v2738
      %v2999 = vpop.f32.mrb[0].mxu0
      %v3000 = vadd.f32 0.0, %v2999
      %v3001 = vpop.f32.mrb[0].mxu0
      %3002 = vmatprep.mubr.f32.mxu0 0.0
      %3003 = vmatmul.mubr.f32.gmra.mrb[0].mxu0 %v2741
      %v3004 = vpop.f32.mrb[0].mxu0
      %v3005 = vadd.f32 0.0, %v3004
      %v3006 = vpop.f32.mrb[0].mxu0
      %3007 = vmatprep.mubr.f32.mxu0 0.0
      %3008 = vmatmul.mubr.f32.gmra.mrb[0].mxu0 %v2744
      %v3009 = vpop.f32.mrb[0].mxu0
      %v3010 = vadd.f32 0.0, %v3009
      %v3011 = vpop.f32.mrb[0].mxu0
      %3012 = vmatprep.mubr.f32.mxu0 0.0
      %3013 = vmatmul.mubr.f32.gmra.mrb[0].mxu0 %v2747
      %v3014 = vpop.f32.mrb[0].mxu0
      %v3015 = vadd.f32 0.0, %v3014
      %v3016 = vpop.f32.mrb[0].mxu0
      %3017 = vmatprep.mubr.f32.mxu0 0.0
      %3018 = vmatmul.mubr.f32.gmra.mrb[0].mxu0 %v2750
      %v3019 = vpop.f32.mrb[0].mxu0
      %v3020 = vadd.f32 0.0, %v3019
      %v3021 = vpop.f32.mrb[0].mxu0
      %3022 = vmatprep.mubr.f32.mxu0 0.0
      %3023 = vmatmul.mubr.f32.gmra.mrb[0].mxu0 %v2753
      %v3024 = vpop.f32.mrb[0].mxu0
      %v3025 = vadd.f32 0.0, %v3024
      %v3026 = vpop.f32.mrb[0].mxu0
      %3027 = vmatprep.mubr.f32.mxu0 0.0
      %3028 = vmatmul.mubr.f32.gmra.mrb[0].mxu0 %v2756
      %v3029 = vpop.f32.mrb[0].mxu0
      %v3030 = vadd.f32 0.0, %v3029
      %v3031 = vpop.f32.mrb[0].mxu0
      %3032 = vmatprep.mubr.f32.mxu0 0.0
      %3033 = vmatmul.mubr.f32.gmra.mrb[0].mxu0 %v2759
      %v3034 = vpop.f32.mrb[0].mxu0
      %v3035 = vadd.f32 0.0, %v3034
      %v3036 = vpop.f32.mrb[0].mxu0
      %3037 = vmatprep.mubr.f32.mxu0 0.0
      %3038 = vmatmul.mubr.f32.gmra.mrb[0].mxu0 %v2762
      %v3039 = vpop.f32.mrb[0].mxu0
      %v3040 = vadd.f32 0.0, %v3039
      %v3041 = vpop.f32.mrb[0].mxu0
      %3042 = vmatprep.mubr.f32.mxu0 0.0
      %3043 = vmatmul.mubr.f32.gmra.mrb[0].mxu0 %v2765
      %v3044 = vpop.f32.mrb[0].mxu0
      %v3045 = vadd.f32 0.0, %v3044
      %v3046 = vpop.f32.mrb[0].mxu0
      %3047 = vmatprep.mubr.f32.mxu0 0.0
      %3048 = vmatmul.mubr.f32.gmra.mrb[0].mxu0 %v2768
      %v3049 = vpop.f32.mrb[0].mxu0
      %v3050 = vadd.f32 0.0, %v3049
      %v3051 = vpop.f32.mrb[0].mxu0
      %3052 = vmatprep.mubr.f32.mxu0 0.0
      %3053 = vmatmul.mubr.f32.gmra.mrb[0].mxu0 %v2771
      %v3054 = vpop.f32.mrb[0].mxu0
      %v3055 = vadd.f32 0.0, %v3054
      %v3056 = vpop.f32.mrb[0].mxu0
      %3057 = vmatprep.mubr.f32.mxu0 0.0
      %3058 = vmatmul.mubr.f32.gmra.mrb[0].mxu0 %v2774
      %v3059 = vpop.f32.mrb[0].mxu0
      %v3060 = vadd.f32 0.0, %v3059
      %v3061 = vpop.f32.mrb[0].mxu0
      %3062 = vmatprep.mubr.f32.mxu0 0.0
      %3063 = vmatmul.mubr.f32.gmra.mrb[0].mxu0 %v2777
      %v3064 = vpop.f32.mrb[0].mxu0
      %v3065 = vadd.f32 0.0, %v3064
      %v3066 = vpop.f32.mrb[0].mxu0
      %3067 = vmatprep.mubr.f32.mxu0 0.0
      %3068 = vmatmul.mubr.f32.gmra.mrb[0].mxu0 %v2780
      %v3069 = vpop.f32.mrb[0].mxu0
      %v3070 = vadd.f32 0.0, %v3069
      %v3071 = vpop.f32.mrb[0].mxu0
      %3072 = vmatprep.mubr.f32.mxu0 0.0
      %3073 = vmatmul.mubr.f32.gmra.mrb[0].mxu0 %v2783
      %v3074 = vpop.f32.mrb[0].mxu0
      %v3075 = vadd.f32 0.0, %v3074
      %v3076 = vpop.f32.mrb[0].mxu0
      %3077 = vmatprep.mubr.f32.mxu0 0.0
      %3078 = vmatmul.mubr.f32.gmra.mrb[0].mxu0 %v2786
      %v3079 = vpop.f32.mrb[0].mxu0
      %v3080 = vadd.f32 0.0, %v3079
      %v3081 = vpop.f32.mrb[0].mxu0
      %3082 = vmatprep.mubr.f32.mxu0 0.0
      %3083 = vmatmul.mubr.f32.gmra.mrb[0].mxu0 %v2789
      %v3084 = vpop.f32.mrb[0].mxu0
      %v3085 = vadd.f32 0.0, %v3084
      %v3086 = vpop.f32.mrb[0].mxu0
      %3087 = vmatprep.mubr.f32.mxu0 0.0
      %3088 = vmatmul.mubr.f32.gmra.mrb[0].mxu0 %v2792
      %v3089 = vpop.f32.mrb[0].mxu0
      %v3090 = vadd.f32 0.0, %v3089
      %v3091 = vpop.f32.mrb[0].mxu0
      %3092 = vmatprep.mubr.f32.mxu0 0.0
      %3093 = vmatmul.mubr.f32.gmra.mrb[0].mxu0 %v2795
      %v3094 = vpop.f32.mrb[0].mxu0
      %v3095 = vadd.f32 0.0, %v3094
      %v3096 = vpop.f32.mrb[0].mxu0
      %3097 = vmatprep.mubr.f32.mxu0 0.0
      %3098 = vmatmul.mubr.f32.gmra.mrb[0].mxu0 %v2798
      %v3099 = vpop.f32.mrb[0].mxu0
      %v3100 = vadd.f32 0.0, %v3099
      %v3101 = vpop.f32.mrb[0].mxu0
      %3102 = vmatprep.mubr.f32.mxu0 0.0
      %3103 = vmatmul.mubr.f32.gmra.mrb[0].mxu0 %v2801
      %v3104 = vpop.f32.mrb[0].mxu0
      %v3105 = vadd.f32 0.0, %v3104
      %v3106 = vpop.f32.mrb[0].mxu0
      %3107 = vmatprep.mubr.f32.mxu0 0.0
      %3108 = vmatmul.mubr.f32.gmra.mrb[0].mxu0 %v2804
      %v3109 = vpop.f32.mrb[0].mxu0
      %v3110 = vadd.f32 0.0, %v3109
      %v3111 = vpop.f32.mrb[0].mxu0
      %3112 = vmatprep.mubr.f32.mxu0 0.0
      %3113 = vmatmul.mubr.f32.gmra.mrb[0].mxu0 %v2807
      %v3114 = vpop.f32.mrb[0].mxu0
      %v3115 = vadd.f32 0.0, %v3114
      %v3116 = vpop.f32.mrb[0].mxu0
      %3117 = vmatprep.mubr.f32.mxu0 0.0
      %3118 = vmatmul.mubr.f32.gmra.mrb[0].mxu0 %v2810
      %v3119 = vpop.f32.mrb[0].mxu0
      %v3120 = vadd.f32 0.0, %v3119
      %v3121 = vpop.f32.mrb[0].mxu0
      %3122 = vmatprep.mubr.f32.mxu0 0.0
      %3123 = vmatmul.mubr.f32.gmra.mrb[0].mxu0 %v2813
      %v3124 = vpop.f32.mrb[0].mxu0
      %v3125 = vadd.f32 0.0, %v3124
      %v3126 = vpop.f32.mrb[0].mxu0
      %3127 = vmatprep.mubr.f32.mxu0 0.0
      %3128 = vmatmul.mubr.f32.gmra.mrb[0].mxu0 %v2816
      %v3129 = vpop.f32.mrb[0].mxu0
      %v3130 = vadd.f32 0.0, %v3129
      %v3131 = vpop.f32.mrb[0].mxu0
      %3132 = vmatprep.mubr.f32.mxu0 0.0
      %3133 = vmatmul.mubr.f32.gmra.mrb[0].mxu0 %v2819
      %v3134 = vpop.f32.mrb[0].mxu0
      %v3135 = vadd.f32 0.0, %v3134
      %v3136 = vpop.f32.mrb[0].mxu0
      %3137 = vmatprep.mubr.f32.mxu0 0.0
      %3138 = vmatmul.mubr.f32.gmra.mrb[0].mxu0 %v2822
      %v3139 = vpop.f32.mrb[0].mxu0
      %v3140 = vadd.f32 0.0, %v3139
      %v3141 = vpop.f32.mrb[0].mxu0
      %3142 = vmatprep.mubr.f32.mxu0 0.0
      %3143 = vmatmul.mubr.f32.gmra.mrb[0].mxu0 %v2825
      %v3144 = vpop.f32.mrb[0].mxu0
      %v3145 = vadd.f32 0.0, %v3144
      %v3146 = vpop.f32.mrb[0].mxu0
      %3147 = vmatprep.mubr.f32.mxu0 0.0
      %3148 = vmatmul.mubr.f32.gmra.mrb[0].mxu0 %v2828
      %v3149 = vpop.f32.mrb[0].mxu0
      %v3150 = vadd.f32 0.0, %v3149
      %v3151 = vpop.f32.mrb[0].mxu0
      %3152 = vmatprep.mubr.f32.mxu0 0.0
      %3153 = vmatmul.mubr.f32.gmra.mrb[0].mxu0 %v2831
      %v3154 = vpop.f32.mrb[0].mxu0
      %v3155 = vadd.f32 0.0, %v3154
      %v3156 = vpop.f32.mrb[0].mxu0
      %3157 = vmatprep.mubr.f32.mxu0 0.0
      %3158 = vmatmul.mubr.f32.gmra.mrb[0].mxu0 %v2834
      %v3159 = vpop.f32.mrb[0].mxu0
      %v3160 = vadd.f32 0.0, %v3159
      %v3161 = vpop.f32.mrb[0].mxu0
      %3162 = vmatprep.mubr.f32.mxu0 0.0
      %3163 = vmatmul.mubr.f32.gmra.mrb[0].mxu0 %v2837
      %v3164 = vpop.f32.mrb[0].mxu0
      %v3165 = vadd.f32 0.0, %v3164
      %v3166 = vpop.f32.mrb[0].mxu0
      %3167 = vmatprep.mubr.f32.mxu0 0.0
      %3168 = vmatmul.mubr.f32.gmra.mrb[0].mxu0 %v2840
      %v3169 = vpop.f32.mrb[0].mxu0
      %v3170 = vadd.f32 0.0, %v3169
      %v3171 = vpop.f32.mrb[0].mxu0
      %3172 = vmatprep.mubr.f32.mxu0 0.0
      %3173 = vmatmul.mubr.f32.gmra.mrb[0].mxu0 %v2843
      %v3174 = vpop.f32.mrb[0].mxu0
      %v3175 = vadd.f32 0.0, %v3174
      %v3176 = vpop.f32.mrb[0].mxu0
      %3177 = vmatprep.mubr.f32.mxu0 0.0
      %3178 = vmatmul.mubr.f32.gmra.mrb[0].mxu0 %v2846
      %v3179 = vpop.f32.mrb[0].mxu0
      %v3180 = vadd.f32 0.0, %v3179
      %v3181 = vpop.f32.mrb[0].mxu0
      %3182 = vmatprep.mubr.f32.mxu0 0.0
      %3183 = vmatmul.mubr.f32.gmra.mrb[0].mxu0 %v2849
      %v3184 = vpop.f32.mrb[0].mxu0
      %v3185 = vadd.f32 0.0, %v3184
      %v3186 = vpop.f32.mrb[0].mxu0
      %3187 = vmatprep.mubr.f32.mxu0 0.0
      %3188 = vmatmul.mubr.f32.gmra.mrb[0].mxu0 %v2852
      %v3189 = vpop.f32.mrb[0].mxu0
      %v3190 = vadd.f32 0.0, %v3189
      %v3191 = vpop.f32.mrb[0].mxu0
      %3192 = vmatprep.mubr.f32.mxu0 0.0
      %3193 = vmatmul.mubr.f32.gmra.mrb[0].mxu0 %v2855
      %v3194 = vpop.f32.mrb[0].mxu0
      %v3195 = vadd.f32 0.0, %v3194
      %v3196 = vpop.f32.mrb[0].mxu0
      %3197 = vmatprep.mubr.f32.mxu0 0.0
      %3198 = vmatmul.mubr.f32.gmra.mrb[0].mxu0 %v2858
      %v3199 = vpop.f32.mrb[0].mxu0
      %v3200 = vadd.f32 0.0, %v3199
      %v3201 = vpop.f32.mrb[0].mxu0
      %3202 = vmatprep.mubr.f32.mxu0 0.0
      %3203 = vmatmul.mubr.f32.gmra.mrb[0].mxu0 %v2861
      %v3204 = vpop.f32.mrb[0].mxu0
      %v3205 = vadd.f32 0.0, %v3204
      %v3206 = vpop.f32.mrb[0].mxu0
      %3207 = vmatprep.mubr.f32.mxu0 0.0
      %3208 = vmatmul.mubr.f32.gmra.mrb[0].mxu0 %v2864
      %v3209 = vpop.f32.mrb[0].mxu0
      %v3210 = vadd.f32 0.0, %v3209
      %v3211 = vpop.f32.mrb[0].mxu0
      %3212 = vmatprep.mubr.f32.mxu0 0.0
      %3213 = vmatmul.mubr.f32.gmra.mrb[0].mxu0 %v2867
      %v3214 = vpop.f32.mrb[0].mxu0
      %v3215 = vadd.f32 0.0, %v3214
      %v3216 = vpop.f32.mrb[0].mxu0
      %3217 = vmatprep.mubr.f32.mxu0 0.0
      %3218 = vmatmul.mubr.f32.gmra.mrb[0].mxu0 %v2870
      %v3219 = vpop.f32.mrb[0].mxu0
      %v3220 = vadd.f32 0.0, %v3219
      %v3221 = vpop.f32.mrb[0].mxu0
      %3222 = vmatprep.mubr.f32.mxu0 0.0
      %3223 = vmatmul.mubr.f32.gmra.mrb[0].mxu0 %v2873
      %v3224 = vpop.f32.mrb[0].mxu0
      %v3225 = vadd.f32 0.0, %v3224
      %v3226 = vpop.f32.mrb[0].mxu0
      %3227 = vmatprep.mubr.f32.mxu0 0.0
      %3228 = vmatmul.mubr.f32.gmra.mrb[0].mxu0 %v2876
      %v3229 = vpop.f32.mrb[0].mxu0
      %v3230 = vadd.f32 0.0, %v3229
      %v3231 = vpop.f32.mrb[0].mxu0
      %3232 = vmatprep.mubr.f32.mxu0 0.0
      %3233 = vmatmul.mubr.f32.gmra.mrb[0].mxu0 %v2879
      %v3234 = vpop.f32.mrb[0].mxu0
      %v3235 = vadd.f32 0.0, %v3234
      %v3236 = vpop.f32.mrb[0].mxu0
      %3237 = vmatprep.mubr.f32.mxu0 0.0
      %3238 = vmatmul.mubr.f32.gmra.mrb[0].mxu0 %v2882
      %v3239 = vpop.f32.mrb[0].mxu0
      %v3240 = vadd.f32 0.0, %v3239
      %v3241 = vpop.f32.mrb[0].mxu0
      %3242 = vmatprep.mubr.f32.mxu0 0.0
      %3243 = vmatmul.mubr.f32.gmra.mrb[0].mxu0 %v2885
      %v3244 = vpop.f32.mrb[0].mxu0
      %v3245 = vadd.f32 0.0, %v3244
      %v3246 = vpop.f32.mrb[0].mxu0
      %3247 = vmatprep.mubr.f32.mxu0 0.0
      %3248 = vmatmul.mubr.f32.gmra.mrb[0].mxu0 %v2888
      %v3249 = vpop.f32.mrb[0].mxu0
      %v3250 = vadd.f32 0.0, %v3249
      %v3251 = vpop.f32.mrb[0].mxu0
      %3252 = vmatprep.mubr.f32.mxu0 0.0
      %3253 = vmatmul.mubr.f32.gmra.mrb[0].mxu0 %v2891
      %v3254 = vpop.f32.mrb[0].mxu0
      %v3255 = vadd.f32 0.0, %v3254
      %v3256 = vpop.f32.mrb[0].mxu0
      %3257 = vmatprep.mubr.f32.mxu0 0.0
      %3258 = vmatmul.mubr.f32.gmra.mrb[0].mxu0 %v2894
      %v3259 = vpop.f32.mrb[0].mxu0
      %v3260 = vadd.f32 0.0, %v3259
      %v3261 = vpop.f32.mrb[0].mxu0
      %3262 = vmatprep.mubr.f32.mxu0 0.0
      %3263 = vmatmul.mubr.f32.gmra.mrb[0].mxu0 %v2897
      %v3264 = vpop.f32.mrb[0].mxu0
      %v3265 = vadd.f32 0.0, %v3264
      %v3266 = vpop.f32.mrb[0].mxu0
      %3267 = vmatprep.mubr.f32.mxu0 0.0
      %3268 = vmatmul.mubr.f32.gmra.mrb[0].mxu0 %v2900
      %v3269 = vpop.f32.mrb[0].mxu0
      %v3270 = vadd.f32 0.0, %v3269
      %v3271 = vpop.f32.mrb[0].mxu0
      %3272 = vmatprep.mubr.f32.mxu0 0.0
      %3273 = vmatmul.mubr.f32.gmra.mrb[0].mxu0 %v2903
      %v3274 = vpop.f32.mrb[0].mxu0
      %v3275 = vadd.f32 0.0, %v3274
      %v3276 = vpop.f32.mrb[0].mxu0
      %3277 = vmatprep.mubr.f32.mxu0 0.0
      %3278 = vmatmul.mubr.f32.gmra.mrb[0].mxu0 %v2906
      %v3279 = vpop.f32.mrb[0].mxu0
      %v3280 = vadd.f32 0.0, %v3279
      %v3281 = vpop.f32.mrb[0].mxu0
      %3282 = vmatprep.mubr.f32.mxu0 0.0
      %3283 = vmatmul.mubr.f32.gmra.mrb[0].mxu0 %v2909
      %v3284 = vpop.f32.mrb[0].mxu0
      %v3285 = vadd.f32 0.0, %v3284
      %v3286 = vpop.f32.mrb[0].mxu0
      %3287 = vmatprep.mubr.f32.mxu0 0.0
      %3288 = vmatmul.mubr.f32.gmra.mrb[0].mxu0 %v2912
      %v3289 = vpop.f32.mrb[0].mxu0
      %v3290 = vadd.f32 0.0, %v3289
      %v3291 = vpop.f32.mrb[0].mxu0
      %3292 = vmatprep.mubr.f32.mxu0 0.0
      %3293 = vmatmul.mubr.f32.gmra.mrb[0].mxu0 %v2915
      %v3294 = vpop.f32.mrb[0].mxu0
      %v3295 = vadd.f32 0.0, %v3294
      %v3296 = vpop.f32.mrb[0].mxu0
      %3297 = vmatprep.mubr.f32.mxu0 0.0
      %3298 = vmatmul.mubr.f32.gmra.mrb[0].mxu0 %v2918
      %v3299 = vpop.f32.mrb[0].mxu0
      %v3300 = vadd.f32 0.0, %v3299
      %v3301 = vpop.f32.mrb[0].mxu0
      %3302 = vmatprep.mubr.f32.mxu0 0.0
      %3303 = vmatmul.mubr.f32.gmra.mrb[0].mxu0 %v2921
      %v3304 = vpop.f32.mrb[0].mxu0
      %v3305 = vadd.f32 0.0, %v3304
      %v3306 = vpop.f32.mrb[0].mxu0
      %3307 = vdwg.mxu0
      %v3308 = vmul.f32 %v2990, %v1257
      %v3309 = vmul.f32 %v2995, %v1258
      %v3310 = vmul.f32 %v3000, %v1259
      %v3311 = vmul.f32 %v3005, %v1260
      %v3312 = vmul.f32 %v3010, %v1261
      %v3313 = vmul.f32 %v3015, %v1262
      %v3314 = vmul.f32 %v3020, %v1263
      %v3315 = vmul.f32 %v3025, %v1264
      %v3316 = vmul.f32 %v3030, %v1265
      %v3317 = vmul.f32 %v3035, %v1266
      %v3318 = vmul.f32 %v3040, %v1267
      %v3319 = vmul.f32 %v3045, %v1268
      %v3320 = vmul.f32 %v3050, %v1269
      %v3321 = vmul.f32 %v3055, %v1270
      %v3322 = vmul.f32 %v3060, %v1271
      %v3323 = vmul.f32 %v3065, %v1272
      %v3324 = vmul.f32 %v3070, %v1273
      %v3325 = vmul.f32 %v3075, %v1274
      %v3326 = vmul.f32 %v3080, %v1275
      %v3327 = vmul.f32 %v3085, %v1276
      %v3328 = vmul.f32 %v3090, %v1277
      %v3329 = vmul.f32 %v3095, %v1278
      %v3330 = vmul.f32 %v3100, %v1279
      %v3331 = vmul.f32 %v3105, %v1280
      %v3332 = vmul.f32 %v3110, %v1281
      %v3333 = vmul.f32 %v3115, %v1282
      %v3334 = vmul.f32 %v3120, %v1283
      %v3335 = vmul.f32 %v3125, %v1284
      %v3336 = vmul.f32 %v3130, %v1285
      %v3337 = vmul.f32 %v3135, %v1286
      %v3338 = vmul.f32 %v3140, %v1287
      %v3339 = vmul.f32 %v3145, %v1288
      %v3340 = vmul.f32 %v3150, %v1289
      %v3341 = vmul.f32 %v3155, %v1290
      %v3342 = vmul.f32 %v3160, %v1291
      %v3343 = vmul.f32 %v3165, %v1292
      %v3344 = vmul.f32 %v3170, %v1293
      %v3345 = vmul.f32 %v3175, %v1294
      %v3346 = vmul.f32 %v3180, %v1295
      %v3347 = vmul.f32 %v3185, %v1296
      %v3348 = vmul.f32 %v3190, %v1297
      %v3349 = vmul.f32 %v3195, %v1298
      %v3350 = vmul.f32 %v3200, %v1299
      %v3351 = vmul.f32 %v3205, %v1300
      %v3352 = vmul.f32 %v3210, %v1301
      %v3353 = vmul.f32 %v3215, %v1302
      %v3354 = vmul.f32 %v3220, %v1303
      %v3355 = vmul.f32 %v3225, %v1304
      %v3356 = vmul.f32 %v3230, %v1305
      %v3357 = vmul.f32 %v3235, %v1306
      %v3358 = vmul.f32 %v3240, %v1307
      %v3359 = vmul.f32 %v3245, %v1308
      %v3360 = vmul.f32 %v3250, %v1309
      %v3361 = vmul.f32 %v3255, %v1310
      %v3362 = vmul.f32 %v3260, %v1311
      %v3363 = vmul.f32 %v3265, %v1312
      %v3364 = vmul.f32 %v3270, %v1313
      %v3365 = vmul.f32 %v3275, %v1314
      %v3366 = vmul.f32 %v3280, %v1315
      %v3367 = vmul.f32 %v3285, %v1316
      %v3368 = vmul.f32 %v3290, %v1317
      %v3369 = vmul.f32 %v3295, %v1318
      %v3370 = vmul.f32 %v3300, %v1319
      %v3371 = vmul.f32 %v3305, %v1320
      %v3372 = vsel %vm666, %v3308, 0.0
      %v3373 = vsel %vm666, %v3316, 0.0
      %v3374 = vadd.f32 %v3372, %v3373
      %v3375 = vsel %vm666, %v3324, 0.0
      %v3376 = vadd.f32 %v3374, %v3375
      %v3377 = vsel %vm666, %v3332, 0.0
      %v3378 = vadd.f32 %v3376, %v3377
      %v3379 = vsel %vm666, %v3340, 0.0
      %v3380 = vadd.f32 %v3378, %v3379
      %v3381 = vsel %vm666, %v3348, 0.0
      %v3382 = vadd.f32 %v3380, %v3381
      %v3383 = vsel %vm666, %v3356, 0.0
      %v3384 = vadd.f32 %v3382, %v3383
      %v3385 = vsel %vm666, %v3364, 0.0
      %v3386 = vadd.f32 %v3384, %v3385
      %v3387 = vsel %vm666, %v3309, 0.0
      %v3388 = vsel %vm666, %v3317, 0.0
      %v3389 = vadd.f32 %v3387, %v3388
      %v3390 = vsel %vm666, %v3325, 0.0
      %v3391 = vadd.f32 %v3389, %v3390
      %v3392 = vsel %vm666, %v3333, 0.0
      %v3393 = vadd.f32 %v3391, %v3392
      %v3394 = vsel %vm666, %v3341, 0.0
      %v3395 = vadd.f32 %v3393, %v3394
      %v3396 = vsel %vm666, %v3349, 0.0
      %v3397 = vadd.f32 %v3395, %v3396
      %v3398 = vsel %vm666, %v3357, 0.0
      %v3399 = vadd.f32 %v3397, %v3398
      %v3400 = vsel %vm666, %v3365, 0.0
      %v3401 = vadd.f32 %v3399, %v3400
      %v3402 = vsel %vm666, %v3310, 0.0
      %v3403 = vsel %vm666, %v3318, 0.0
      %v3404 = vadd.f32 %v3402, %v3403
      %v3405 = vsel %vm666, %v3326, 0.0
      %v3406 = vadd.f32 %v3404, %v3405
      %v3407 = vsel %vm666, %v3334, 0.0
      %v3408 = vadd.f32 %v3406, %v3407
      %v3409 = vsel %vm666, %v3342, 0.0
      %v3410 = vadd.f32 %v3408, %v3409
      %v3411 = vsel %vm666, %v3350, 0.0
      %v3412 = vadd.f32 %v3410, %v3411
      %v3413 = vsel %vm666, %v3358, 0.0
      %v3414 = vadd.f32 %v3412, %v3413
      %v3415 = vsel %vm666, %v3366, 0.0
      %v3416 = vadd.f32 %v3414, %v3415
      %v3417 = vsel %vm666, %v3311, 0.0
      %v3418 = vsel %vm666, %v3319, 0.0
      %v3419 = vadd.f32 %v3417, %v3418
      %v3420 = vsel %vm666, %v3327, 0.0
      %v3421 = vadd.f32 %v3419, %v3420
      %v3422 = vsel %vm666, %v3335, 0.0
      %v3423 = vadd.f32 %v3421, %v3422
      %v3424 = vsel %vm666, %v3343, 0.0
      %v3425 = vadd.f32 %v3423, %v3424
      %v3426 = vsel %vm666, %v3351, 0.0
      %v3427 = vadd.f32 %v3425, %v3426
      %v3428 = vsel %vm666, %v3359, 0.0
      %v3429 = vadd.f32 %v3427, %v3428
      %v3430 = vsel %vm666, %v3367, 0.0
      %v3431 = vadd.f32 %v3429, %v3430
      %v3432 = vsel %vm666, %v3312, 0.0
      %v3433 = vsel %vm666, %v3320, 0.0
      %v3434 = vadd.f32 %v3432, %v3433
      %v3435 = vsel %vm666, %v3328, 0.0
      %v3436 = vadd.f32 %v3434, %v3435
      %v3437 = vsel %vm666, %v3336, 0.0
      %v3438 = vadd.f32 %v3436, %v3437
      %v3439 = vsel %vm666, %v3344, 0.0
      %v3440 = vadd.f32 %v3438, %v3439
      %v3441 = vsel %vm666, %v3352, 0.0
      %v3442 = vadd.f32 %v3440, %v3441
      %v3443 = vsel %vm666, %v3360, 0.0
      %v3444 = vadd.f32 %v3442, %v3443
      %v3445 = vsel %vm666, %v3368, 0.0
      %v3446 = vadd.f32 %v3444, %v3445
      %v3447 = vsel %vm666, %v3313, 0.0
      %v3448 = vsel %vm666, %v3321, 0.0
      %v3449 = vadd.f32 %v3447, %v3448
      %v3450 = vsel %vm666, %v3329, 0.0
      %v3451 = vadd.f32 %v3449, %v3450
      %v3452 = vsel %vm666, %v3337, 0.0
      %v3453 = vadd.f32 %v3451, %v3452
      %v3454 = vsel %vm666, %v3345, 0.0
      %v3455 = vadd.f32 %v3453, %v3454
      %v3456 = vsel %vm666, %v3353, 0.0
      %v3457 = vadd.f32 %v3455, %v3456
      %v3458 = vsel %vm666, %v3361, 0.0
      %v3459 = vadd.f32 %v3457, %v3458
      %v3460 = vsel %vm666, %v3369, 0.0
      %v3461 = vadd.f32 %v3459, %v3460
      %v3462 = vsel %vm666, %v3314, 0.0
      %v3463 = vsel %vm666, %v3322, 0.0
      %v3464 = vadd.f32 %v3462, %v3463
      %v3465 = vsel %vm666, %v3330, 0.0
      %v3466 = vadd.f32 %v3464, %v3465
      %v3467 = vsel %vm666, %v3338, 0.0
      %v3468 = vadd.f32 %v3466, %v3467
      %v3469 = vsel %vm666, %v3346, 0.0
      %v3470 = vadd.f32 %v3468, %v3469
      %v3471 = vsel %vm666, %v3354, 0.0
      %v3472 = vadd.f32 %v3470, %v3471
      %v3473 = vsel %vm666, %v3362, 0.0
      %v3474 = vadd.f32 %v3472, %v3473
      %v3475 = vsel %vm666, %v3370, 0.0
      %v3476 = vadd.f32 %v3474, %v3475
      %v3477 = vsel %vm666, %v3315, 0.0
      %v3478 = vsel %vm666, %v3323, 0.0
      %v3479 = vadd.f32 %v3477, %v3478
      %v3480 = vsel %vm666, %v3331, 0.0
      %v3481 = vadd.f32 %v3479, %v3480
      %v3482 = vsel %vm666, %v3339, 0.0
      %v3483 = vadd.f32 %v3481, %v3482
      %v3484 = vsel %vm666, %v3347, 0.0
      %v3485 = vadd.f32 %v3483, %v3484
      %v3486 = vsel %vm666, %v3355, 0.0
      %v3487 = vadd.f32 %v3485, %v3486
      %v3488 = vsel %vm666, %v3363, 0.0
      %v3489 = vadd.f32 %v3487, %v3488
      %v3490 = vsel %vm666, %v3371, 0.0
      %v3491 = vadd.f32 %v3489, %v3490
      %v3492 = vld [vmem:[%s8] sm:$0xff]
      %v3493 = vld [vmem:[%s8 + $0x8] sm:$0xff]
      %v3494 = vld [vmem:[%s8 + $0x10] sm:$0xff]
      %v3495 = vld [vmem:[%s8 + $0x18] sm:$0xff]
      %v3496 = vld [vmem:[%s9] sm:$0x1]
      %v3498 = vlaneseq
      %v3499 = vshrl.u32 %v3498, 7
      %v3500 = vsub.s32 0, %v3499
      %v3501 = vrot.slane %v3496, %v3500
      %v3504 = vsel %vm666, %v3386, 0
      %v3507 = vsel %vm666, %v3401, 0
      %v3510 = vsel %vm666, %v3416, 0
      %v3513 = vsel %vm666, %v3431, 0
      %v3516 = vsel %vm666, %v3446, 0
      %v3519 = vsel %vm666, %v3461, 0
      %v3522 = vsel %vm666, %v3476, 0
      %v3525 = vsel %vm666, %v3491, 0
      %3527 = vmatprep.subr.mxu0 0.0
      %3528 = vmatpush1.msra.mxu0 %v3492
      %3529 = vmatprep.subr.mxu0 0.0
      %3530 = vmatpush1.msra.mxu0 %v3493
      %3531 = vmatprep.subr.mxu0 0.0
      %3532 = vmatpush1.msra.mxu0 %v3494
      %3533 = vmatprep.subr.mxu0 0.0
      %3534 = vmatpush1.msra.mxu0 %v3495
      %3535 = vmatprep.subr.mxu0 0.0
      %3536 = vmatpush1.msra.mxu0 0.0
      %3537 = vmatprep.subr.mxu0 0.0
      %3538 = vmatpush1.msra.mxu0 0.0
      %3539 = vmatprep.subr.mxu0 0.0
      %3540 = vmatpush1.msra.mxu0 0.0
      %3541 = vmatprep.subr.mxu0 0.0
      %3542 = vmatpush1.msra.mxu0 0.0
      %3543 = vmatprep.subr.mxu0 0.0
      %3544 = vmatpush1.msra.mxu0 0.0
      %3545 = vmatprep.subr.mxu0 0.0
      %3546 = vmatpush1.msra.mxu0 0.0
      %3547 = vmatprep.subr.mxu0 0.0
      %3548 = vmatpush1.msra.mxu0 0.0
      %3549 = vmatprep.subr.mxu0 0.0
      %3550 = vmatpush1.msra.mxu0 0.0
      %3551 = vmatprep.subr.mxu0 0.0
      %3552 = vmatpush1.msra.mxu0 0.0
      %3553 = vmatprep.subr.mxu0 0.0
      %3554 = vmatpush1.msra.mxu0 0.0
      %3555 = vmatprep.subr.mxu0 0.0
      %3556 = vmatpush1.msra.mxu0 0.0
      %3557 = vmatprep.subr.mxu0 0.0
      %3558 = vmatpush1.msra.mxu0 0.0
      %3559 = vmatprep.subr.mxu0 0.0
      %3560 = vmatpush1.msra.mxu0 0.0
      %3561 = vmatprep.subr.mxu0 0.0
      %3562 = vmatpush1.msra.mxu0 0.0
      %3563 = vmatprep.subr.mxu0 0.0
      %3564 = vmatpush1.msra.mxu0 0.0
      %3565 = vmatprep.subr.mxu0 0.0
      %3566 = vmatpush1.msra.mxu0 0.0
      %3567 = vmatprep.subr.mxu0 0.0
      %3568 = vmatpush1.msra.mxu0 0.0
      %3569 = vmatprep.subr.mxu0 0.0
      %3570 = vmatpush1.msra.mxu0 0.0
      %3571 = vmatprep.subr.mxu0 0.0
      %3572 = vmatpush1.msra.mxu0 0.0
      %3573 = vmatprep.subr.mxu0 0.0
      %3574 = vmatpush1.msra.mxu0 0.0
      %3575 = vmatprep.subr.mxu0 0.0
      %3576 = vmatpush1.msra.mxu0 0.0
      %3577 = vmatprep.subr.mxu0 0.0
      %3578 = vmatpush1.msra.mxu0 0.0
      %3579 = vmatprep.subr.mxu0 0.0
      %3580 = vmatpush1.msra.mxu0 0.0
      %3581 = vmatprep.subr.mxu0 0.0
      %3582 = vmatpush1.msra.mxu0 0.0
      %3583 = vmatprep.subr.mxu0 0.0
      %3584 = vmatpush1.msra.mxu0 0.0
      %3585 = vmatprep.subr.mxu0 0.0
      %3586 = vmatpush1.msra.mxu0 0.0
      %3587 = vmatprep.subr.mxu0 0.0
      %3588 = vmatpush1.msra.mxu0 0.0
      %3589 = vmatprep.subr.mxu0 0.0
      %3590 = vmatpush1.msra.mxu0 0.0
      %3591 = vmatprep.mubr.f32.mxu0 0.0
      %3592 = vmatmul.mubr.f32.gmra.mrb[0].mxu0 %v3504
      %v3593 = vpop.f32.mrb[0].mxu0
      %v3594 = vadd.f32 %v3501, %v3593
      %v3595 = vpop.f32.mrb[0].mxu0
      %3596 = vmatprep.mubr.f32.mxu0 0.0
      %3597 = vmatmul.mubr.f32.gmra.mrb[0].mxu0 %v3507
      %v3598 = vpop.f32.mrb[0].mxu0
      %v3599 = vadd.f32 %v3501, %v3598
      %v3600 = vpop.f32.mrb[0].mxu0
      %3601 = vmatprep.mubr.f32.mxu0 0.0
      %3602 = vmatmul.mubr.f32.gmra.mrb[0].mxu0 %v3510
      %v3603 = vpop.f32.mrb[0].mxu0
      %v3604 = vadd.f32 %v3501, %v3603
      %v3605 = vpop.f32.mrb[0].mxu0
      %3606 = vmatprep.mubr.f32.mxu0 0.0
      %3607 = vmatmul.mubr.f32.gmra.mrb[0].mxu0 %v3513
      %v3608 = vpop.f32.mrb[0].mxu0
      %v3609 = vadd.f32 %v3501, %v3608
      %v3610 = vpop.f32.mrb[0].mxu0
      %3611 = vmatprep.mubr.f32.mxu0 0.0
      %3612 = vmatmul.mubr.f32.gmra.mrb[0].mxu0 %v3516
      %v3613 = vpop.f32.mrb[0].mxu0
      %v3614 = vadd.f32 %v3501, %v3613
      %v3615 = vpop.f32.mrb[0].mxu0
      %3616 = vmatprep.mubr.f32.mxu0 0.0
      %3617 = vmatmul.mubr.f32.gmra.mrb[0].mxu0 %v3519
      %v3618 = vpop.f32.mrb[0].mxu0
      %v3619 = vadd.f32 %v3501, %v3618
      %v3620 = vpop.f32.mrb[0].mxu0
      %3621 = vmatprep.mubr.f32.mxu0 0.0
      %3622 = vmatmul.mubr.f32.gmra.mrb[0].mxu0 %v3522
      %v3623 = vpop.f32.mrb[0].mxu0
      %v3624 = vadd.f32 %v3501, %v3623
      %v3625 = vpop.f32.mrb[0].mxu0
      %3626 = vmatprep.mubr.f32.mxu0 0.0
      %3627 = vmatmul.mubr.f32.gmra.mrb[0].mxu0 %v3525
      %v3628 = vpop.f32.mrb[0].mxu0
      %v3629 = vadd.f32 %v3501, %v3628
      %v3630 = vpop.f32.mrb[0].mxu0
      %3631 = vdwg.mxu0
      %3632 = vxpose.xlu0.b32.start [1/16] %v3594, 128
      %3633 = vxpose.xlu0.b32.cont [2/16] %v3599, 128
      %3634 = vxpose.xlu0.b32.cont [3/16] %v3604, 128
      %3635 = vxpose.xlu0.b32.cont [4/16] %v3609, 128
      %3636 = vxpose.xlu0.b32.cont [5/16] %v3614, 128
      %3637 = vxpose.xlu0.b32.cont [6/16] %v3619, 128
      %3638 = vxpose.xlu0.b32.cont [7/16] %v3624, 128
      %3639 = vxpose.xlu0.b32.cont [8/16] %v3629, 128
      %3640 = vxpose.xlu0.b32.cont [9/16] 0.0, 128
      %3641 = vxpose.xlu0.b32.cont [10/16] 0.0, 128
      %3642 = vxpose.xlu0.b32.cont [11/16] 0.0, 128
      %3643 = vxpose.xlu0.b32.cont [12/16] 0.0, 128
      %3644 = vxpose.xlu0.b32.cont [13/16] 0.0, 128
      %3645 = vxpose.xlu0.b32.cont [14/16] 0.0, 128
      %3646 = vxpose.xlu0.b32.cont [15/16] 0.0, 128
      %3647 = vxpose.xlu0.b32.end [16/16] 0.0, 128
      %v3648 = vpop.trf.xlu0
      %v3649 = vpop.trf.xlu0
      %v3650 = vpop.trf.xlu0
      %v3651 = vpop.trf.xlu0
      %v3652 = vpop.trf.xlu0
      %v3653 = vpop.trf.xlu0
      %v3654 = vpop.trf.xlu0
      %v3655 = vpop.trf.xlu0
      %v3656 = vpop.trf.xlu0
      %v3657 = vpop.trf.xlu0
      %v3658 = vpop.trf.xlu0
      %v3659 = vpop.trf.xlu0
      %v3660 = vpop.trf.xlu0
      %v3661 = vpop.trf.xlu0
      %v3662 = vpop.trf.xlu0
      %v3663 = vpop.trf.xlu0
      %v3665 = vsel %vm2002, %v3648, 0
      %v3668 = vsel %vm2002, %v3649, 0
      %v3671 = vsel %vm2002, %v3650, 0
      %v3674 = vsel %vm2002, %v3651, 0
      %3676 = vmatprep.subr.mxu0 %v956
      %3677 = vmatpush1.msra.mxu0 %v955
      %3678 = vmatprep.subr.mxu0 %v958
      %3679 = vmatpush1.msra.mxu0 %v957
      %3680 = vmatprep.subr.mxu0 %v960
      %3681 = vmatpush1.msra.mxu0 %v959
      %3682 = vmatprep.subr.mxu0 %v962
      %3683 = vmatpush1.msra.mxu0 %v961
      %3684 = vmatprep.subr.mxu0 %v964
      %3685 = vmatpush1.msra.mxu0 %v963
      %3686 = vmatprep.subr.mxu0 %v966
      %3687 = vmatpush1.msra.mxu0 %v965
      %3688 = vmatprep.subr.mxu0 %v968
      %3689 = vmatpush1.msra.mxu0 %v967
      %3690 = vmatprep.subr.mxu0 %v970
      %3691 = vmatpush1.msra.mxu0 %v969
      %3692 = vmatprep.subr.mxu0 0.0
      %3693 = vmatpush1.msra.mxu0 0.0
      %3694 = vmatprep.subr.mxu0 0.0
      %3695 = vmatpush1.msra.mxu0 0.0
      %3696 = vmatprep.subr.mxu0 0.0
      %3697 = vmatpush1.msra.mxu0 0.0
      %3698 = vmatprep.subr.mxu0 0.0
      %3699 = vmatpush1.msra.mxu0 0.0
      %3700 = vmatprep.subr.mxu0 0.0
      %3701 = vmatpush1.msra.mxu0 0.0
      %3702 = vmatprep.subr.mxu0 0.0
      %3703 = vmatpush1.msra.mxu0 0.0
      %3704 = vmatprep.subr.mxu0 0.0
      %3705 = vmatpush1.msra.mxu0 0.0
      %3706 = vmatprep.subr.mxu0 0.0
      %3707 = vmatpush1.msra.mxu0 0.0
      %3708 = vmatprep.subr.mxu0 0.0
      %3709 = vmatpush1.msra.mxu0 0.0
      %3710 = vmatprep.subr.mxu0 0.0
      %3711 = vmatpush1.msra.mxu0 0.0
      %3712 = vmatprep.subr.mxu0 0.0
      %3713 = vmatpush1.msra.mxu0 0.0
      %3714 = vmatprep.subr.mxu0 0.0
      %3715 = vmatpush1.msra.mxu0 0.0
      %3716 = vmatprep.subr.mxu0 0.0
      %3717 = vmatpush1.msra.mxu0 0.0
      %3718 = vmatprep.subr.mxu0 0.0
      %3719 = vmatpush1.msra.mxu0 0.0
      %3720 = vmatprep.subr.mxu0 0.0
      %3721 = vmatpush1.msra.mxu0 0.0
      %3722 = vmatprep.subr.mxu0 0.0
      %3723 = vmatpush1.msra.mxu0 0.0
      %3724 = vmatprep.subr.mxu0 0.0
      %3725 = vmatpush1.msra.mxu0 0.0
      %3726 = vmatprep.subr.mxu0 0.0
      %3727 = vmatpush1.msra.mxu0 0.0
      %3728 = vmatprep.subr.mxu0 0.0
      %3729 = vmatpush1.msra.mxu0 0.0
      %3730 = vmatprep.subr.mxu0 0.0
      %3731 = vmatpush1.msra.mxu0 0.0
      %3732 = vmatprep.subr.mxu0 0.0
      %3733 = vmatpush1.msra.mxu0 0.0
      %3734 = vmatprep.subr.mxu0 0.0
      %3735 = vmatpush1.msra.mxu0 0.0
      %3736 = vmatprep.subr.mxu0 0.0
      %3737 = vmatpush1.msra.mxu0 0.0
      %3738 = vmatprep.subr.mxu0 0.0
      %3739 = vmatpush1.msra.mxu0 0.0
      %3740 = vmatprep.mubr.f32.mxu0 0.0
      %3741 = vmatmul.mubr.f32.gmra.mrb[0].mxu0 %v3665
      %v3742 = vpop.f32.mrb[0].mxu0
      %v3743 = vadd.f32 0.0, %v3742
      %v3744 = vpop.f32.mrb[0].mxu0
      %v3745 = vadd.f32 0.0, %v3744
      %3746 = vmatprep.mubr.f32.mxu0 0.0
      %3747 = vmatmul.mubr.f32.gmra.mrb[0].mxu0 %v3668
      %v3748 = vpop.f32.mrb[0].mxu0
      %v3749 = vadd.f32 0.0, %v3748
      %v3750 = vpop.f32.mrb[0].mxu0
      %v3751 = vadd.f32 0.0, %v3750
      %3752 = vmatprep.mubr.f32.mxu0 0.0
      %3753 = vmatmul.mubr.f32.gmra.mrb[0].mxu0 %v3671
      %v3754 = vpop.f32.mrb[0].mxu0
      %v3755 = vadd.f32 0.0, %v3754
      %v3756 = vpop.f32.mrb[0].mxu0
      %v3757 = vadd.f32 0.0, %v3756
      %3758 = vmatprep.mubr.f32.mxu0 0.0
      %3759 = vmatmul.mubr.f32.gmra.mrb[0].mxu0 %v3674
      %v3760 = vpop.f32.mrb[0].mxu0
      %v3761 = vadd.f32 0.0, %v3760
      %v3762 = vpop.f32.mrb[0].mxu0
      %v3763 = vadd.f32 0.0, %v3762
      %3764 = vdwg.mxu0
      %3765 = vst [vmem:[%s359] sm:$0xff] %v3743
      %3766 = vst [vmem:[%s359 + $0x8] sm:$0xff] %v3745
      %3767 = vst [vmem:[%s359 + $0x10] sm:$0xff] %v3749
      %3768 = vst [vmem:[%s359 + $0x18] sm:$0xff] %v3751
      %3769 = vst [vmem:[%s359 + $0x20] sm:$0xff] %v3755
      %3770 = vst [vmem:[%s359 + $0x28] sm:$0xff] %v3757
      %3771 = vst [vmem:[%s359 + $0x30] sm:$0xff] %v3761
      %3772 = vst [vmem:[%s359 + $0x38] sm:$0xff] %v3763
      %p3773 = scmp.lt.s32.totalorder %s21, 1
      %s3774 = scalar_select %p3773, %s21, 1
      %s3775 = smul.addr %s3774, 8
      %s3776 = smul.addr %s3775, 8
      %s3777 = scalar_lea.vmem %s10, %s3776
      // Predicated region
      $region61: #{stoken_attention_forward.1} parent=59 // pred_check
        %p3778 = pneg %p254
      $region62: #{stoken_attention_forward.1} parent=59 // pred_check_branch
        %3780 = sbr.rel (%p3778) target = $region64
      $region63: #{stoken_attention_forward.1} parent=59 // pred_region
        _
      $region64: #{stoken_attention_forward.1} parent=59 // pred_fallthru
        _
    $region60: #{stoken_attention_forward.1} parent=5 // pred_fallthru
      _
    %p3781 = scmp.le.s32.totalorder 2, %s16
    // Predicated region
    $region65: #{stoken_attention_forward.1} parent=5 // pred_check
      %p3782 = pneg %p3781
    $region66: #{stoken_attention_forward.1} parent=5 // pred_check_branch
      %3784 = sbr.rel (%p3782) target = $region68
    $region67: #{stoken_attention_forward.1} parent=5 // pred_region
      %s3785 = ssub.s32 %s16, 2
      // Predicated region
      $region69: #{stoken_attention_forward.1} parent=67 // pred_check
        %p3786 = pneg %p260
      $region70: #{stoken_attention_forward.1} parent=67 // pred_check_branch
        %3788 = sbr.rel (%p3786) target = $region72
      $region71: #{stoken_attention_forward.1} parent=67 // pred_region
        %p3789 = scmp.lt.s32.totalorder %s22, 1
        %s3790 = scalar_select %p3789, %s22, 1
        %s3791 = smul.addr %s3790, 8
        %s3792 = smul.addr %s3791, 8
        %s3793 = scalar_lea.vmem %s10, %s3792
      $region72: #{stoken_attention_forward.1} parent=67 // pred_fallthru
        _
    $region68: #{stoken_attention_forward.1} parent=5 // pred_fallthru
      _
  $region6: #{stoken_attention_forward.1} parent=0 // loop_footer
    %s20 = sadd.s32 1, %s16
  $region7: #{stoken_attention_forward.1} parent=0 // loop_footer_branch
    %15 = sbr.rel target = $region3
  $region8: #{stoken_attention_forward.1} parent=0 // loop_exit
    _

</llo_original>
